<compile_context>
chip_gen: v6e
topology: v6e:2x2x1
jax: 0.10.0
libtpu: 0.0.40
codegen_flags: <defaults>
</compile_context>

<pallas_src>
import functools
import math

import jax
import jax.numpy as jnp
from jax.experimental import pallas as pl
from jax.experimental.pallas import tpu as pltpu

HEADS = 8
INV_SQRT2 = 0.7071067811865476
LN_EPS = 1e-8            # matches the in-file reference (torch default is 1e-5)
FFN_TILE_TARGET = 512    # target lane-aligned FFN column tile width


def _layernorm(h, gamma, beta, eps=LN_EPS):
    mu = jnp.mean(h, axis=-1, keepdims=True)
    var = jnp.mean((h - mu) ** 2, axis=-1, keepdims=True)
    return (h - mu) * jax.lax.rsqrt(var + eps) * gamma + beta


def _gelu_exact(h):
    # torch.nn.GELU() default = exact erf formulation
    return 0.5 * h * (1.0 + jax.lax.erf(h * INV_SQRT2))


def transformer_kernel(n_ffn_tiles,
                       x_ref,
                       wqkv_ref, bqkv_ref, bias_ref,
                       wso_ref, bso_ref, gso_ref, eso_ref,
                       wi_ref, bi_ref,
                       wo_ref, bo_ref, go_ref, eo_ref,
                       wfc_ref, bfc_ref,
                       out_ref):
    x3 = x_ref[...]                                   # (Bb, L, D) f32
    Bb, L, D = x3.shape
    mm_dt = wqkv_ref.dtype                            # bf16 (or f32) matmul dtype

    x2 = x3.reshape(Bb * L, D)                        # flatten: one matmul per layer
    x2_mm = x2.astype(mm_dt)

    # Fused Q|K|V projection: (Bb*L, D) @ (D, 3D).  1/sqrt(dh) is pre-folded
    # into the Q columns of wqkv/bqkv by the wrapper.
    qkv = (jnp.dot(x2_mm, wqkv_ref[...], preferred_element_type=jnp.float32)
           + bqkv_ref[...])
    qkv = qkv.reshape(Bb, L, 3 * D)
    q = qkv[:, :, 0 * D:1 * D].astype(mm_dt)
    k = qkv[:, :, 1 * D:2 * D].astype(mm_dt)
    v = qkv[:, :, 2 * D:3 * D].astype(mm_dt)

    # Block-diagonal formulation of the per-head (dh x dh) "attention" over
    # the head_dim axis (faithful to the reference permute(0, 2, 3, 1)).
    # bias_ref holds 0 on per-head diagonal blocks and -1e30 elsewhere.
    # TODO(synk): at real BERT sizes (dh=96) evaluate the per-head
    # (Bb*H, dh, dh) reformulation to drop the 8x masked score/exp waste.
    s = (jnp.einsum('bld,ble->bde', q, k, preferred_element_type=jnp.float32)
         + bias_ref[...][None, :, :])                                    # (Bb, D, D)
    s = s - jnp.max(s, axis=-1, keepdims=True)
    p = jnp.exp(s)
    p = p * pl.reciprocal(jnp.sum(p, axis=-1, keepdims=True), approx=True)
    attn = jnp.einsum('ble,bde->bld', v, p.astype(mm_dt),
                      preferred_element_type=jnp.float32)                # (Bb, L, D)
    attn2 = attn.reshape(Bb * L, D)

    # BertSelfOutput (dropout -> identity)
    h1 = _layernorm(
        jnp.dot(attn2.astype(mm_dt), wso_ref[...],
                preferred_element_type=jnp.float32) + bso_ref[...] + x2,
        gso_ref[...], eso_ref[...])                                      # (Bb*L, D)

    # BertIntermediate + BertOutput matmuls, tiled over the 4*D axis so the
    # full (Bb*L, 4D) intermediate never materializes.
    # TODO(synk): at real sizes stream wi/wo tiles from HBM via a grid axis
    # instead of keeping them fully VMEM-resident (currently single-buffered).
    d_ff = wi_ref.shape[1]
    t_ff = d_ff // n_ffn_tiles
    h1_mm = h1.astype(mm_dt)
    acc = jnp.zeros((Bb * L, D), jnp.float32)
    for t in range(n_ffn_tiles):
        lo, hi = t * t_ff, (t + 1) * t_ff
        h2_t = _gelu_exact(
            jnp.dot(h1_mm, wi_ref[:, lo:hi],
                    preferred_element_type=jnp.float32) + bi_ref[:, lo:hi])
        acc = acc + jnp.dot(h2_t.astype(mm_dt), wo_ref[lo:hi, :],
                            preferred_element_type=jnp.float32)

    # BertOutput (residual is the ORIGINAL input x, as in the reference forward)
    h3 = _layernorm(acc + bo_ref[...] + x2, go_ref[...], eo_ref[...])    # (Bb*L, D)

    # mean over sequence, fc_1, tanh
    pooled = jnp.mean(h3.reshape(Bb, L, D), axis=1)                      # (Bb, D)
    out_ref[0] = jnp.tanh(
        jnp.dot(pooled.astype(mm_dt), wfc_ref[...],
                preferred_element_type=jnp.float32) + bfc_ref[...])


def _pick_ffn_tiles(d_ff, target=FFN_TILE_TARGET):
    """Largest tile count whose tile width is >= target and a multiple of 128."""
    best = 1
    for n in range(1, d_ff // target + 1):
        if d_ff % n == 0 and (d_ff // n) % 128 == 0 and d_ff // n >= target:
            best = n
    return best


def _per_elem_vmem_bytes(L, D, n_ffn_tiles):
    """Rough f32/bf16 VMEM footprint of one batch element's intermediates."""
    d_ff = 4 * D
    b = 0
    b += 2 * L * D * 4                       # x slab (double-buffered input)
    b += L * 3 * D * 4                       # qkv
    b += 2 * D * D * 4                       # s, p
    b += 3 * L * D * 4                       # attn, h1, acc/h3
    b += L * (d_ff // n_ffn_tiles) * 4       # one FFN column tile of h2
    b += 4 * L * D * 2                       # bf16 copies of matmul operands
    return b


def _auto_num_chunks(B, L, D, n_ffn_tiles, weight_bytes, vmem_limit):
    budget = max(vmem_limit - weight_bytes - (6 << 20), 1 << 20)
    per = _per_elem_vmem_bytes(L, D, n_ffn_tiles)
    bb_max = max(1, budget // per)
    n = -(-B // bb_max)                       # ceil-div: chunks needed to fit VMEM
    n = max(n, min(B, 4))                     # >= 2 pipelined steps per v7x core
    if n > 1 and n % 2 == 1:                  # keep both TensorCores loaded
        n += 1
    return n


def my_transformer1_forward(x, params, num_chunks=None, matmul_dtype=jnp.bfloat16):
    B, L, D = x.shape
    dh = D // HEADS
    inv_scale = 1.0 / math.sqrt(dh)
    x = x.astype(jnp.float32)

    def mm(w):
        return w.astype(matmul_dtype)

    def f32(w):
        return w.astype(jnp.float32)

    # Fuse Q/K/V weights once in the wrapper (zero kernel-time cost); fold the
    # 1/sqrt(dh) score scale into the Q columns.
    wqkv = jnp.concatenate(
        [params["wq"] * inv_scale, params["wk"], params["wv"]], axis=1)   # (D, 3D)
    bqkv = jnp.concatenate(
        [params["bq"] * inv_scale, params["bk"], params["bv"]], axis=1)   # (1, 3D)

    # Precomputed additive head mask: 0 inside per-head diagonal blocks,
    # -1e30 elsewhere (replaces the per-step iota/compare/select).
    rows = jnp.arange(D)[:, None] // dh
    cols = jnp.arange(D)[None, :] // dh
    head_bias = jnp.where(rows == cols, 0.0, -1e30).astype(jnp.float32)   # (D, D)

    plist = [mm(wqkv), f32(bqkv), head_bias,
             mm(params["wso"]), f32(params["bso"]), f32(params["gso"]), f32(params["eso"]),
             mm(params["wi"]), f32(params["bi"]),
             mm(params["wo"]), f32(params["bo"]), f32(params["go"]), f32(params["eo"]),
             mm(params["wfc"]), f32(params["bfc"])]
    weight_bytes = sum(int(a.size) * a.dtype.itemsize for a in plist)

    d_ff = params["wi"].shape[1]
    n_ffn_tiles = _pick_ffn_tiles(d_ff)

    # Per-generation VMEM budget (v5e/v6e ~96 MiB, v7x ~48 MiB).
    try:
        vmem_cap = int(getattr(pltpu.get_tpu_info(), "vmem_capacity_bytes", 64 << 20))
    except Exception:
        vmem_cap = 64 << 20
    vmem_limit = min((vmem_cap * 3) // 4, 100 << 20)

    if num_chunks is None:
        num_chunks = _auto_num_chunks(B, L, D, n_ffn_tiles, weight_bytes, vmem_limit)

    Bb = pl.cdiv(B, num_chunks)
    B_pad = Bb * num_chunks
    if B_pad != B:
        x = jnp.concatenate([x, jnp.zeros((B_pad - B, L, D), x.dtype)], axis=0)

    def build_in_specs(single_buffer_weights):
        def weight_spec(a):
            nd = a.ndim
            kwargs = {}
            if single_buffer_weights:
                # Grid-invariant: single-buffer to halve weight VMEM footprint.
                kwargs["pipeline_mode"] = pl.Buffered(1)
            return pl.BlockSpec(a.shape, lambda i, _nd=nd: (0,) * _nd, **kwargs)

        return ([pl.BlockSpec((Bb, L, D), lambda i: (i, 0, 0))]
                + [weight_spec(a) for a in plist])

    def run(single_buffer_weights):
        grid_spec = pltpu.PrefetchScalarGridSpec(
            num_scalar_prefetch=0,
            grid=(num_chunks,),
            in_specs=build_in_specs(single_buffer_weights),
            out_specs=pl.BlockSpec((1, Bb, D), lambda i: (i, 0, 0)),
        )
        return pl.pallas_call(
            functools.partial(transformer_kernel, n_ffn_tiles),
            out_shape=jax.ShapeDtypeStruct((num_chunks, Bb, D), jnp.float32),
            grid_spec=grid_spec,
            compiler_params=pltpu.CompilerParams(
                dimension_semantics=("parallel",),
                vmem_limit_bytes=int(vmem_limit)),
        )(x, *plist)

    try:
        out = run(True)
    except Exception:
        # Fallback if pipeline_mode=pl.Buffered(1) is rejected by this build.
        out = run(False)
    return out.reshape(B_pad, D)[:B]


def reference_forward(x, p):
    """Pure-JAX f32 mirror of the torch forward (for validation)."""
    B, L, D = x.shape
    dh = D // HEADS

    def lin(t, w, b):
        return t @ w + b

    def ln(t, g, bb, eps=LN_EPS):
        mu = t.mean(-1, keepdims=True)
        var = ((t - mu) ** 2).mean(-1, keepdims=True)
        return (t - mu) / jnp.sqrt(var + eps) * g + bb

    Q = jnp.transpose(lin(x, p["wq"], p["bq"]).reshape(B, L, HEADS, dh), (0, 2, 3, 1))
    K = jnp.transpose(lin(x, p["wk"], p["bk"]).reshape(B, L, HEADS, dh), (0, 2, 3, 1))
    V = jnp.transpose(lin(x, p["wv"], p["bv"]).reshape(B, L, HEADS, dh), (0, 2, 3, 1))
    scores = jnp.einsum('bhdl,bhel->bhde', Q, K) / math.sqrt(dh)
    probs = jax.nn.softmax(scores, axis=-1)
    attn = jnp.einsum('bhde,bhel->bhdl', probs, V)
    attn = jnp.transpose(attn, (0, 1, 3, 2))     # .transpose(-2, -1)
    attn = jnp.transpose(attn, (0, 2, 1, 3))     # .transpose(1, 2)
    attn = attn.reshape(B, L, D)
    h1 = ln(lin(attn, p["wso"], p["bso"]) + x, p["gso"], p["eso"])
    h2 = jax.nn.gelu(lin(h1, p["wi"], p["bi"]), approximate=False)
    h3 = ln(lin(h2, p["wo"], p["bo"]) + x, p["go"], p["eo"])
    pooled = h3.mean(axis=1)
    return jnp.tanh(lin(pooled, p["wfc"], p["bfc"]))


if __name__ == "__main__":
    # Small shapes consistent with the module: max_len=8, hidden=32, heads=8.
    # B=4 exercises the multi-chunk (4-step) pipelined grid.
    B, L, D = 4, 8, 32
    key = jax.random.PRNGKey(0)
    keys = jax.random.split(key, 15)

    def rnd(k, shape, s=0.05):
        return jax.random.normal(k, shape, dtype=jnp.float32) * s

    params = {
        "wq": rnd(keys[0], (D, D)),   "bq": rnd(keys[1], (1, D), 0.01),
        "wk": rnd(keys[2], (D, D)),   "bk": rnd(keys[3], (1, D), 0.01),
        "wv": rnd(keys[4], (D, D)),   "bv": rnd(keys[5], (1, D), 0.01),
        "wso": rnd(keys[6], (D, D)),  "bso": rnd(keys[7], (1, D), 0.01),
        "gso": jnp.ones((1, D), jnp.float32),
        "eso": jnp.zeros((1, D), jnp.float32),
        "wi": rnd(keys[8], (D, 4 * D)),   "bi": rnd(keys[9], (1, 4 * D), 0.01),
        "wo": rnd(keys[10], (4 * D, D)),  "bo": rnd(keys[11], (1, D), 0.01),
        "go": jnp.ones((1, D), jnp.float32),
        "eo": jnp.zeros((1, D), jnp.float32),
        "wfc": rnd(keys[12], (D, D)), "bfc": rnd(keys[13], (1, D), 0.01),
    }
    x = jax.random.normal(keys[14], (B, L, D), dtype=jnp.float32)

    ref = reference_forward(x, params)

    # Structural correctness check with f32 matmuls (tight tolerance).
    out_f32 = jax.block_until_ready(
        my_transformer1_forward(x, params, matmul_dtype=jnp.float32))
    assert out_f32.shape == (B, D)
    assert jnp.allclose(out_f32, ref, rtol=1e-3, atol=1e-3), (out_f32, ref)

    # Default bf16-MXU path; looser tolerance covers bf16 operand rounding.
    out = jax.block_until_ready(my_transformer1_forward(x, params))
    assert out.shape == (B, D)
    assert jnp.allclose(out, ref, rtol=2e-2, atol=2e-2), (out, ref)

    print("KERNEL_OK")
</pallas_src>

<mosaic_0001>
module attributes {stable_mosaic.version = 11 : i64} {
  func.func @transformer_kernel(%arg0: i32, %arg1: memref<1x8x32xf32, #tpu.memory_space<vmem>>, %arg2: memref<32x96xf32, #tpu.memory_space<vmem>>, %arg3: memref<1x96xf32, #tpu.memory_space<vmem>>, %arg4: memref<32x32xf32, #tpu.memory_space<vmem>>, %arg5: memref<32x32xf32, #tpu.memory_space<vmem>>, %arg6: memref<1x32xf32, #tpu.memory_space<vmem>>, %arg7: memref<1x32xf32, #tpu.memory_space<vmem>>, %arg8: memref<1x32xf32, #tpu.memory_space<vmem>>, %arg9: memref<32x128xf32, #tpu.memory_space<vmem>>, %arg10: memref<1x128xf32, #tpu.memory_space<vmem>>, %arg11: memref<128x32xf32, #tpu.memory_space<vmem>>, %arg12: memref<1x32xf32, #tpu.memory_space<vmem>>, %arg13: memref<1x32xf32, #tpu.memory_space<vmem>>, %arg14: memref<1x32xf32, #tpu.memory_space<vmem>>, %arg15: memref<32x32xf32, #tpu.memory_space<vmem>>, %arg16: memref<1x32xf32, #tpu.memory_space<vmem>>, %arg17: memref<1x1x32xf32, #tpu.memory_space<vmem>>) attributes {dimension_semantics = [#tpu.dimension_semantics<parallel>], iteration_bounds = array<i64: 4>, scalar_prefetch = 0 : i64, scratch_operands = 0 : i64, tpu.core_type = #tpu.core_type<tc>, window_params = [{transform_indices = @transform_0, window_bounds = array<i64: 1, 8, 32>}, {pipeline_mode = #tpu.pipeline_mode<synchronous>, transform_indices = @transform_1, window_bounds = array<i64: 32, 96>}, {pipeline_mode = #tpu.pipeline_mode<synchronous>, transform_indices = @transform_2, window_bounds = array<i64: 1, 96>}, {pipeline_mode = #tpu.pipeline_mode<synchronous>, transform_indices = @transform_3, window_bounds = array<i64: 32, 32>}, {pipeline_mode = #tpu.pipeline_mode<synchronous>, transform_indices = @transform_4, window_bounds = array<i64: 32, 32>}, {pipeline_mode = #tpu.pipeline_mode<synchronous>, transform_indices = @transform_5, window_bounds = array<i64: 1, 32>}, {pipeline_mode = #tpu.pipeline_mode<synchronous>, transform_indices = @transform_6, window_bounds = array<i64: 1, 32>}, {pipeline_mode = #tpu.pipeline_mode<synchronous>, transform_indices = @transform_7, window_bounds = array<i64: 1, 32>}, {pipeline_mode = #tpu.pipeline_mode<synchronous>, transform_indices = @transform_8, window_bounds = array<i64: 32, 128>}, {pipeline_mode = #tpu.pipeline_mode<synchronous>, transform_indices = @transform_9, window_bounds = array<i64: 1, 128>}, {pipeline_mode = #tpu.pipeline_mode<synchronous>, transform_indices = @transform_10, window_bounds = array<i64: 128, 32>}, {pipeline_mode = #tpu.pipeline_mode<synchronous>, transform_indices = @transform_11, window_bounds = array<i64: 1, 32>}, {pipeline_mode = #tpu.pipeline_mode<synchronous>, transform_indices = @transform_12, window_bounds = array<i64: 1, 32>}, {pipeline_mode = #tpu.pipeline_mode<synchronous>, transform_indices = @transform_13, window_bounds = array<i64: 1, 32>}, {pipeline_mode = #tpu.pipeline_mode<synchronous>, transform_indices = @transform_14, window_bounds = array<i64: 32, 32>}, {pipeline_mode = #tpu.pipeline_mode<synchronous>, transform_indices = @transform_15, window_bounds = array<i64: 1, 32>}, {transform_indices = @transform_16, window_bounds = array<i64: 1, 1, 32>}]} {
    %c0 = arith.constant 0 : index
    %c0_0 = arith.constant 0 : index
    %c0_1 = arith.constant 0 : index
    %0 = vector.load %arg1[%c0, %c0_0, %c0_1] : memref<1x8x32xf32, #tpu.memory_space<vmem>>, vector<1x8x32xf32>
    %1 = vector.shape_cast %0 : vector<1x8x32xf32> to vector<8x32xf32>
    %c0_2 = arith.constant 0 : index
    %c0_3 = arith.constant 0 : index
    %2 = vector.load %arg2[%c0_2, %c0_3] : memref<32x96xf32, #tpu.memory_space<vmem>>, vector<32x96xf32>
    %cst = arith.constant dense<0.000000e+00> : vector<8x96xf32>
    %3 = tpu.matmul %1, %2, %cst {dimension_numbers = #tpu.dot_dimension_numbers<[1], [0], [0], [1], [0, 0, 1, 1], [], []>} : vector<8x32xf32>, vector<32x96xf32>, vector<8x96xf32> -> vector<8x96xf32>
    %c0_4 = arith.constant 0 : index
    %c0_5 = arith.constant 0 : index
    %4 = vector.load %arg3[%c0_4, %c0_5] : memref<1x96xf32, #tpu.memory_space<vmem>>, vector<1x96xf32>
    %5 = vector.broadcast %4 : vector<1x96xf32> to vector<8x96xf32>
    %6 = arith.addf %3, %5 : vector<8x96xf32>
    %7 = vector.shape_cast %6 : vector<8x96xf32> to vector<1x8x96xf32>
    %8 = vector.extract_strided_slice %7 {offsets = [0, 0, 0], sizes = [1, 8, 32], strides = [1, 1, 1]} : vector<1x8x96xf32> to vector<1x8x32xf32>
    %9 = vector.extract_strided_slice %7 {offsets = [0, 0, 32], sizes = [1, 8, 32], strides = [1, 1, 1]} : vector<1x8x96xf32> to vector<1x8x32xf32>
    %10 = vector.extract_strided_slice %7 {offsets = [0, 0, 64], sizes = [1, 8, 32], strides = [1, 1, 1]} : vector<1x8x96xf32> to vector<1x8x32xf32>
    "tpu.trace_start"() <{level = 10 : i32, message = "bld,ble->bde"}> : () -> ()
    %cst_6 = arith.constant dense<0.000000e+00> : vector<1x32x32xf32>
    %11 = tpu.matmul %8, %9, %cst_6 {dimension_numbers = #tpu.dot_dimension_numbers<[1], [1], [2], [2], [0, 0, 0, 2, 1, 2], [0], [0]>} : vector<1x8x32xf32>, vector<1x8x32xf32>, vector<1x32x32xf32> -> vector<1x32x32xf32>
    "tpu.trace_stop"() : () -> ()
    %c0_7 = arith.constant 0 : index
    %c0_8 = arith.constant 0 : index
    %12 = vector.load %arg4[%c0_7, %c0_8] : memref<32x32xf32, #tpu.memory_space<vmem>>, vector<32x32xf32>
    %13 = vector.shape_cast %12 : vector<32x32xf32> to vector<1x32x32xf32>
    %14 = arith.addf %11, %13 : vector<1x32x32xf32>
    %cst_9 = arith.constant dense<0xFF800000> : vector<1x32xf32>
    %15 = vector.multi_reduction <maximumf>, %14, %cst_9 [2] : vector<1x32x32xf32> to vector<1x32xf32>
    %16 = vector.shape_cast %15 : vector<1x32xf32> to vector<1x32x1xf32>
    %17 = vector.broadcast %16 : vector<1x32x1xf32> to vector<1x32x32xf32>
    %18 = arith.subf %14, %17 : vector<1x32x32xf32>
    %19 = math.exp %18 : vector<1x32x32xf32>
    %cst_10 = arith.constant dense<0.000000e+00> : vector<1x32xf32>
    %20 = vector.multi_reduction <add>, %19, %cst_10 [2] : vector<1x32x32xf32> to vector<1x32xf32>
    %21 = vector.shape_cast %20 : vector<1x32xf32> to vector<1x32x1xf32>
    %22 = tpu.reciprocal %21 {approx = true} : vector<1x32x1xf32> -> vector<1x32x1xf32>
    %23 = vector.broadcast %22 : vector<1x32x1xf32> to vector<1x32x32xf32>
    %24 = arith.mulf %19, %23 : vector<1x32x32xf32>
    "tpu.trace_start"() <{level = 10 : i32, message = "ble,bde->bld"}> : () -> ()
    %cst_11 = arith.constant dense<0.000000e+00> : vector<1x8x32xf32>
    %25 = tpu.matmul %10, %24, %cst_11 {dimension_numbers = #tpu.dot_dimension_numbers<[2], [2], [1], [1], [0, 0, 0, 1, 1, 1], [0], [0]>} : vector<1x8x32xf32>, vector<1x32x32xf32>, vector<1x8x32xf32> -> vector<1x8x32xf32>
    "tpu.trace_stop"() : () -> ()
    %26 = vector.shape_cast %25 : vector<1x8x32xf32> to vector<8x32xf32>
    %c0_12 = arith.constant 0 : index
    %c0_13 = arith.constant 0 : index
    %27 = vector.load %arg5[%c0_12, %c0_13] : memref<32x32xf32, #tpu.memory_space<vmem>>, vector<32x32xf32>
    %cst_14 = arith.constant dense<0.000000e+00> : vector<8x32xf32>
    %28 = tpu.matmul %26, %27, %cst_14 {dimension_numbers = #tpu.dot_dimension_numbers<[1], [0], [0], [1], [0, 0, 1, 1], [], []>} : vector<8x32xf32>, vector<32x32xf32>, vector<8x32xf32> -> vector<8x32xf32>
    %c0_15 = arith.constant 0 : index
    %c0_16 = arith.constant 0 : index
    %29 = vector.load %arg6[%c0_15, %c0_16] : memref<1x32xf32, #tpu.memory_space<vmem>>, vector<1x32xf32>
    %30 = vector.broadcast %29 : vector<1x32xf32> to vector<8x32xf32>
    %31 = arith.addf %28, %30 : vector<8x32xf32>
    %32 = arith.addf %31, %1 : vector<8x32xf32>
    %c0_17 = arith.constant 0 : index
    %c0_18 = arith.constant 0 : index
    %33 = vector.load %arg7[%c0_17, %c0_18] : memref<1x32xf32, #tpu.memory_space<vmem>>, vector<1x32xf32>
    %c0_19 = arith.constant 0 : index
    %c0_20 = arith.constant 0 : index
    %34 = vector.load %arg8[%c0_19, %c0_20] : memref<1x32xf32, #tpu.memory_space<vmem>>, vector<1x32xf32>
    %cst_21 = arith.constant dense<0.000000e+00> : vector<8xf32>
    %35 = vector.multi_reduction <add>, %32, %cst_21 [1] : vector<8x32xf32> to vector<8xf32>
    %36 = vector.shape_cast %35 : vector<8xf32> to vector<8x1xf32>
    %cst_22 = arith.constant 3.200000e+01 : f32
    %37 = vector.broadcast %cst_22 : f32 to vector<8x1xf32>
    %38 = arith.divf %36, %37 : vector<8x1xf32>
    %39 = vector.broadcast %38 : vector<8x1xf32> to vector<8x32xf32>
    %40 = arith.subf %32, %39 : vector<8x32xf32>
    %41 = arith.mulf %40, %40 : vector<8x32xf32>
    %cst_23 = arith.constant dense<0.000000e+00> : vector<8xf32>
    %42 = vector.multi_reduction <add>, %41, %cst_23 [1] : vector<8x32xf32> to vector<8xf32>
    %43 = vector.shape_cast %42 : vector<8xf32> to vector<8x1xf32>
    %cst_24 = arith.constant 3.200000e+01 : f32
    %44 = vector.broadcast %cst_24 : f32 to vector<8x1xf32>
    %45 = arith.divf %43, %44 : vector<8x1xf32>
    %46 = vector.broadcast %38 : vector<8x1xf32> to vector<8x32xf32>
    %47 = arith.subf %32, %46 : vector<8x32xf32>
    %cst_25 = arith.constant 9.99999993E-9 : f32
    %48 = vector.broadcast %cst_25 : f32 to vector<8x1xf32>
    %49 = arith.addf %45, %48 : vector<8x1xf32>
    %50 = math.rsqrt %49 : vector<8x1xf32>
    %51 = vector.broadcast %50 : vector<8x1xf32> to vector<8x32xf32>
    %52 = arith.mulf %47, %51 : vector<8x32xf32>
    %53 = vector.broadcast %33 : vector<1x32xf32> to vector<8x32xf32>
    %54 = arith.mulf %52, %53 : vector<8x32xf32>
    %55 = vector.broadcast %34 : vector<1x32xf32> to vector<8x32xf32>
    %56 = arith.addf %54, %55 : vector<8x32xf32>
    %cst_26 = arith.constant 0.000000e+00 : f32
    %57 = vector.broadcast %cst_26 : f32 to vector<8x32xf32>
    %c0_27 = arith.constant 0 : index
    %c0_28 = arith.constant 0 : index
    %58 = vector.load %arg9[%c0_27, %c0_28] : memref<32x128xf32, #tpu.memory_space<vmem>>, vector<32x128xf32>
    %cst_29 = arith.constant dense<0.000000e+00> : vector<8x128xf32>
    %59 = tpu.matmul %56, %58, %cst_29 {dimension_numbers = #tpu.dot_dimension_numbers<[1], [0], [0], [1], [0, 0, 1, 1], [], []>} : vector<8x32xf32>, vector<32x128xf32>, vector<8x128xf32> -> vector<8x128xf32>
    %c0_30 = arith.constant 0 : index
    %c0_31 = arith.constant 0 : index
    %60 = vector.load %arg10[%c0_30, %c0_31] : memref<1x128xf32, #tpu.memory_space<vmem>>, vector<1x128xf32>
    %61 = vector.broadcast %60 : vector<1x128xf32> to vector<8x128xf32>
    %62 = arith.addf %59, %61 : vector<8x128xf32>
    %cst_32 = arith.constant 5.000000e-01 : f32
    %63 = vector.broadcast %cst_32 : f32 to vector<8x128xf32>
    %64 = arith.mulf %63, %62 : vector<8x128xf32>
    %cst_33 = arith.constant 0.707106769 : f32
    %65 = vector.broadcast %cst_33 : f32 to vector<8x128xf32>
    %66 = arith.mulf %62, %65 : vector<8x128xf32>
    %67 = math.erf %66 : vector<8x128xf32>
    %cst_34 = arith.constant 1.000000e+00 : f32
    %68 = vector.broadcast %cst_34 : f32 to vector<8x128xf32>
    %69 = arith.addf %68, %67 : vector<8x128xf32>
    %70 = arith.mulf %64, %69 : vector<8x128xf32>
    %c0_35 = arith.constant 0 : index
    %c0_36 = arith.constant 0 : index
    %71 = vector.load %arg11[%c0_35, %c0_36] : memref<128x32xf32, #tpu.memory_space<vmem>>, vector<128x32xf32>
    %cst_37 = arith.constant dense<0.000000e+00> : vector<8x32xf32>
    %72 = tpu.matmul %70, %71, %cst_37 {dimension_numbers = #tpu.dot_dimension_numbers<[1], [0], [0], [1], [0, 0, 1, 1], [], []>} : vector<8x128xf32>, vector<128x32xf32>, vector<8x32xf32> -> vector<8x32xf32>
    %73 = arith.addf %57, %72 : vector<8x32xf32>
    %c0_38 = arith.constant 0 : index
    %c0_39 = arith.constant 0 : index
    %74 = vector.load %arg12[%c0_38, %c0_39] : memref<1x32xf32, #tpu.memory_space<vmem>>, vector<1x32xf32>
    %75 = vector.broadcast %74 : vector<1x32xf32> to vector<8x32xf32>
    %76 = arith.addf %73, %75 : vector<8x32xf32>
    %77 = arith.addf %76, %1 : vector<8x32xf32>
    %c0_40 = arith.constant 0 : index
    %c0_41 = arith.constant 0 : index
    %78 = vector.load %arg13[%c0_40, %c0_41] : memref<1x32xf32, #tpu.memory_space<vmem>>, vector<1x32xf32>
    %c0_42 = arith.constant 0 : index
    %c0_43 = arith.constant 0 : index
    %79 = vector.load %arg14[%c0_42, %c0_43] : memref<1x32xf32, #tpu.memory_space<vmem>>, vector<1x32xf32>
    %cst_44 = arith.constant dense<0.000000e+00> : vector<8xf32>
    %80 = vector.multi_reduction <add>, %77, %cst_44 [1] : vector<8x32xf32> to vector<8xf32>
    %81 = vector.shape_cast %80 : vector<8xf32> to vector<8x1xf32>
    %cst_45 = arith.constant 3.200000e+01 : f32
    %82 = vector.broadcast %cst_45 : f32 to vector<8x1xf32>
    %83 = arith.divf %81, %82 : vector<8x1xf32>
    %84 = vector.broadcast %83 : vector<8x1xf32> to vector<8x32xf32>
    %85 = arith.subf %77, %84 : vector<8x32xf32>
    %86 = arith.mulf %85, %85 : vector<8x32xf32>
    %cst_46 = arith.constant dense<0.000000e+00> : vector<8xf32>
    %87 = vector.multi_reduction <add>, %86, %cst_46 [1] : vector<8x32xf32> to vector<8xf32>
    %88 = vector.shape_cast %87 : vector<8xf32> to vector<8x1xf32>
    %cst_47 = arith.constant 3.200000e+01 : f32
    %89 = vector.broadcast %cst_47 : f32 to vector<8x1xf32>
    %90 = arith.divf %88, %89 : vector<8x1xf32>
    %91 = vector.broadcast %83 : vector<8x1xf32> to vector<8x32xf32>
    %92 = arith.subf %77, %91 : vector<8x32xf32>
    %cst_48 = arith.constant 9.99999993E-9 : f32
    %93 = vector.broadcast %cst_48 : f32 to vector<8x1xf32>
    %94 = arith.addf %90, %93 : vector<8x1xf32>
    %95 = math.rsqrt %94 : vector<8x1xf32>
    %96 = vector.broadcast %95 : vector<8x1xf32> to vector<8x32xf32>
    %97 = arith.mulf %92, %96 : vector<8x32xf32>
    %98 = vector.broadcast %78 : vector<1x32xf32> to vector<8x32xf32>
    %99 = arith.mulf %97, %98 : vector<8x32xf32>
    %100 = vector.broadcast %79 : vector<1x32xf32> to vector<8x32xf32>
    %101 = arith.addf %99, %100 : vector<8x32xf32>
    %102 = vector.shape_cast %101 : vector<8x32xf32> to vector<1x8x32xf32>
    %cst_49 = arith.constant dense<0.000000e+00> : vector<1x32xf32>
    %103 = vector.multi_reduction <add>, %102, %cst_49 [1] : vector<1x8x32xf32> to vector<1x32xf32>
    %cst_50 = arith.constant 8.000000e+00 : f32
    %104 = vector.broadcast %cst_50 : f32 to vector<1x32xf32>
    %105 = arith.divf %103, %104 : vector<1x32xf32>
    %c0_51 = arith.constant 0 : index
    %c0_52 = arith.constant 0 : index
    %106 = vector.load %arg15[%c0_51, %c0_52] : memref<32x32xf32, #tpu.memory_space<vmem>>, vector<32x32xf32>
    %cst_53 = arith.constant dense<0.000000e+00> : vector<1x32xf32>
    %107 = tpu.matmul %105, %106, %cst_53 {dimension_numbers = #tpu.dot_dimension_numbers<[1], [0], [0], [1], [0, 0, 1, 1], [], []>} : vector<1x32xf32>, vector<32x32xf32>, vector<1x32xf32> -> vector<1x32xf32>
    %c0_54 = arith.constant 0 : index
    %c0_55 = arith.constant 0 : index
    %108 = vector.load %arg16[%c0_54, %c0_55] : memref<1x32xf32, #tpu.memory_space<vmem>>, vector<1x32xf32>
    %109 = arith.addf %107, %108 : vector<1x32xf32>
    %110 = math.tanh %109 : vector<1x32xf32>
    %c0_56 = arith.constant 0 : index
    %c0_57 = arith.constant 0 : index
    %c0_58 = arith.constant 0 : index
    %111 = vector.load %arg17[%c0_56, %c0_57, %c0_58] : memref<1x1x32xf32, #tpu.memory_space<vmem>>, vector<1x1x32xf32>
    %112 = vector.shape_cast %111 : vector<1x1x32xf32> to vector<1x32xf32>
    %113 = vector.shape_cast %110 : vector<1x32xf32> to vector<1x1x32xf32>
    tpu.vector_store %arg17[%c0_56, %c0_57, %c0_58], %113 {strides = array<i32>} : memref<1x1x32xf32, #tpu.memory_space<vmem>>, vector<1x1x32xf32>,
    return
  }
  func.func @transform_0(%arg0: i32) -> (i32, i32, i32) {
    %c0_i32 = arith.constant 0 : i32
    %c0_i32_0 = arith.constant 0 : i32
    %c0_i32_1 = arith.constant 0 : i32
    return %arg0, %c0_i32, %c0_i32_0 : i32, i32, i32
  }
  func.func @transform_1(%arg0: i32) -> (i32, i32) {
    %c0_i32 = arith.constant 0 : i32
    %c0_i32_0 = arith.constant 0 : i32
    %c0_i32_1 = arith.constant 0 : i32
    return %c0_i32, %c0_i32_0 : i32, i32
  }
  func.func @transform_2(%arg0: i32) -> (i32, i32) {
    %c0_i32 = arith.constant 0 : i32
    %c0_i32_0 = arith.constant 0 : i32
    %c0_i32_1 = arith.constant 0 : i32
    return %c0_i32, %c0_i32_0 : i32, i32
  }
  func.func @transform_3(%arg0: i32) -> (i32, i32) {
    %c0_i32 = arith.constant 0 : i32
    %c0_i32_0 = arith.constant 0 : i32
    %c0_i32_1 = arith.constant 0 : i32
    return %c0_i32, %c0_i32_0 : i32, i32
  }
  func.func @transform_4(%arg0: i32) -> (i32, i32) {
    %c0_i32 = arith.constant 0 : i32
    %c0_i32_0 = arith.constant 0 : i32
    %c0_i32_1 = arith.constant 0 : i32
    return %c0_i32, %c0_i32_0 : i32, i32
  }
  func.func @transform_5(%arg0: i32) -> (i32, i32) {
    %c0_i32 = arith.constant 0 : i32
    %c0_i32_0 = arith.constant 0 : i32
    %c0_i32_1 = arith.constant 0 : i32
    return %c0_i32, %c0_i32_0 : i32, i32
  }
  func.func @transform_6(%arg0: i32) -> (i32, i32) {
    %c0_i32 = arith.constant 0 : i32
    %c0_i32_0 = arith.constant 0 : i32
    %c0_i32_1 = arith.constant 0 : i32
    return %c0_i32, %c0_i32_0 : i32, i32
  }
  func.func @transform_7(%arg0: i32) -> (i32, i32) {
    %c0_i32 = arith.constant 0 : i32
    %c0_i32_0 = arith.constant 0 : i32
    %c0_i32_1 = arith.constant 0 : i32
    return %c0_i32, %c0_i32_0 : i32, i32
  }
  func.func @transform_8(%arg0: i32) -> (i32, i32) {
    %c0_i32 = arith.constant 0 : i32
    %c0_i32_0 = arith.constant 0 : i32
    %c0_i32_1 = arith.constant 0 : i32
    return %c0_i32, %c0_i32_0 : i32, i32
  }
  func.func @transform_9(%arg0: i32) -> (i32, i32) {
    %c0_i32 = arith.constant 0 : i32
    %c0_i32_0 = arith.constant 0 : i32
    %c0_i32_1 = arith.constant 0 : i32
    return %c0_i32, %c0_i32_0 : i32, i32
  }
  func.func @transform_10(%arg0: i32) -> (i32, i32) {
    %c0_i32 = arith.constant 0 : i32
    %c0_i32_0 = arith.constant 0 : i32
    %c0_i32_1 = arith.constant 0 : i32
    return %c0_i32, %c0_i32_0 : i32, i32
  }
  func.func @transform_11(%arg0: i32) -> (i32, i32) {
    %c0_i32 = arith.constant 0 : i32
    %c0_i32_0 = arith.constant 0 : i32
    %c0_i32_1 = arith.constant 0 : i32
    return %c0_i32, %c0_i32_0 : i32, i32
  }
  func.func @transform_12(%arg0: i32) -> (i32, i32) {
    %c0_i32 = arith.constant 0 : i32
    %c0_i32_0 = arith.constant 0 : i32
    %c0_i32_1 = arith.constant 0 : i32
    return %c0_i32, %c0_i32_0 : i32, i32
  }
  func.func @transform_13(%arg0: i32) -> (i32, i32) {
    %c0_i32 = arith.constant 0 : i32
    %c0_i32_0 = arith.constant 0 : i32
    %c0_i32_1 = arith.constant 0 : i32
    return %c0_i32, %c0_i32_0 : i32, i32
  }
  func.func @transform_14(%arg0: i32) -> (i32, i32) {
    %c0_i32 = arith.constant 0 : i32
    %c0_i32_0 = arith.constant 0 : i32
    %c0_i32_1 = arith.constant 0 : i32
    return %c0_i32, %c0_i32_0 : i32, i32
  }
  func.func @transform_15(%arg0: i32) -> (i32, i32) {
    %c0_i32 = arith.constant 0 : i32
    %c0_i32_0 = arith.constant 0 : i32
    %c0_i32_1 = arith.constant 0 : i32
    return %c0_i32, %c0_i32_0 : i32, i32
  }
  func.func @transform_16(%arg0: i32) -> (i32, i32, i32) {
    %c0_i32 = arith.constant 0 : i32
    %c0_i32_0 = arith.constant 0 : i32
    %c0_i32_1 = arith.constant 0 : i32
    return %arg0, %c0_i32, %c0_i32_0 : i32, i32, i32
  }
}

module attributes {stable_mosaic.version = 11 : i64} {
  func.func @transformer_kernel(%arg0: i32, %arg1: memref<1x8x32xf32, #tpu.memory_space<vmem>>, %arg2: memref<32x96xf32, #tpu.memory_space<vmem>>, %arg3: memref<1x96xf32, #tpu.memory_space<vmem>>, %arg4: memref<32x32xf32, #tpu.memory_space<vmem>>, %arg5: memref<32x32xf32, #tpu.memory_space<vmem>>, %arg6: memref<1x32xf32, #tpu.memory_space<vmem>>, %arg7: memref<1x32xf32, #tpu.memory_space<vmem>>, %arg8: memref<1x32xf32, #tpu.memory_space<vmem>>, %arg9: memref<32x128xf32, #tpu.memory_space<vmem>>, %arg10: memref<1x128xf32, #tpu.memory_space<vmem>>, %arg11: memref<128x32xf32, #tpu.memory_space<vmem>>, %arg12: memref<1x32xf32, #tpu.memory_space<vmem>>, %arg13: memref<1x32xf32, #tpu.memory_space<vmem>>, %arg14: memref<1x32xf32, #tpu.memory_space<vmem>>, %arg15: memref<32x32xf32, #tpu.memory_space<vmem>>, %arg16: memref<1x32xf32, #tpu.memory_space<vmem>>, %arg17: memref<1x1x32xf32, #tpu.memory_space<vmem>>) attributes {dimension_semantics = [#tpu.dimension_semantics<parallel>], iteration_bounds = array<i64: 4>, scalar_prefetch = 0 : i64, scratch_operands = 0 : i64, tpu.core_type = #tpu.core_type<tc>, window_params = [{transform_indices = @transform_0, window_bounds = array<i64: 1, 8, 32>}, {pipeline_mode = #tpu.pipeline_mode<synchronous>, transform_indices = @transform_1, window_bounds = array<i64: 32, 96>}, {pipeline_mode = #tpu.pipeline_mode<synchronous>, transform_indices = @transform_2, window_bounds = array<i64: 1, 96>}, {pipeline_mode = #tpu.pipeline_mode<synchronous>, transform_indices = @transform_3, window_bounds = array<i64: 32, 32>}, {pipeline_mode = #tpu.pipeline_mode<synchronous>, transform_indices = @transform_4, window_bounds = array<i64: 32, 32>}, {pipeline_mode = #tpu.pipeline_mode<synchronous>, transform_indices = @transform_5, window_bounds = array<i64: 1, 32>}, {pipeline_mode = #tpu.pipeline_mode<synchronous>, transform_indices = @transform_6, window_bounds = array<i64: 1, 32>}, {pipeline_mode = #tpu.pipeline_mode<synchronous>, transform_indices = @transform_7, window_bounds = array<i64: 1, 32>}, {pipeline_mode = #tpu.pipeline_mode<synchronous>, transform_indices = @transform_8, window_bounds = array<i64: 32, 128>}, {pipeline_mode = #tpu.pipeline_mode<synchronous>, transform_indices = @transform_9, window_bounds = array<i64: 1, 128>}, {pipeline_mode = #tpu.pipeline_mode<synchronous>, transform_indices = @transform_10, window_bounds = array<i64: 128, 32>}, {pipeline_mode = #tpu.pipeline_mode<synchronous>, transform_indices = @transform_11, window_bounds = array<i64: 1, 32>}, {pipeline_mode = #tpu.pipeline_mode<synchronous>, transform_indices = @transform_12, window_bounds = array<i64: 1, 32>}, {pipeline_mode = #tpu.pipeline_mode<synchronous>, transform_indices = @transform_13, window_bounds = array<i64: 1, 32>}, {pipeline_mode = #tpu.pipeline_mode<synchronous>, transform_indices = @transform_14, window_bounds = array<i64: 32, 32>}, {pipeline_mode = #tpu.pipeline_mode<synchronous>, transform_indices = @transform_15, window_bounds = array<i64: 1, 32>}, {transform_indices = @transform_16, window_bounds = array<i64: 1, 1, 32>}]} {
    %c0 = arith.constant 0 : index
    %c0_0 = arith.constant 0 : index
    %c0_1 = arith.constant 0 : index
    %0 = vector.load %arg1[%c0, %c0_0, %c0_1] : memref<1x8x32xf32, #tpu.memory_space<vmem>>, vector<1x8x32xf32>
    %1 = vector.shape_cast %0 : vector<1x8x32xf32> to vector<8x32xf32>
    %c0_2 = arith.constant 0 : index
    %c0_3 = arith.constant 0 : index
    %2 = vector.load %arg2[%c0_2, %c0_3] : memref<32x96xf32, #tpu.memory_space<vmem>>, vector<32x96xf32>
    %cst = arith.constant dense<0.000000e+00> : vector<8x96xf32>
    %3 = tpu.matmul %1, %2, %cst {dimension_numbers = #tpu.dot_dimension_numbers<[1], [0], [0], [1], [0, 0, 1, 1], [], []>} : vector<8x32xf32>, vector<32x96xf32>, vector<8x96xf32> -> vector<8x96xf32>
    %c0_4 = arith.constant 0 : index
    %c0_5 = arith.constant 0 : index
    %4 = vector.load %arg3[%c0_4, %c0_5] : memref<1x96xf32, #tpu.memory_space<vmem>>, vector<1x96xf32>
    %5 = vector.broadcast %4 : vector<1x96xf32> to vector<8x96xf32>
    %6 = arith.addf %3, %5 : vector<8x96xf32>
    %7 = vector.shape_cast %6 : vector<8x96xf32> to vector<1x8x96xf32>
    %8 = vector.extract_strided_slice %7 {offsets = [0, 0, 0], sizes = [1, 8, 32], strides = [1, 1, 1]} : vector<1x8x96xf32> to vector<1x8x32xf32>
    %9 = vector.extract_strided_slice %7 {offsets = [0, 0, 32], sizes = [1, 8, 32], strides = [1, 1, 1]} : vector<1x8x96xf32> to vector<1x8x32xf32>
    %10 = vector.extract_strided_slice %7 {offsets = [0, 0, 64], sizes = [1, 8, 32], strides = [1, 1, 1]} : vector<1x8x96xf32> to vector<1x8x32xf32>
    "tpu.trace_start"() <{level = 10 : i32, message = "bld,ble->bde"}> : () -> ()
    %cst_6 = arith.constant dense<0.000000e+00> : vector<1x32x32xf32>
    %11 = tpu.matmul %8, %9, %cst_6 {dimension_numbers = #tpu.dot_dimension_numbers<[1], [1], [2], [2], [0, 0, 0, 2, 1, 2], [0], [0]>} : vector<1x8x32xf32>, vector<1x8x32xf32>, vector<1x32x32xf32> -> vector<1x32x32xf32>
    "tpu.trace_stop"() : () -> ()
    %c0_7 = arith.constant 0 : index
    %c0_8 = arith.constant 0 : index
    %12 = vector.load %arg4[%c0_7, %c0_8] : memref<32x32xf32, #tpu.memory_space<vmem>>, vector<32x32xf32>
    %13 = vector.shape_cast %12 : vector<32x32xf32> to vector<1x32x32xf32>
    %14 = arith.addf %11, %13 : vector<1x32x32xf32>
    %cst_9 = arith.constant dense<0xFF800000> : vector<1x32xf32>
    %15 = vector.multi_reduction <maximumf>, %14, %cst_9 [2] : vector<1x32x32xf32> to vector<1x32xf32>
    %16 = vector.shape_cast %15 : vector<1x32xf32> to vector<1x32x1xf32>
    %17 = vector.broadcast %16 : vector<1x32x1xf32> to vector<1x32x32xf32>
    %18 = arith.subf %14, %17 : vector<1x32x32xf32>
    %19 = math.exp %18 : vector<1x32x32xf32>
    %cst_10 = arith.constant dense<0.000000e+00> : vector<1x32xf32>
    %20 = vector.multi_reduction <add>, %19, %cst_10 [2] : vector<1x32x32xf32> to vector<1x32xf32>
    %21 = vector.shape_cast %20 : vector<1x32xf32> to vector<1x32x1xf32>
    %22 = tpu.reciprocal %21 {approx = true} : vector<1x32x1xf32> -> vector<1x32x1xf32>
    %23 = vector.broadcast %22 : vector<1x32x1xf32> to vector<1x32x32xf32>
    %24 = arith.mulf %19, %23 : vector<1x32x32xf32>
    "tpu.trace_start"() <{level = 10 : i32, message = "ble,bde->bld"}> : () -> ()
    %cst_11 = arith.constant dense<0.000000e+00> : vector<1x8x32xf32>
    %25 = tpu.matmul %10, %24, %cst_11 {dimension_numbers = #tpu.dot_dimension_numbers<[2], [2], [1], [1], [0, 0, 0, 1, 1, 1], [0], [0]>} : vector<1x8x32xf32>, vector<1x32x32xf32>, vector<1x8x32xf32> -> vector<1x8x32xf32>
    "tpu.trace_stop"() : () -> ()
    %26 = vector.shape_cast %25 : vector<1x8x32xf32> to vector<8x32xf32>
    %c0_12 = arith.constant 0 : index
    %c0_13 = arith.constant 0 : index
    %27 = vector.load %arg5[%c0_12, %c0_13] : memref<32x32xf32, #tpu.memory_space<vmem>>, vector<32x32xf32>
    %cst_14 = arith.constant dense<0.000000e+00> : vector<8x32xf32>
    %28 = tpu.matmul %26, %27, %cst_14 {dimension_numbers = #tpu.dot_dimension_numbers<[1], [0], [0], [1], [0, 0, 1, 1], [], []>} : vector<8x32xf32>, vector<32x32xf32>, vector<8x32xf32> -> vector<8x32xf32>
    %c0_15 = arith.constant 0 : index
    %c0_16 = arith.constant 0 : index
    %29 = vector.load %arg6[%c0_15, %c0_16] : memref<1x32xf32, #tpu.memory_space<vmem>>, vector<1x32xf32>
    %30 = vector.broadcast %29 : vector<1x32xf32> to vector<8x32xf32>
    %31 = arith.addf %28, %30 : vector<8x32xf32>
    %32 = arith.addf %31, %1 : vector<8x32xf32>
    %c0_17 = arith.constant 0 : index
    %c0_18 = arith.constant 0 : index
    %33 = vector.load %arg7[%c0_17, %c0_18] : memref<1x32xf32, #tpu.memory_space<vmem>>, vector<1x32xf32>
    %c0_19 = arith.constant 0 : index
    %c0_20 = arith.constant 0 : index
    %34 = vector.load %arg8[%c0_19, %c0_20] : memref<1x32xf32, #tpu.memory_space<vmem>>, vector<1x32xf32>
    %cst_21 = arith.constant dense<0.000000e+00> : vector<8xf32>
    %35 = vector.multi_reduction <add>, %32, %cst_21 [1] : vector<8x32xf32> to vector<8xf32>
    %36 = vector.shape_cast %35 : vector<8xf32> to vector<8x1xf32>
    %cst_22 = arith.constant 3.200000e+01 : f32
    %37 = vector.broadcast %cst_22 : f32 to vector<8x1xf32>
    %38 = arith.divf %36, %37 : vector<8x1xf32>
    %39 = vector.broadcast %38 : vector<8x1xf32> to vector<8x32xf32>
    %40 = arith.subf %32, %39 : vector<8x32xf32>
    %41 = arith.mulf %40, %40 : vector<8x32xf32>
    %cst_23 = arith.constant dense<0.000000e+00> : vector<8xf32>
    %42 = vector.multi_reduction <add>, %41, %cst_23 [1] : vector<8x32xf32> to vector<8xf32>
    %43 = vector.shape_cast %42 : vector<8xf32> to vector<8x1xf32>
    %cst_24 = arith.constant 3.200000e+01 : f32
    %44 = vector.broadcast %cst_24 : f32 to vector<8x1xf32>
    %45 = arith.divf %43, %44 : vector<8x1xf32>
    %46 = vector.broadcast %38 : vector<8x1xf32> to vector<8x32xf32>
    %47 = arith.subf %32, %46 : vector<8x32xf32>
    %cst_25 = arith.constant 9.99999993E-9 : f32
    %48 = vector.broadcast %cst_25 : f32 to vector<8x1xf32>
    %49 = arith.addf %45, %48 : vector<8x1xf32>
    %50 = math.rsqrt %49 : vector<8x1xf32>
    %51 = vector.broadcast %50 : vector<8x1xf32> to vector<8x32xf32>
    %52 = arith.mulf %47, %51 : vector<8x32xf32>
    %53 = vector.broadcast %33 : vector<1x32xf32> to vector<8x32xf32>
    %54 = arith.mulf %52, %53 : vector<8x32xf32>
    %55 = vector.broadcast %34 : vector<1x32xf32> to vector<8x32xf32>
    %56 = arith.addf %54, %55 : vector<8x32xf32>
    %cst_26 = arith.constant 0.000000e+00 : f32
    %57 = vector.broadcast %cst_26 : f32 to vector<8x32xf32>
    %c0_27 = arith.constant 0 : index
    %c0_28 = arith.constant 0 : index
    %58 = vector.load %arg9[%c0_27, %c0_28] : memref<32x128xf32, #tpu.memory_space<vmem>>, vector<32x128xf32>
    %cst_29 = arith.constant dense<0.000000e+00> : vector<8x128xf32>
    %59 = tpu.matmul %56, %58, %cst_29 {dimension_numbers = #tpu.dot_dimension_numbers<[1], [0], [0], [1], [0, 0, 1, 1], [], []>} : vector<8x32xf32>, vector<32x128xf32>, vector<8x128xf32> -> vector<8x128xf32>
    %c0_30 = arith.constant 0 : index
    %c0_31 = arith.constant 0 : index
    %60 = vector.load %arg10[%c0_30, %c0_31] : memref<1x128xf32, #tpu.memory_space<vmem>>, vector<1x128xf32>
    %61 = vector.broadcast %60 : vector<1x128xf32> to vector<8x128xf32>
    %62 = arith.addf %59, %61 : vector<8x128xf32>
    %cst_32 = arith.constant 5.000000e-01 : f32
    %63 = vector.broadcast %cst_32 : f32 to vector<8x128xf32>
    %64 = arith.mulf %63, %62 : vector<8x128xf32>
    %cst_33 = arith.constant 0.707106769 : f32
    %65 = vector.broadcast %cst_33 : f32 to vector<8x128xf32>
    %66 = arith.mulf %62, %65 : vector<8x128xf32>
    %67 = math.erf %66 : vector<8x128xf32>
    %cst_34 = arith.constant 1.000000e+00 : f32
    %68 = vector.broadcast %cst_34 : f32 to vector<8x128xf32>
    %69 = arith.addf %68, %67 : vector<8x128xf32>
    %70 = arith.mulf %64, %69 : vector<8x128xf32>
    %c0_35 = arith.constant 0 : index
    %c0_36 = arith.constant 0 : index
    %71 = vector.load %arg11[%c0_35, %c0_36] : memref<128x32xf32, #tpu.memory_space<vmem>>, vector<128x32xf32>
    %cst_37 = arith.constant dense<0.000000e+00> : vector<8x32xf32>
    %72 = tpu.matmul %70, %71, %cst_37 {dimension_numbers = #tpu.dot_dimension_numbers<[1], [0], [0], [1], [0, 0, 1, 1], [], []>} : vector<8x128xf32>, vector<128x32xf32>, vector<8x32xf32> -> vector<8x32xf32>
    %73 = arith.addf %57, %72 : vector<8x32xf32>
    %c0_38 = arith.constant 0 : index
    %c0_39 = arith.constant 0 : index
    %74 = vector.load %arg12[%c0_38, %c0_39] : memref<1x32xf32, #tpu.memory_space<vmem>>, vector<1x32xf32>
    %75 = vector.broadcast %74 : vector<1x32xf32> to vector<8x32xf32>
    %76 = arith.addf %73, %75 : vector<8x32xf32>
    %77 = arith.addf %76, %1 : vector<8x32xf32>
    %c0_40 = arith.constant 0 : index
    %c0_41 = arith.constant 0 : index
    %78 = vector.load %arg13[%c0_40, %c0_41] : memref<1x32xf32, #tpu.memory_space<vmem>>, vector<1x32xf32>
    %c0_42 = arith.constant 0 : index
    %c0_43 = arith.constant 0 : index
    %79 = vector.load %arg14[%c0_42, %c0_43] : memref<1x32xf32, #tpu.memory_space<vmem>>, vector<1x32xf32>
    %cst_44 = arith.constant dense<0.000000e+00> : vector<8xf32>
    %80 = vector.multi_reduction <add>, %77, %cst_44 [1] : vector<8x32xf32> to vector<8xf32>
    %81 = vector.shape_cast %80 : vector<8xf32> to vector<8x1xf32>
    %cst_45 = arith.constant 3.200000e+01 : f32
    %82 = vector.broadcast %cst_45 : f32 to vector<8x1xf32>
    %83 = arith.divf %81, %82 : vector<8x1xf32>
    %84 = vector.broadcast %83 : vector<8x1xf32> to vector<8x32xf32>
    %85 = arith.subf %77, %84 : vector<8x32xf32>
    %86 = arith.mulf %85, %85 : vector<8x32xf32>
    %cst_46 = arith.constant dense<0.000000e+00> : vector<8xf32>
    %87 = vector.multi_reduction <add>, %86, %cst_46 [1] : vector<8x32xf32> to vector<8xf32>
    %88 = vector.shape_cast %87 : vector<8xf32> to vector<8x1xf32>
    %cst_47 = arith.constant 3.200000e+01 : f32
    %89 = vector.broadcast %cst_47 : f32 to vector<8x1xf32>
    %90 = arith.divf %88, %89 : vector<8x1xf32>
    %91 = vector.broadcast %83 : vector<8x1xf32> to vector<8x32xf32>
    %92 = arith.subf %77, %91 : vector<8x32xf32>
    %cst_48 = arith.constant 9.99999993E-9 : f32
    %93 = vector.broadcast %cst_48 : f32 to vector<8x1xf32>
    %94 = arith.addf %90, %93 : vector<8x1xf32>
    %95 = math.rsqrt %94 : vector<8x1xf32>
    %96 = vector.broadcast %95 : vector<8x1xf32> to vector<8x32xf32>
    %97 = arith.mulf %92, %96 : vector<8x32xf32>
    %98 = vector.broadcast %78 : vector<1x32xf32> to vector<8x32xf32>
    %99 = arith.mulf %97, %98 : vector<8x32xf32>
    %100 = vector.broadcast %79 : vector<1x32xf32> to vector<8x32xf32>
    %101 = arith.addf %99, %100 : vector<8x32xf32>
    %102 = vector.shape_cast %101 : vector<8x32xf32> to vector<1x8x32xf32>
    %cst_49 = arith.constant dense<0.000000e+00> : vector<1x32xf32>
    %103 = vector.multi_reduction <add>, %102, %cst_49 [1] : vector<1x8x32xf32> to vector<1x32xf32>
    %cst_50 = arith.constant 8.000000e+00 : f32
    %104 = vector.broadcast %cst_50 : f32 to vector<1x32xf32>
    %105 = arith.divf %103, %104 : vector<1x32xf32>
    %c0_51 = arith.constant 0 : index
    %c0_52 = arith.constant 0 : index
    %106 = vector.load %arg15[%c0_51, %c0_52] : memref<32x32xf32, #tpu.memory_space<vmem>>, vector<32x32xf32>
    %cst_53 = arith.constant dense<0.000000e+00> : vector<1x32xf32>
    %107 = tpu.matmul %105, %106, %cst_53 {dimension_numbers = #tpu.dot_dimension_numbers<[1], [0], [0], [1], [0, 0, 1, 1], [], []>} : vector<1x32xf32>, vector<32x32xf32>, vector<1x32xf32> -> vector<1x32xf32>
    %c0_54 = arith.constant 0 : index
    %c0_55 = arith.constant 0 : index
    %108 = vector.load %arg16[%c0_54, %c0_55] : memref<1x32xf32, #tpu.memory_space<vmem>>, vector<1x32xf32>
    %109 = arith.addf %107, %108 : vector<1x32xf32>
    %110 = math.tanh %109 : vector<1x32xf32>
    %c0_56 = arith.constant 0 : index
    %c0_57 = arith.constant 0 : index
    %c0_58 = arith.constant 0 : index
    %111 = vector.load %arg17[%c0_56, %c0_57, %c0_58] : memref<1x1x32xf32, #tpu.memory_space<vmem>>, vector<1x1x32xf32>
    %112 = vector.shape_cast %111 : vector<1x1x32xf32> to vector<1x32xf32>
    %113 = vector.shape_cast %110 : vector<1x32xf32> to vector<1x1x32xf32>
    tpu.vector_store %arg17[%c0_56, %c0_57, %c0_58], %113 {strides = array<i32>} : memref<1x1x32xf32, #tpu.memory_space<vmem>>, vector<1x1x32xf32>,
    return
  }
  func.func @transform_0(%arg0: i32) -> (i32, i32, i32) {
    %c0_i32 = arith.constant 0 : i32
    %c0_i32_0 = arith.constant 0 : i32
    %c0_i32_1 = arith.constant 0 : i32
    return %arg0, %c0_i32, %c0_i32_0 : i32, i32, i32
  }
  func.func @transform_1(%arg0: i32) -> (i32, i32) {
    %c0_i32 = arith.constant 0 : i32
    %c0_i32_0 = arith.constant 0 : i32
    %c0_i32_1 = arith.constant 0 : i32
    return %c0_i32, %c0_i32_0 : i32, i32
  }
  func.func @transform_2(%arg0: i32) -> (i32, i32) {
    %c0_i32 = arith.constant 0 : i32
    %c0_i32_0 = arith.constant 0 : i32
    %c0_i32_1 = arith.constant 0 : i32
    return %c0_i32, %c0_i32_0 : i32, i32
  }
  func.func @transform_3(%arg0: i32) -> (i32, i32) {
    %c0_i32 = arith.constant 0 : i32
    %c0_i32_0 = arith.constant 0 : i32
    %c0_i32_1 = arith.constant 0 : i32
    return %c0_i32, %c0_i32_0 : i32, i32
  }
  func.func @transform_4(%arg0: i32) -> (i32, i32) {
    %c0_i32 = arith.constant 0 : i32
    %c0_i32_0 = arith.constant 0 : i32
    %c0_i32_1 = arith.constant 0 : i32
    return %c0_i32, %c0_i32_0 : i32, i32
  }
  func.func @transform_5(%arg0: i32) -> (i32, i32) {
    %c0_i32 = arith.constant 0 : i32
    %c0_i32_0 = arith.constant 0 : i32
    %c0_i32_1 = arith.constant 0 : i32
    return %c0_i32, %c0_i32_0 : i32, i32
  }
  func.func @transform_6(%arg0: i32) -> (i32, i32) {
    %c0_i32 = arith.constant 0 : i32
    %c0_i32_0 = arith.constant 0 : i32
    %c0_i32_1 = arith.constant 0 : i32
    return %c0_i32, %c0_i32_0 : i32, i32
  }
  func.func @transform_7(%arg0: i32) -> (i32, i32) {
    %c0_i32 = arith.constant 0 : i32
    %c0_i32_0 = arith.constant 0 : i32
    %c0_i32_1 = arith.constant 0 : i32
    return %c0_i32, %c0_i32_0 : i32, i32
  }
  func.func @transform_8(%arg0: i32) -> (i32, i32) {
    %c0_i32 = arith.constant 0 : i32
    %c0_i32_0 = arith.constant 0 : i32
    %c0_i32_1 = arith.constant 0 : i32
    return %c0_i32, %c0_i32_0 : i32, i32
  }
  func.func @transform_9(%arg0: i32) -> (i32, i32) {
    %c0_i32 = arith.constant 0 : i32
    %c0_i32_0 = arith.constant 0 : i32
    %c0_i32_1 = arith.constant 0 : i32
    return %c0_i32, %c0_i32_0 : i32, i32
  }
  func.func @transform_10(%arg0: i32) -> (i32, i32) {
    %c0_i32 = arith.constant 0 : i32
    %c0_i32_0 = arith.constant 0 : i32
    %c0_i32_1 = arith.constant 0 : i32
    return %c0_i32, %c0_i32_0 : i32, i32
  }
  func.func @transform_11(%arg0: i32) -> (i32, i32) {
    %c0_i32 = arith.constant 0 : i32
    %c0_i32_0 = arith.constant 0 : i32
    %c0_i32_1 = arith.constant 0 : i32
    return %c0_i32, %c0_i32_0 : i32, i32
  }
  func.func @transform_12(%arg0: i32) -> (i32, i32) {
    %c0_i32 = arith.constant 0 : i32
    %c0_i32_0 = arith.constant 0 : i32
    %c0_i32_1 = arith.constant 0 : i32
    return %c0_i32, %c0_i32_0 : i32, i32
  }
  func.func @transform_13(%arg0: i32) -> (i32, i32) {
    %c0_i32 = arith.constant 0 : i32
    %c0_i32_0 = arith.constant 0 : i32
    %c0_i32_1 = arith.constant 0 : i32
    return %c0_i32, %c0_i32_0 : i32, i32
  }
  func.func @transform_14(%arg0: i32) -> (i32, i32) {
    %c0_i32 = arith.constant 0 : i32
    %c0_i32_0 = arith.constant 0 : i32
    %c0_i32_1 = arith.constant 0 : i32
    return %c0_i32, %c0_i32_0 : i32, i32
  }
  func.func @transform_15(%arg0: i32) -> (i32, i32) {
    %c0_i32 = arith.constant 0 : i32
    %c0_i32_0 = arith.constant 0 : i32
    %c0_i32_1 = arith.constant 0 : i32
    return %c0_i32, %c0_i32_0 : i32, i32
  }
  func.func @transform_16(%arg0: i32) -> (i32, i32, i32) {
    %c0_i32 = arith.constant 0 : i32
    %c0_i32_0 = arith.constant 0 : i32
    %c0_i32_1 = arith.constant 0 : i32
    return %arg0, %c0_i32, %c0_i32_0 : i32, i32, i32
  }
}

</mosaic_0001>

<llo_original>
// kernel: tpu_custom_call.1
$region0: #{tpu_custom_call.1}
  #allocation0 [shape = 'u32[]', space=smem, size = 0x4, offset = 0x4, fixed_abs, tag = 'smem constant byte address 0x4 - core index']
  #allocation1 [shape = 'u32[144,128]{1,0:T(1,128)}', space=vmem, size = 0x12000, scoped, tag = 'internal scratch']
  %s0 = inlined_call_operand.vmem [shape: f32[4,8,32], index: 0, kind: input, shape index: {}]
  %s1 = inlined_call_operand.vmem [shape: f32[32,96], index: 1, kind: input, shape index: {}]
  %s2 = inlined_call_operand.vmem [shape: f32[1,96], index: 2, kind: input, shape index: {}]
  %s3 = inlined_call_operand.vmem [shape: f32[32,32], index: 3, kind: input, shape index: {}]
  %s4 = inlined_call_operand.vmem [shape: f32[32,32], index: 4, kind: input, shape index: {}]
  %s5 = inlined_call_operand.vmem [shape: f32[1,32], index: 5, kind: input, shape index: {}]
  %s6 = inlined_call_operand.vmem [shape: f32[1,32], index: 6, kind: input, shape index: {}]
  %s7 = inlined_call_operand.vmem [shape: f32[1,32], index: 7, kind: input, shape index: {}]
  %s8 = inlined_call_operand.vmem [shape: f32[32,128], index: 8, kind: input, shape index: {}]
  %s9 = inlined_call_operand.vmem [shape: f32[1,128], index: 9, kind: input, shape index: {}]
  %s10 = inlined_call_operand.vmem [shape: f32[128,32], index: 10, kind: input, shape index: {}]
  %s11 = inlined_call_operand.vmem [shape: f32[1,32], index: 11, kind: input, shape index: {}]
  %s12 = inlined_call_operand.vmem [shape: f32[1,32], index: 12, kind: input, shape index: {}]
  %s13 = inlined_call_operand.vmem [shape: f32[1,32], index: 13, kind: input, shape index: {}]
  %s14 = inlined_call_operand.hbm [shape: f32[32,32], index: 14, kind: input, shape index: {}]
  %s15 = inlined_call_operand.vmem [shape: f32[1,32], index: 15, kind: input, shape index: {}]
  %s16 = inlined_call_operand.hbm [shape: f32[4,1,32], index: 16, kind: output, shape index: {}]
  %s17 = sld [smem:[#allocation0]]
  $region101: #{tpu_custom_call.1} parent=0
    _
  %s19 = ssub.s32 1, %s17
  %s20 = scalar_select 0, %s19, %s17
  $region1: #{tpu_custom_call.1} parent=0
    #allocation2 [shape = 'u8[16384]{0}', space=vmem, size = 0x4000, scoped, tag = 'input window, operand 14, single buffered']
    #allocation3 [shape = 's32[2]{0}', space=sflag, size = 0x8, scoped, tag = 'scoped memory for tpu_custom_call.1']
    #allocation4 [shape = 's32[2]{0}', space=sflag, size = 0x8, scoped, tag = 'scoped memory for tpu_custom_call.1']
    #allocation5 [shape = 'u8[1024]{0}', space=vmem, size = 0x400, scoped, tag = 'output window, operand 0']
    %21 = vsyncpa [#allocation3], 0
    %22 = vsyncpa [#allocation4], 0
    %s23 = scalar_lea.sflag [#allocation4], 1
    %24 = vsyncpa %s23, 0
    loop: start=0, step=1, limit=6
    $region2: #{tpu_custom_call.1} parent=1 // loop_pre_header
      _
    $region3: #{tpu_custom_call.1} parent=1 // loop_header
      %s26 = sphi 0, %s30
      %p27 = scmp.ge.s32.totalorder %s26, 6
      %s36 = sphi 0, %s38
      %s39 = sphi 0, %s36
      %s40 = sphi 0, %s39
      %s56 = sphi 0, %s40
      %s60 = sphi 0, %s60
      %s62 = sphi 0, %s60
      %s63 = sphi 0, %s62
      %s77 = sphi 0, %s63
      %s81 = sphi 0, %s81
      %s83 = sphi 0, %s81
      %s84 = sphi 0, %s83
      %s98 = sphi 0, %s84
      %s102 = sphi 0, %s102
      %s104 = sphi 0, %s102
      %s105 = sphi 0, %s104
      %s119 = sphi 0, %s105
      %s123 = sphi 0, %s123
      %s125 = sphi 0, %s123
      %s126 = sphi 0, %s125
      %s140 = sphi 0, %s126
      %s144 = sphi 0, %s144
      %s146 = sphi 0, %s144
      %s147 = sphi 0, %s146
      %s161 = sphi 0, %s147
      %s165 = sphi 0, %s165
      %s167 = sphi 0, %s165
      %s168 = sphi 0, %s167
      %s182 = sphi 0, %s168
      %s186 = sphi 0, %s186
      %s188 = sphi 0, %s186
      %s189 = sphi 0, %s188
      %s203 = sphi 0, %s189
      %s207 = sphi 0, %s207
      %s209 = sphi 0, %s207
      %s210 = sphi 0, %s209
      %s224 = sphi 0, %s210
      %s228 = sphi 0, %s228
      %s230 = sphi 0, %s228
      %s231 = sphi 0, %s230
      %s245 = sphi 0, %s231
      %s249 = sphi 0, %s249
      %s251 = sphi 0, %s249
      %s252 = sphi 0, %s251
      %s266 = sphi 0, %s252
      %s270 = sphi 0, %s270
      %s272 = sphi 0, %s270
      %s273 = sphi 0, %s272
      %s287 = sphi 0, %s273
      %s291 = sphi 0, %s291
      %s293 = sphi 0, %s291
      %s294 = sphi 0, %s293
      %s308 = sphi 0, %s294
      %s312 = sphi 0, %s312
      %s314 = sphi 0, %s312
      %s315 = sphi 0, %s314
      %s329 = sphi 0, %s315
      %s333 = sphi 0, %s333
      %s335 = sphi 0, %s333
      %s336 = sphi 0, %s335
      %s350 = sphi 0, %s336
      %s354 = sphi 0, %s354
      %s356 = sphi 0, %s354
      %s357 = sphi 0, %s356
      %s371 = sphi 0, %s357
      %s377 = sphi 0, %s379
      %s380 = sphi 0, %s377
      %s381 = sphi 0, %s380
      %s397 = sphi 0, %s381
    $region4: #{tpu_custom_call.1} parent=1 // loop_header_branch
      %29 = sbr.rel (%p27) target = $region8
    $region5: #{tpu_custom_call.1} parent=1 // loop_body
      %s31 = ssub.s32 %s26, 1
      %s32 = ssub.s32 %s26, 2
      %s33 = sadd.s32 %s26, 1
      %s34 = ssub.s32 %s26, %s33
      %p35 = scmp.eq.s32.totalorder %s34, 0
      %s37 = sadd.s32 %s36, 1
      %s38 = scalar_select %p35, %s36, %s37
      %p41 = pneg %p35
      %p42 = scmp.eq.s32.totalorder %s26, 3
      %p43 = por %p41, %p42
      %p44 = scmp.ne.s32.totalorder %s36, %s39
      %p45 = scmp.eq.s32.totalorder %s26, 0
      %p46 = por %p44, %p45
      %p47 = scmp.ne.s32.totalorder %s36, %s39
      %p48 = scmp.eq.s32.totalorder %s31, 3
      %p49 = por %p47, %p48
      %p50 = scmp.ne.s32.totalorder %s39, %s40
      %p51 = scmp.eq.s32.totalorder %s31, 0
      %p52 = por %p50, %p51
      %p53 = scmp.ne.s32.totalorder %s39, %s40
      %p54 = scmp.eq.s32.totalorder %s32, 3
      %p55 = por %p53, %p54
      %p57 = scmp.ne.s32.totalorder %s40, %s56
      %p58 = scmp.eq.s32.totalorder %s32, 0
      %p59 = por %p57, %p58
      %s61 = sadd.s32 %s60, 1
      %p64 = scmp.eq.s32.totalorder %s26, 3
      %p65 = scmp.ne.s32.totalorder %s60, %s62
      %p66 = scmp.eq.s32.totalorder %s26, 0
      %p67 = por %p65, %p66
      %p68 = scmp.ne.s32.totalorder %s60, %s62
      %p69 = scmp.eq.s32.totalorder %s31, 3
      %p70 = por %p68, %p69
      %p71 = scmp.ne.s32.totalorder %s62, %s63
      %p72 = scmp.eq.s32.totalorder %s31, 0
      %p73 = por %p71, %p72
      %p74 = scmp.ne.s32.totalorder %s62, %s63
      %p75 = scmp.eq.s32.totalorder %s32, 3
      %p76 = por %p74, %p75
      %p78 = scmp.ne.s32.totalorder %s63, %s77
      %p79 = scmp.eq.s32.totalorder %s32, 0
      %p80 = por %p78, %p79
      %s82 = sadd.s32 %s81, 1
      %p85 = scmp.eq.s32.totalorder %s26, 3
      %p86 = scmp.ne.s32.totalorder %s81, %s83
      %p87 = scmp.eq.s32.totalorder %s26, 0
      %p88 = por %p86, %p87
      %p89 = scmp.ne.s32.totalorder %s81, %s83
      %p90 = scmp.eq.s32.totalorder %s31, 3
      %p91 = por %p89, %p90
      %p92 = scmp.ne.s32.totalorder %s83, %s84
      %p93 = scmp.eq.s32.totalorder %s31, 0
      %p94 = por %p92, %p93
      %p95 = scmp.ne.s32.totalorder %s83, %s84
      %p96 = scmp.eq.s32.totalorder %s32, 3
      %p97 = por %p95, %p96
      %p99 = scmp.ne.s32.totalorder %s84, %s98
      %p100 = scmp.eq.s32.totalorder %s32, 0
      %p101 = por %p99, %p100
      %s103 = sadd.s32 %s102, 1
      %p106 = scmp.eq.s32.totalorder %s26, 3
      %p107 = scmp.ne.s32.totalorder %s102, %s104
      %p108 = scmp.eq.s32.totalorder %s26, 0
      %p109 = por %p107, %p108
      %p110 = scmp.ne.s32.totalorder %s102, %s104
      %p111 = scmp.eq.s32.totalorder %s31, 3
      %p112 = por %p110, %p111
      %p113 = scmp.ne.s32.totalorder %s104, %s105
      %p114 = scmp.eq.s32.totalorder %s31, 0
      %p115 = por %p113, %p114
      %p116 = scmp.ne.s32.totalorder %s104, %s105
      %p117 = scmp.eq.s32.totalorder %s32, 3
      %p118 = por %p116, %p117
      %p120 = scmp.ne.s32.totalorder %s105, %s119
      %p121 = scmp.eq.s32.totalorder %s32, 0
      %p122 = por %p120, %p121
      %s124 = sadd.s32 %s123, 1
      %p127 = scmp.eq.s32.totalorder %s26, 3
      %p128 = scmp.ne.s32.totalorder %s123, %s125
      %p129 = scmp.eq.s32.totalorder %s26, 0
      %p130 = por %p128, %p129
      %p131 = scmp.ne.s32.totalorder %s123, %s125
      %p132 = scmp.eq.s32.totalorder %s31, 3
      %p133 = por %p131, %p132
      %p134 = scmp.ne.s32.totalorder %s125, %s126
      %p135 = scmp.eq.s32.totalorder %s31, 0
      %p136 = por %p134, %p135
      %p137 = scmp.ne.s32.totalorder %s125, %s126
      %p138 = scmp.eq.s32.totalorder %s32, 3
      %p139 = por %p137, %p138
      %p141 = scmp.ne.s32.totalorder %s126, %s140
      %p142 = scmp.eq.s32.totalorder %s32, 0
      %p143 = por %p141, %p142
      %s145 = sadd.s32 %s144, 1
      %p148 = scmp.eq.s32.totalorder %s26, 3
      %p149 = scmp.ne.s32.totalorder %s144, %s146
      %p150 = scmp.eq.s32.totalorder %s26, 0
      %p151 = por %p149, %p150
      %p152 = scmp.ne.s32.totalorder %s144, %s146
      %p153 = scmp.eq.s32.totalorder %s31, 3
      %p154 = por %p152, %p153
      %p155 = scmp.ne.s32.totalorder %s146, %s147
      %p156 = scmp.eq.s32.totalorder %s31, 0
      %p157 = por %p155, %p156
      %p158 = scmp.ne.s32.totalorder %s146, %s147
      %p159 = scmp.eq.s32.totalorder %s32, 3
      %p160 = por %p158, %p159
      %p162 = scmp.ne.s32.totalorder %s147, %s161
      %p163 = scmp.eq.s32.totalorder %s32, 0
      %p164 = por %p162, %p163
      %s166 = sadd.s32 %s165, 1
      %p169 = scmp.eq.s32.totalorder %s26, 3
      %p170 = scmp.ne.s32.totalorder %s165, %s167
      %p171 = scmp.eq.s32.totalorder %s26, 0
      %p172 = por %p170, %p171
      %p173 = scmp.ne.s32.totalorder %s165, %s167
      %p174 = scmp.eq.s32.totalorder %s31, 3
      %p175 = por %p173, %p174
      %p176 = scmp.ne.s32.totalorder %s167, %s168
      %p177 = scmp.eq.s32.totalorder %s31, 0
      %p178 = por %p176, %p177
      %p179 = scmp.ne.s32.totalorder %s167, %s168
      %p180 = scmp.eq.s32.totalorder %s32, 3
      %p181 = por %p179, %p180
      %p183 = scmp.ne.s32.totalorder %s168, %s182
      %p184 = scmp.eq.s32.totalorder %s32, 0
      %p185 = por %p183, %p184
      %s187 = sadd.s32 %s186, 1
      %p190 = scmp.eq.s32.totalorder %s26, 3
      %p191 = scmp.ne.s32.totalorder %s186, %s188
      %p192 = scmp.eq.s32.totalorder %s26, 0
      %p193 = por %p191, %p192
      %p194 = scmp.ne.s32.totalorder %s186, %s188
      %p195 = scmp.eq.s32.totalorder %s31, 3
      %p196 = por %p194, %p195
      %p197 = scmp.ne.s32.totalorder %s188, %s189
      %p198 = scmp.eq.s32.totalorder %s31, 0
      %p199 = por %p197, %p198
      %p200 = scmp.ne.s32.totalorder %s188, %s189
      %p201 = scmp.eq.s32.totalorder %s32, 3
      %p202 = por %p200, %p201
      %p204 = scmp.ne.s32.totalorder %s189, %s203
      %p205 = scmp.eq.s32.totalorder %s32, 0
      %p206 = por %p204, %p205
      %s208 = sadd.s32 %s207, 1
      %p211 = scmp.eq.s32.totalorder %s26, 3
      %p212 = scmp.ne.s32.totalorder %s207, %s209
      %p213 = scmp.eq.s32.totalorder %s26, 0
      %p214 = por %p212, %p213
      %p215 = scmp.ne.s32.totalorder %s207, %s209
      %p216 = scmp.eq.s32.totalorder %s31, 3
      %p217 = por %p215, %p216
      %p218 = scmp.ne.s32.totalorder %s209, %s210
      %p219 = scmp.eq.s32.totalorder %s31, 0
      %p220 = por %p218, %p219
      %p221 = scmp.ne.s32.totalorder %s209, %s210
      %p222 = scmp.eq.s32.totalorder %s32, 3
      %p223 = por %p221, %p222
      %p225 = scmp.ne.s32.totalorder %s210, %s224
      %p226 = scmp.eq.s32.totalorder %s32, 0
      %p227 = por %p225, %p226
      %s229 = sadd.s32 %s228, 1
      %p232 = scmp.eq.s32.totalorder %s26, 3
      %p233 = scmp.ne.s32.totalorder %s228, %s230
      %p234 = scmp.eq.s32.totalorder %s26, 0
      %p235 = por %p233, %p234
      %p236 = scmp.ne.s32.totalorder %s228, %s230
      %p237 = scmp.eq.s32.totalorder %s31, 3
      %p238 = por %p236, %p237
      %p239 = scmp.ne.s32.totalorder %s230, %s231
      %p240 = scmp.eq.s32.totalorder %s31, 0
      %p241 = por %p239, %p240
      %p242 = scmp.ne.s32.totalorder %s230, %s231
      %p243 = scmp.eq.s32.totalorder %s32, 3
      %p244 = por %p242, %p243
      %p246 = scmp.ne.s32.totalorder %s231, %s245
      %p247 = scmp.eq.s32.totalorder %s32, 0
      %p248 = por %p246, %p247
      %s250 = sadd.s32 %s249, 1
      %p253 = scmp.eq.s32.totalorder %s26, 3
      %p254 = scmp.ne.s32.totalorder %s249, %s251
      %p255 = scmp.eq.s32.totalorder %s26, 0
      %p256 = por %p254, %p255
      %p257 = scmp.ne.s32.totalorder %s249, %s251
      %p258 = scmp.eq.s32.totalorder %s31, 3
      %p259 = por %p257, %p258
      %p260 = scmp.ne.s32.totalorder %s251, %s252
      %p261 = scmp.eq.s32.totalorder %s31, 0
      %p262 = por %p260, %p261
      %p263 = scmp.ne.s32.totalorder %s251, %s252
      %p264 = scmp.eq.s32.totalorder %s32, 3
      %p265 = por %p263, %p264
      %p267 = scmp.ne.s32.totalorder %s252, %s266
      %p268 = scmp.eq.s32.totalorder %s32, 0
      %p269 = por %p267, %p268
      %s271 = sadd.s32 %s270, 1
      %p274 = scmp.eq.s32.totalorder %s26, 3
      %p275 = scmp.ne.s32.totalorder %s270, %s272
      %p276 = scmp.eq.s32.totalorder %s26, 0
      %p277 = por %p275, %p276
      %p278 = scmp.ne.s32.totalorder %s270, %s272
      %p279 = scmp.eq.s32.totalorder %s31, 3
      %p280 = por %p278, %p279
      %p281 = scmp.ne.s32.totalorder %s272, %s273
      %p282 = scmp.eq.s32.totalorder %s31, 0
      %p283 = por %p281, %p282
      %p284 = scmp.ne.s32.totalorder %s272, %s273
      %p285 = scmp.eq.s32.totalorder %s32, 3
      %p286 = por %p284, %p285
      %p288 = scmp.ne.s32.totalorder %s273, %s287
      %p289 = scmp.eq.s32.totalorder %s32, 0
      %p290 = por %p288, %p289
      %s292 = sadd.s32 %s291, 1
      %p295 = scmp.eq.s32.totalorder %s26, 3
      %p296 = scmp.ne.s32.totalorder %s291, %s293
      %p297 = scmp.eq.s32.totalorder %s26, 0
      %p298 = por %p296, %p297
      %p299 = scmp.ne.s32.totalorder %s291, %s293
      %p300 = scmp.eq.s32.totalorder %s31, 3
      %p301 = por %p299, %p300
      %p302 = scmp.ne.s32.totalorder %s293, %s294
      %p303 = scmp.eq.s32.totalorder %s31, 0
      %p304 = por %p302, %p303
      %p305 = scmp.ne.s32.totalorder %s293, %s294
      %p306 = scmp.eq.s32.totalorder %s32, 3
      %p307 = por %p305, %p306
      %p309 = scmp.ne.s32.totalorder %s294, %s308
      %p310 = scmp.eq.s32.totalorder %s32, 0
      %p311 = por %p309, %p310
      %s313 = sadd.s32 %s312, 1
      %p316 = scmp.eq.s32.totalorder %s26, 3
      %p317 = scmp.ne.s32.totalorder %s312, %s314
      %p318 = scmp.eq.s32.totalorder %s26, 0
      %p319 = por %p317, %p318
      %p320 = scmp.ne.s32.totalorder %s312, %s314
      %p321 = scmp.eq.s32.totalorder %s31, 3
      %p322 = por %p320, %p321
      %p323 = scmp.ne.s32.totalorder %s314, %s315
      %p324 = scmp.eq.s32.totalorder %s31, 0
      %p325 = por %p323, %p324
      %p326 = scmp.ne.s32.totalorder %s314, %s315
      %p327 = scmp.eq.s32.totalorder %s32, 3
      %p328 = por %p326, %p327
      %p330 = scmp.ne.s32.totalorder %s315, %s329
      %p331 = scmp.eq.s32.totalorder %s32, 0
      %p332 = por %p330, %p331
      %s334 = sadd.s32 %s333, 1
      %p337 = scmp.eq.s32.totalorder %s26, 3
      %p338 = scmp.ne.s32.totalorder %s333, %s335
      %p339 = scmp.eq.s32.totalorder %s26, 0
      %p340 = por %p338, %p339
      %p341 = scmp.ne.s32.totalorder %s333, %s335
      %p342 = scmp.eq.s32.totalorder %s31, 3
      %p343 = por %p341, %p342
      %p344 = scmp.ne.s32.totalorder %s335, %s336
      %p345 = scmp.eq.s32.totalorder %s31, 0
      %p346 = por %p344, %p345
      %p347 = scmp.ne.s32.totalorder %s335, %s336
      %p348 = scmp.eq.s32.totalorder %s32, 3
      %p349 = por %p347, %p348
      %p351 = scmp.ne.s32.totalorder %s336, %s350
      %p352 = scmp.eq.s32.totalorder %s32, 0
      %p353 = por %p351, %p352
      %s355 = sadd.s32 %s354, 1
      %p358 = scmp.eq.s32.totalorder %s26, 3
      %p359 = scmp.ne.s32.totalorder %s354, %s356
      %p360 = scmp.eq.s32.totalorder %s26, 0
      %p361 = por %p359, %p360
      %p362 = scmp.ne.s32.totalorder %s354, %s356
      %p363 = scmp.eq.s32.totalorder %s31, 3
      %p364 = por %p362, %p363
      %p365 = scmp.ne.s32.totalorder %s356, %s357
      %p366 = scmp.eq.s32.totalorder %s31, 0
      %p367 = por %p365, %p366
      %p368 = scmp.ne.s32.totalorder %s356, %s357
      %p369 = scmp.eq.s32.totalorder %s32, 3
      %p370 = por %p368, %p369
      %p372 = scmp.ne.s32.totalorder %s357, %s371
      %p373 = scmp.eq.s32.totalorder %s32, 0
      %p374 = por %p372, %p373
      %s375 = ssub.s32 %s26, %s33
      %p376 = scmp.eq.s32.totalorder %s375, 0
      %s378 = sadd.s32 %s377, 1
      %s379 = scalar_select %p376, %s377, %s378
      %p382 = pneg %p376
      %p383 = scmp.eq.s32.totalorder %s26, 3
      %p384 = por %p382, %p383
      %p385 = scmp.ne.s32.totalorder %s377, %s380
      %p386 = scmp.eq.s32.totalorder %s26, 0
      %p387 = por %p385, %p386
      %p388 = scmp.ne.s32.totalorder %s377, %s380
      %p389 = scmp.eq.s32.totalorder %s31, 3
      %p390 = por %p388, %p389
      %p391 = scmp.ne.s32.totalorder %s380, %s381
      %p392 = scmp.eq.s32.totalorder %s31, 0
      %p393 = por %p391, %p392
      %p394 = scmp.ne.s32.totalorder %s380, %s381
      %p395 = scmp.eq.s32.totalorder %s32, 3
      %p396 = por %p394, %p395
      %p398 = scmp.ne.s32.totalorder %s381, %s397
      %p399 = scmp.eq.s32.totalorder %s32, 0
      %p400 = por %p398, %p399
      %p401 = scmp.le.s32.totalorder 1, %s26
      %p402 = scmp.lt.s32.totalorder %s26, 5
      %p403 = pnand %p401, %p402
      %p404 = pneg %p403
      // Predicated region
      $region9: #{tpu_custom_call.1} parent=5 // pred_check
        _
      $region10: #{tpu_custom_call.1} parent=5 // pred_check_branch
        %406 = sbr.rel (%p403) target = $region12
      $region11: #{tpu_custom_call.1} parent=5 // pred_region
        %s407 = ssub.s32 %s26, 1
        // Predicated region
        $region13: #{tpu_custom_call.1} parent=11 // pred_check
          %p408 = pneg %p73
        $region14: #{tpu_custom_call.1} parent=11 // pred_check_branch
          %410 = sbr.rel (%p408) target = $region16
        $region15: #{tpu_custom_call.1} parent=11 // pred_region
          _
        $region16: #{tpu_custom_call.1} parent=11 // pred_fallthru
          _
        // Predicated region
        $region17: #{tpu_custom_call.1} parent=11 // pred_check
          %p411 = pneg %p94
        $region18: #{tpu_custom_call.1} parent=11 // pred_check_branch
          %413 = sbr.rel (%p411) target = $region20
        $region19: #{tpu_custom_call.1} parent=11 // pred_region
          _
        $region20: #{tpu_custom_call.1} parent=11 // pred_fallthru
          _
        // Predicated region
        $region21: #{tpu_custom_call.1} parent=11 // pred_check
          %p414 = pneg %p115
        $region22: #{tpu_custom_call.1} parent=11 // pred_check_branch
          %416 = sbr.rel (%p414) target = $region24
        $region23: #{tpu_custom_call.1} parent=11 // pred_region
          _
        $region24: #{tpu_custom_call.1} parent=11 // pred_fallthru
          _
        // Predicated region
        $region25: #{tpu_custom_call.1} parent=11 // pred_check
          %p417 = pneg %p136
        $region26: #{tpu_custom_call.1} parent=11 // pred_check_branch
          %419 = sbr.rel (%p417) target = $region28
        $region27: #{tpu_custom_call.1} parent=11 // pred_region
          _
        $region28: #{tpu_custom_call.1} parent=11 // pred_fallthru
          _
        // Predicated region
        $region29: #{tpu_custom_call.1} parent=11 // pred_check
          %p420 = pneg %p157
        $region30: #{tpu_custom_call.1} parent=11 // pred_check_branch
          %422 = sbr.rel (%p420) target = $region32
        $region31: #{tpu_custom_call.1} parent=11 // pred_region
          _
        $region32: #{tpu_custom_call.1} parent=11 // pred_fallthru
          _
        // Predicated region
        $region33: #{tpu_custom_call.1} parent=11 // pred_check
          %p423 = pneg %p178
        $region34: #{tpu_custom_call.1} parent=11 // pred_check_branch
          %425 = sbr.rel (%p423) target = $region36
        $region35: #{tpu_custom_call.1} parent=11 // pred_region
          _
        $region36: #{tpu_custom_call.1} parent=11 // pred_fallthru
          _
        // Predicated region
        $region37: #{tpu_custom_call.1} parent=11 // pred_check
          %p426 = pneg %p199
        $region38: #{tpu_custom_call.1} parent=11 // pred_check_branch
          %428 = sbr.rel (%p426) target = $region40
        $region39: #{tpu_custom_call.1} parent=11 // pred_region
          _
        $region40: #{tpu_custom_call.1} parent=11 // pred_fallthru
          _
        // Predicated region
        $region41: #{tpu_custom_call.1} parent=11 // pred_check
          %p429 = pneg %p220
        $region42: #{tpu_custom_call.1} parent=11 // pred_check_branch
          %431 = sbr.rel (%p429) target = $region44
        $region43: #{tpu_custom_call.1} parent=11 // pred_region
          _
        $region44: #{tpu_custom_call.1} parent=11 // pred_fallthru
          _
        // Predicated region
        $region45: #{tpu_custom_call.1} parent=11 // pred_check
          %p432 = pneg %p241
        $region46: #{tpu_custom_call.1} parent=11 // pred_check_branch
          %434 = sbr.rel (%p432) target = $region48
        $region47: #{tpu_custom_call.1} parent=11 // pred_region
          _
        $region48: #{tpu_custom_call.1} parent=11 // pred_fallthru
          _
        // Predicated region
        $region49: #{tpu_custom_call.1} parent=11 // pred_check
          %p435 = pneg %p262
        $region50: #{tpu_custom_call.1} parent=11 // pred_check_branch
          %437 = sbr.rel (%p435) target = $region52
        $region51: #{tpu_custom_call.1} parent=11 // pred_region
          _
        $region52: #{tpu_custom_call.1} parent=11 // pred_fallthru
          _
        // Predicated region
        $region53: #{tpu_custom_call.1} parent=11 // pred_check
          %p438 = pneg %p283
        $region54: #{tpu_custom_call.1} parent=11 // pred_check_branch
          %440 = sbr.rel (%p438) target = $region56
        $region55: #{tpu_custom_call.1} parent=11 // pred_region
          _
        $region56: #{tpu_custom_call.1} parent=11 // pred_fallthru
          _
        // Predicated region
        $region57: #{tpu_custom_call.1} parent=11 // pred_check
          %p441 = pneg %p304
        $region58: #{tpu_custom_call.1} parent=11 // pred_check_branch
          %443 = sbr.rel (%p441) target = $region60
        $region59: #{tpu_custom_call.1} parent=11 // pred_region
          _
        $region60: #{tpu_custom_call.1} parent=11 // pred_fallthru
          _
        // Predicated region
        $region61: #{tpu_custom_call.1} parent=11 // pred_check
          %p444 = pneg %p325
        $region62: #{tpu_custom_call.1} parent=11 // pred_check_branch
          %446 = sbr.rel (%p444) target = $region64
        $region63: #{tpu_custom_call.1} parent=11 // pred_region
          _
        $region64: #{tpu_custom_call.1} parent=11 // pred_fallthru
          _
        // Predicated region
        $region65: #{tpu_custom_call.1} parent=11 // pred_check
          %p447 = pneg %p346
        $region66: #{tpu_custom_call.1} parent=11 // pred_check_branch
          %449 = sbr.rel (%p447) target = $region68
        $region67: #{tpu_custom_call.1} parent=11 // pred_region
          %s451 = ssub.s32 512, 512
          %452 = vsyncadd [#allocation3], %s451
          %s453 = sshll.u32 [#allocation2], 4
          %s454 = int_to_ptr.vmem [resolvable:$true] %s453
          %459 = dma.hbm_to_vmem [thread:$0]  %s14, 512, %s454, [#allocation3], 128, 128, 8
        $region68: #{tpu_custom_call.1} parent=11 // pred_fallthru
          _
        // Predicated region
        $region69: #{tpu_custom_call.1} parent=11 // pred_check
          %p460 = pneg %p367
        $region70: #{tpu_custom_call.1} parent=11 // pred_check_branch
          %462 = sbr.rel (%p460) target = $region72
        $region71: #{tpu_custom_call.1} parent=11 // pred_region
          _
        $region72: #{tpu_custom_call.1} parent=11 // pred_fallthru
          _
      $region12: #{tpu_custom_call.1} parent=5 // pred_fallthru
        _
      %p463 = scmp.lt.s32.totalorder %s26, 4
      // Predicated region
      $region73: #{tpu_custom_call.1} parent=5 // pred_check
        %p464 = pneg %p463
      $region74: #{tpu_custom_call.1} parent=5 // pred_check_branch
        %466 = sbr.rel (%p464) target = $region76
      $region75: #{tpu_custom_call.1} parent=5 // pred_region
        // Predicated region
        $region77: #{tpu_custom_call.1} parent=75 // pred_check
          %p467 = pneg %p46
        $region78: #{tpu_custom_call.1} parent=75 // pred_check_branch
          %469 = sbr.rel (%p467) target = $region80
        $region79: #{tpu_custom_call.1} parent=75 // pred_region
          %p470 = scmp.lt.s32.totalorder %s26, 3
          %s471 = scalar_select %p470, %s26, 3
          %s472 = smul.addr %s471, 8
          %s473 = scalar_lea.vmem %s0, %s472
        $region80: #{tpu_custom_call.1} parent=75 // pred_fallthru
          _
      $region76: #{tpu_custom_call.1} parent=5 // pred_fallthru
        _
      %p474 = scmp.le.s32.totalorder 1, %s26
      %p475 = scmp.lt.s32.totalorder %s26, 5
      %p476 = pnand %p474, %p475
      %p477 = pneg %p476
      // Predicated region
      $region81: #{tpu_custom_call.1} parent=5 // pred_check
        _
      $region82: #{tpu_custom_call.1} parent=5 // pred_check_branch
        %479 = sbr.rel (%p476) target = $region84
      $region83: #{tpu_custom_call.1} parent=5 // pred_region
        %s480 = ssub.s32 %s26, 1
        // Predicated region
        $region85: #{tpu_custom_call.1} parent=83 // pred_check
          %p481 = pneg %p346
        $region86: #{tpu_custom_call.1} parent=83 // pred_check_branch
          %483 = sbr.rel (%p481) target = $region88
        $region87: #{tpu_custom_call.1} parent=83 // pred_region
          %484 = dma.done [#allocation3], 512
        $region88: #{tpu_custom_call.1} parent=83 // pred_fallthru
          _
        %p485 = scmp.lt.s32.totalorder %s31, 3
        %s486 = scalar_select %p485, %s31, 3
        %s487 = smul.addr %s486, 8
        %s488 = scalar_lea.vmem %s0, %s487
        %p489 = pneg %p52
        %p490 = pneg %p49
        %p491 = pneg %p73
        %p492 = pneg %p70
        %p493 = pneg %p94
        %p494 = pneg %p91
        %p495 = pneg %p115
        %p496 = pneg %p112
        %p497 = pneg %p136
        %p498 = pneg %p133
        %p499 = pneg %p157
        %p500 = pneg %p154
        %p501 = pneg %p178
        %p502 = pneg %p175
        %p503 = pneg %p199
        %p504 = pneg %p196
        %p505 = pneg %p220
        %p506 = pneg %p217
        %p507 = pneg %p241
        %p508 = pneg %p238
        %p509 = pneg %p262
        %p510 = pneg %p259
        %p511 = pneg %p283
        %p512 = pneg %p280
        %p513 = pneg %p304
        %p514 = pneg %p301
        %p515 = pneg %p325
        %p516 = pneg %p322
        %p517 = pneg %p346
        %p518 = pneg %p343
        %p519 = pneg %p367
        %p520 = pneg %p364
        %p521 = pneg %p393
        %p522 = pneg %p390
        %s523 = sand.u32 %s380, 1
        %s524 = scalar_lea.sflag [#allocation4], %s523
        %s525 = sand.u32 %s380, 1
        %s526 = scalar_lea.vmem [#allocation5], %s525
        %p527 = scmp.lt.s32.totalorder %s31, 3
        %s528 = scalar_select %p527, %s31, 3
        %s529 = smul.addr %s528, 8
        %s530 = scalar_lea.vmem %s0, %s529
        %v531 = vld [vmem:[%s530] sm:$0xff]
        %v532 = vld [vmem:[%s1] sm:$0xff]
        %v533 = vld [vmem:[%s1 + $0x8] sm:$0xff]
        %v534 = vld [vmem:[%s1 + $0x10] sm:$0xff]
        %v535 = vld [vmem:[%s1 + $0x18] sm:$0xff]
        %v536 = vld [vmem:[%s2] sm:$0x1]
        %v538 = vlaneseq
        %v539 = vshrl.u32 %v538, 7
        %v540 = vsub.s32 0, %v539
        %v541 = vrot.slane %v536, %v540
        %vm543 = vcmask 261120
        %v545 = vsel %vm543, %v531, 0
        %547 = vmatprep.subr.mxu0 0.0
        %548 = vmatpush1.msra.mxu0 0.0
        %549 = vmatprep.subr.mxu0 0.0
        %550 = vmatpush1.msra.mxu0 0.0
        %551 = vmatprep.subr.mxu0 0.0
        %552 = vmatpush1.msra.mxu0 0.0
        %553 = vmatprep.subr.mxu0 0.0
        %554 = vmatpush1.msra.mxu0 0.0
        %555 = vmatprep.subr.mxu0 0.0
        %556 = vmatpush1.msra.mxu0 0.0
        %557 = vmatprep.subr.mxu0 0.0
        %558 = vmatpush1.msra.mxu0 0.0
        %559 = vmatprep.subr.mxu0 0.0
        %560 = vmatpush1.msra.mxu0 0.0
        %561 = vmatprep.subr.mxu0 0.0
        %562 = vmatpush1.msra.mxu0 0.0
        %563 = vmatprep.subr.mxu0 0.0
        %564 = vmatpush1.msra.mxu0 0.0
        %565 = vmatprep.subr.mxu0 0.0
        %566 = vmatpush1.msra.mxu0 0.0
        %567 = vmatprep.subr.mxu0 0.0
        %568 = vmatpush1.msra.mxu0 0.0
        %569 = vmatprep.subr.mxu0 0.0
        %570 = vmatpush1.msra.mxu0 0.0
        %571 = vmatprep.subr.mxu0 0.0
        %572 = vmatpush1.msra.mxu0 %v535
        %573 = vmatprep.subr.mxu0 0.0
        %574 = vmatpush1.msra.mxu0 %v534
        %575 = vmatprep.subr.mxu0 0.0
        %576 = vmatpush1.msra.mxu0 %v533
        %577 = vmatprep.subr.mxu0 0.0
        %578 = vmatpush1.msra.mxu0 %v532
        %579 = vmatprep.subr.mxu0 0.0
        %580 = vmatpush2.msra.mxu0 0.0
        %581 = vmatprep.subr.mxu0 0.0
        %582 = vmatpush2.msra.mxu0 0.0
        %583 = vmatprep.subr.mxu0 0.0
        %584 = vmatpush2.msra.mxu0 0.0
        %585 = vmatprep.subr.mxu0 0.0
        %586 = vmatpush2.msra.mxu0 0.0
        %587 = vmatprep.subr.mxu0 0.0
        %588 = vmatpush2.msra.mxu0 0.0
        %589 = vmatprep.subr.mxu0 0.0
        %590 = vmatpush2.msra.mxu0 0.0
        %591 = vmatprep.subr.mxu0 0.0
        %592 = vmatpush2.msra.mxu0 0.0
        %593 = vmatprep.subr.mxu0 0.0
        %594 = vmatpush2.msra.mxu0 0.0
        %595 = vmatprep.subr.mxu0 0.0
        %596 = vmatpush2.msra.mxu0 0.0
        %597 = vmatprep.subr.mxu0 0.0
        %598 = vmatpush2.msra.mxu0 0.0
        %599 = vmatprep.subr.mxu0 0.0
        %600 = vmatpush2.msra.mxu0 0.0
        %601 = vmatprep.subr.mxu0 0.0
        %602 = vmatpush2.msra.mxu0 0.0
        %603 = vmatprep.subr.mxu0 0.0
        %604 = vmatpush2.msra.mxu0 0.0
        %605 = vmatprep.subr.mxu0 0.0
        %606 = vmatpush2.msra.mxu0 0.0
        %607 = vmatprep.subr.mxu0 0.0
        %608 = vmatpush2.msra.mxu0 0.0
        %609 = vmatprep.subr.mxu0 0.0
        %610 = vmatpush2.msra.mxu0 0.0
        %611 = vmatprep.mubr.f32.mxu0 0.0
        %612 = vmatmul.mubr.f32.gmra.mxu0 %v545
        %v613 = vpop.f32.mrf.mxu0
        %v614 = vadd.f32 %v541, %v613
        %v615 = vpop.f32.mrf.mxu0
        %616 = vdwg.mxu0
        %v617 = vld [vmem:[%s3] sm:$0xff]
        %v618 = vld [vmem:[%s3 + $0x8] sm:$0xff]
        %v619 = vld [vmem:[%s3 + $0x10] sm:$0xff]
        %v620 = vld [vmem:[%s3 + $0x18] sm:$0xff]
        %621 = vxpose.xlu0.b32.start [1/16] %v614, 128
        %622 = vxpose.xlu0.b32.cont [2/16] 0.0, 128
        %623 = vxpose.xlu0.b32.cont [3/16] 0.0, 128
        %624 = vxpose.xlu0.b32.cont [4/16] 0.0, 128
        %625 = vxpose.xlu0.b32.cont [5/16] 0.0, 128
        %626 = vxpose.xlu0.b32.cont [6/16] 0.0, 128
        %627 = vxpose.xlu0.b32.cont [7/16] 0.0, 128
        %628 = vxpose.xlu0.b32.cont [8/16] 0.0, 128
        %629 = vxpose.xlu0.b32.cont [9/16] 0.0, 128
        %630 = vxpose.xlu0.b32.cont [10/16] 0.0, 128
        %631 = vxpose.xlu0.b32.cont [11/16] 0.0, 128
        %632 = vxpose.xlu0.b32.cont [12/16] 0.0, 128
        %633 = vxpose.xlu0.b32.cont [13/16] 0.0, 128
        %634 = vxpose.xlu0.b32.cont [14/16] 0.0, 128
        %635 = vxpose.xlu0.b32.cont [15/16] 0.0, 128
        %636 = vxpose.xlu0.b32.end [16/16] 0.0, 128
        %v637 = vpop.trf.xlu0
        %v638 = vpop.trf.xlu0
        %v639 = vpop.trf.xlu0
        %v640 = vpop.trf.xlu0
        %v641 = vpop.trf.xlu0
        %v642 = vpop.trf.xlu0
        %v643 = vpop.trf.xlu0
        %v644 = vpop.trf.xlu0
        %v645 = vpop.trf.xlu0
        %v646 = vpop.trf.xlu0
        %v647 = vpop.trf.xlu0
        %v648 = vpop.trf.xlu0
        %v649 = vpop.trf.xlu0
        %v650 = vpop.trf.xlu0
        %v651 = vpop.trf.xlu0
        %v652 = vpop.trf.xlu0
        %654 = vrot.lane.b32.xlu0 %v614, 96
        %v655 = vpop.permute.xlu0 %654
        %vm657 = vcmask 64512
        %v659 = vsel %vm657, %v637, 0
        %v662 = vsel %vm657, %v638, 0
        %v665 = vsel %vm657, %v639, 0
        %v668 = vsel %vm657, %v640, 0
        %670 = vmatprep.subr.mxu0 0.0
        %671 = vmatpush1.msra.mxu0 0.0
        %672 = vmatprep.subr.mxu0 0.0
        %673 = vmatpush1.msra.mxu0 0.0
        %674 = vmatprep.subr.mxu0 0.0
        %675 = vmatpush1.msra.mxu0 0.0
        %676 = vmatprep.subr.mxu0 0.0
        %677 = vmatpush1.msra.mxu0 0.0
        %678 = vmatprep.subr.mxu0 0.0
        %679 = vmatpush1.msra.mxu0 0.0
        %680 = vmatprep.subr.mxu0 0.0
        %681 = vmatpush1.msra.mxu0 0.0
        %682 = vmatprep.subr.mxu0 0.0
        %683 = vmatpush1.msra.mxu0 0.0
        %684 = vmatprep.subr.mxu0 0.0
        %685 = vmatpush1.msra.mxu0 0.0
        %686 = vmatprep.subr.mxu0 0.0
        %687 = vmatpush1.msra.mxu0 0.0
        %688 = vmatprep.subr.mxu0 0.0
        %689 = vmatpush1.msra.mxu0 0.0
        %690 = vmatprep.subr.mxu0 0.0
        %691 = vmatpush1.msra.mxu0 0.0
        %692 = vmatprep.subr.mxu0 0.0
        %693 = vmatpush1.msra.mxu0 0.0
        %694 = vmatprep.subr.mxu0 0.0
        %695 = vmatpush1.msra.mxu0 0.0
        %696 = vmatprep.subr.mxu0 0.0
        %697 = vmatpush1.msra.mxu0 0.0
        %698 = vmatprep.subr.mxu0 0.0
        %699 = vmatpush1.msra.mxu0 0.0
        %700 = vmatprep.subr.mxu0 0.0
        %701 = vmatpush1.msra.mxu0 %v655
        %702 = vmatprep.subr.mxu0 0.0
        %703 = vmatpush2.msra.mxu0 0.0
        %704 = vmatprep.subr.mxu0 0.0
        %705 = vmatpush2.msra.mxu0 0.0
        %706 = vmatprep.subr.mxu0 0.0
        %707 = vmatpush2.msra.mxu0 0.0
        %708 = vmatprep.subr.mxu0 0.0
        %709 = vmatpush2.msra.mxu0 0.0
        %710 = vmatprep.subr.mxu0 0.0
        %711 = vmatpush2.msra.mxu0 0.0
        %712 = vmatprep.subr.mxu0 0.0
        %713 = vmatpush2.msra.mxu0 0.0
        %714 = vmatprep.subr.mxu0 0.0
        %715 = vmatpush2.msra.mxu0 0.0
        %716 = vmatprep.subr.mxu0 0.0
        %717 = vmatpush2.msra.mxu0 0.0
        %718 = vmatprep.subr.mxu0 0.0
        %719 = vmatpush2.msra.mxu0 0.0
        %720 = vmatprep.subr.mxu0 0.0
        %721 = vmatpush2.msra.mxu0 0.0
        %722 = vmatprep.subr.mxu0 0.0
        %723 = vmatpush2.msra.mxu0 0.0
        %724 = vmatprep.subr.mxu0 0.0
        %725 = vmatpush2.msra.mxu0 0.0
        %726 = vmatprep.subr.mxu0 0.0
        %727 = vmatpush2.msra.mxu0 0.0
        %728 = vmatprep.subr.mxu0 0.0
        %729 = vmatpush2.msra.mxu0 0.0
        %730 = vmatprep.subr.mxu0 0.0
        %731 = vmatpush2.msra.mxu0 0.0
        %732 = vmatprep.subr.mxu0 0.0
        %733 = vmatpush2.msra.mxu0 0.0
        %734 = vmatprep.mubr.f32.mxu0 0.0
        %735 = vmatmul.mubr.f32.gmra.mxu0 %v659
        %v736 = vpop.f32.mrf.mxu0
        %v737 = vadd.f32 %v617, %v736
        %v738 = vpop.f32.mrf.mxu0
        %739 = vmatprep.mubr.f32.mxu0 0.0
        %740 = vmatmul.mubr.f32.gmra.mxu0 %v662
        %v741 = vpop.f32.mrf.mxu0
        %v742 = vadd.f32 %v618, %v741
        %v743 = vpop.f32.mrf.mxu0
        %744 = vmatprep.mubr.f32.mxu0 0.0
        %745 = vmatmul.mubr.f32.gmra.mxu0 %v665
        %v746 = vpop.f32.mrf.mxu0
        %v747 = vadd.f32 %v619, %v746
        %v748 = vpop.f32.mrf.mxu0
        %749 = vmatprep.mubr.f32.mxu0 0.0
        %750 = vmatmul.mubr.f32.gmra.mxu0 %v668
        %v751 = vpop.f32.mrf.mxu0
        %v752 = vadd.f32 %v620, %v751
        %v753 = vpop.f32.mrf.mxu0
        %754 = vdwg.mxu0
        %v755 = vsel %vm543, %v737, -inf
        %756 = vmax.xlane.f32.xlu0 %v755
        %v757 = vpop.xlane.xlu0 %756
        %v758 = vsel %vm543, %v742, -inf
        %759 = vmax.xlane.f32.xlu0 %v758
        %v760 = vpop.xlane.xlu0 %759
        %v761 = vsel %vm543, %v747, -inf
        %762 = vmax.xlane.f32.xlu0 %v761
        %v763 = vpop.xlane.xlu0 %762
        %v764 = vsel %vm543, %v752, -inf
        %765 = vmax.xlane.f32.xlu0 %v764
        %v766 = vpop.xlane.xlu0 %765
        %v767 = vsub.f32 %v737, %v757
        %v768 = vsub.f32 %v742, %v760
        %v769 = vsub.f32 %v747, %v763
        %v770 = vsub.f32 %v752, %v766
        %v771 = vmul.f32 %v767, 1.442695
        %v772 = vpow.pop %v771
        %v773 = vmul.f32 %v768, 1.442695
        %v774 = vpow.pop %v773
        %v775 = vmul.f32 %v769, 1.442695
        %v776 = vpow.pop %v775
        %v777 = vmul.f32 %v770, 1.442695
        %v778 = vpow.pop %v777
        %v779 = vsel %vm543, %v772, 0.0
        %780 = vadd.xlane.f32.xlu0 %v779
        %v781 = vpop.xlane.xlu0 %780
        %v782 = vsel %vm543, %v774, 0.0
        %783 = vadd.xlane.f32.xlu0 %v782
        %v784 = vpop.xlane.xlu0 %783
        %v785 = vsel %vm543, %v776, 0.0
        %786 = vadd.xlane.f32.xlu0 %v785
        %v787 = vpop.xlane.xlu0 %786
        %v788 = vsel %vm543, %v778, 0.0
        %789 = vadd.xlane.f32.xlu0 %v788
        %v790 = vpop.xlane.xlu0 %789
        %v791 = vrcp.pop %v781
        %v792 = vrcp.pop %v784
        %v793 = vrcp.pop %v787
        %v794 = vrcp.pop %v790
        %v795 = vmul.f32 %v772, %v791
        %v796 = vmul.f32 %v774, %v792
        %v797 = vmul.f32 %v776, %v793
        %v798 = vmul.f32 %v778, %v794
        %799 = vrot.lane.b32.xlu0 %v614, 64
        %v800 = vpop.permute.xlu0 %799
        %v801 = vsel %vm543, %v800, 0
        %v804 = vsel %vm543, %v795, 0
        %v807 = vsel %vm543, %v796, 0
        %v810 = vsel %vm543, %v797, 0
        %v813 = vsel %vm543, %v798, 0
        %815 = vmatprep.subr.mxu0 0.0
        %816 = vmatpush1.xpose.msra.mxu0 0.0
        %817 = vmatprep.subr.mxu0 0.0
        %818 = vmatpush1.xpose.msra.mxu0 0.0
        %819 = vmatprep.subr.mxu0 0.0
        %820 = vmatpush1.xpose.msra.mxu0 0.0
        %821 = vmatprep.subr.mxu0 0.0
        %822 = vmatpush1.xpose.msra.mxu0 0.0
        %823 = vmatprep.subr.mxu0 0.0
        %824 = vmatpush1.xpose.msra.mxu0 0.0
        %825 = vmatprep.subr.mxu0 0.0
        %826 = vmatpush1.xpose.msra.mxu0 0.0
        %827 = vmatprep.subr.mxu0 0.0
        %828 = vmatpush1.xpose.msra.mxu0 0.0
        %829 = vmatprep.subr.mxu0 0.0
        %830 = vmatpush1.xpose.msra.mxu0 0.0
        %831 = vmatprep.subr.mxu0 0.0
        %832 = vmatpush1.xpose.msra.mxu0 0.0
        %833 = vmatprep.subr.mxu0 0.0
        %834 = vmatpush1.xpose.msra.mxu0 0.0
        %835 = vmatprep.subr.mxu0 0.0
        %836 = vmatpush1.xpose.msra.mxu0 0.0
        %837 = vmatprep.subr.mxu0 0.0
        %838 = vmatpush1.xpose.msra.mxu0 0.0
        %839 = vmatprep.subr.mxu0 0.0
        %840 = vmatpush1.xpose.msra.mxu0 %v813
        %841 = vmatprep.subr.mxu0 0.0
        %842 = vmatpush1.xpose.msra.mxu0 %v810
        %843 = vmatprep.subr.mxu0 0.0
        %844 = vmatpush1.xpose.msra.mxu0 %v807
        %845 = vmatprep.subr.mxu0 0.0
        %846 = vmatpush1.xpose.msra.mxu0 %v804
        %847 = vmatprep.subr.mxu0 0.0
        %848 = vmatpush2.xpose.msra.mxu0 0.0
        %849 = vmatprep.subr.mxu0 0.0
        %850 = vmatpush2.xpose.msra.mxu0 0.0
        %851 = vmatprep.subr.mxu0 0.0
        %852 = vmatpush2.xpose.msra.mxu0 0.0
        %853 = vmatprep.subr.mxu0 0.0
        %854 = vmatpush2.xpose.msra.mxu0 0.0
        %855 = vmatprep.subr.mxu0 0.0
        %856 = vmatpush2.xpose.msra.mxu0 0.0
        %857 = vmatprep.subr.mxu0 0.0
        %858 = vmatpush2.xpose.msra.mxu0 0.0
        %859 = vmatprep.subr.mxu0 0.0
        %860 = vmatpush2.xpose.msra.mxu0 0.0
        %861 = vmatprep.subr.mxu0 0.0
        %862 = vmatpush2.xpose.msra.mxu0 0.0
        %863 = vmatprep.subr.mxu0 0.0
        %864 = vmatpush2.xpose.msra.mxu0 0.0
        %865 = vmatprep.subr.mxu0 0.0
        %866 = vmatpush2.xpose.msra.mxu0 0.0
        %867 = vmatprep.subr.mxu0 0.0
        %868 = vmatpush2.xpose.msra.mxu0 0.0
        %869 = vmatprep.subr.mxu0 0.0
        %870 = vmatpush2.xpose.msra.mxu0 0.0
        %871 = vmatprep.subr.mxu0 0.0
        %872 = vmatpush2.xpose.msra.mxu0 0.0
        %873 = vmatprep.subr.mxu0 0.0
        %874 = vmatpush2.xpose.msra.mxu0 0.0
        %875 = vmatprep.subr.mxu0 0.0
        %876 = vmatpush2.xpose.msra.mxu0 0.0
        %877 = vmatprep.subr.mxu0 0.0
        %878 = vmatpush2.xpose.msra.mxu0 0.0
        %879 = vmatprep.mubr.f32.mxu0 0.0
        %880 = vmatmul.mubr.f32.gmra.mxu0 %v801
        %v881 = vpop.f32.mrf.mxu0
        %v882 = vadd.f32 0.0, %v881
        %v883 = vpop.f32.mrf.mxu0
        %884 = vdwg.mxu0
        %v885 = vld [vmem:[%s4] sm:$0xff]
        %v886 = vld [vmem:[%s4 + $0x8] sm:$0xff]
        %v887 = vld [vmem:[%s4 + $0x10] sm:$0xff]
        %v888 = vld [vmem:[%s4 + $0x18] sm:$0xff]
        %v889 = vld [vmem:[%s5] sm:$0x1]
        %v891 = vlaneseq
        %v892 = vshrl.u32 %v891, 7
        %v893 = vsub.s32 0, %v892
        %v894 = vrot.slane %v889, %v893
        %v897 = vsel %vm543, %v882, 0
        %899 = vmatprep.subr.mxu0 0.0
        %900 = vmatpush1.msra.mxu0 0.0
        %901 = vmatprep.subr.mxu0 0.0
        %902 = vmatpush1.msra.mxu0 0.0
        %903 = vmatprep.subr.mxu0 0.0
        %904 = vmatpush1.msra.mxu0 0.0
        %905 = vmatprep.subr.mxu0 0.0
        %906 = vmatpush1.msra.mxu0 0.0
        %907 = vmatprep.subr.mxu0 0.0
        %908 = vmatpush1.msra.mxu0 0.0
        %909 = vmatprep.subr.mxu0 0.0
        %910 = vmatpush1.msra.mxu0 0.0
        %911 = vmatprep.subr.mxu0 0.0
        %912 = vmatpush1.msra.mxu0 0.0
        %913 = vmatprep.subr.mxu0 0.0
        %914 = vmatpush1.msra.mxu0 0.0
        %915 = vmatprep.subr.mxu0 0.0
        %916 = vmatpush1.msra.mxu0 0.0
        %917 = vmatprep.subr.mxu0 0.0
        %918 = vmatpush1.msra.mxu0 0.0
        %919 = vmatprep.subr.mxu0 0.0
        %920 = vmatpush1.msra.mxu0 0.0
        %921 = vmatprep.subr.mxu0 0.0
        %922 = vmatpush1.msra.mxu0 0.0
        %923 = vmatprep.subr.mxu0 0.0
        %924 = vmatpush1.msra.mxu0 %v888
        %925 = vmatprep.subr.mxu0 0.0
        %926 = vmatpush1.msra.mxu0 %v887
        %927 = vmatprep.subr.mxu0 0.0
        %928 = vmatpush1.msra.mxu0 %v886
        %929 = vmatprep.subr.mxu0 0.0
        %930 = vmatpush1.msra.mxu0 %v885
        %931 = vmatprep.subr.mxu0 0.0
        %932 = vmatpush2.msra.mxu0 0.0
        %933 = vmatprep.subr.mxu0 0.0
        %934 = vmatpush2.msra.mxu0 0.0
        %935 = vmatprep.subr.mxu0 0.0
        %936 = vmatpush2.msra.mxu0 0.0
        %937 = vmatprep.subr.mxu0 0.0
        %938 = vmatpush2.msra.mxu0 0.0
        %939 = vmatprep.subr.mxu0 0.0
        %940 = vmatpush2.msra.mxu0 0.0
        %941 = vmatprep.subr.mxu0 0.0
        %942 = vmatpush2.msra.mxu0 0.0
        %943 = vmatprep.subr.mxu0 0.0
        %944 = vmatpush2.msra.mxu0 0.0
        %945 = vmatprep.subr.mxu0 0.0
        %946 = vmatpush2.msra.mxu0 0.0
        %947 = vmatprep.subr.mxu0 0.0
        %948 = vmatpush2.msra.mxu0 0.0
        %949 = vmatprep.subr.mxu0 0.0
        %950 = vmatpush2.msra.mxu0 0.0
        %951 = vmatprep.subr.mxu0 0.0
        %952 = vmatpush2.msra.mxu0 0.0
        %953 = vmatprep.subr.mxu0 0.0
        %954 = vmatpush2.msra.mxu0 0.0
        %955 = vmatprep.subr.mxu0 0.0
        %956 = vmatpush2.msra.mxu0 0.0
        %957 = vmatprep.subr.mxu0 0.0
        %958 = vmatpush2.msra.mxu0 0.0
        %959 = vmatprep.subr.mxu0 0.0
        %960 = vmatpush2.msra.mxu0 0.0
        %961 = vmatprep.subr.mxu0 0.0
        %962 = vmatpush2.msra.mxu0 0.0
        %963 = vmatprep.mubr.f32.mxu0 0.0
        %964 = vmatmul.mubr.f32.gmra.mxu0 %v897
        %v965 = vpop.f32.mrf.mxu0
        %v966 = vadd.f32 %v894, %v965
        %v967 = vpop.f32.mrf.mxu0
        %968 = vdwg.mxu0
        %v969 = vadd.f32 %v966, %v531
        %v970 = vld [vmem:[%s6] sm:$0x1]
        %v971 = vld [vmem:[%s7] sm:$0x1]
        %v972 = vsel %vm543, %v969, 0.0
        %973 = vadd.xlane.f32.xlu0 %v972
        %v974 = vpop.xlane.xlu0 %973
        %v975 = vrcp.pop 32.0
        %v976 = vmul.f32 %v974, %v975
        %v977 = vsub.f32 %v969, %v976
        %v978 = vmul.f32 %v977, %v977
        %v979 = vsel %vm543, %v978, 0.0
        %980 = vadd.xlane.f32.xlu0 %v979
        %v981 = vpop.xlane.xlu0 %980
        %v982 = vmul.f32 %v981, %v975
        %v983 = vadd.f32 %v982, 1e-08
        %v984 = vrsqrt.pop %v983
        %v985 = vmul.f32 %v977, %v984
        %v987 = vlaneseq
        %v988 = vshrl.u32 %v987, 7
        %v989 = vsub.s32 0, %v988
        %v990 = vrot.slane %v970, %v989
        %v992 = vmul.f32 %v985, %v990
        %v994 = vlaneseq
        %v995 = vshrl.u32 %v994, 7
        %v996 = vsub.s32 0, %v995
        %v997 = vrot.slane %v971, %v996
        %v999 = vadd.f32 %v992, %v997
        %v1000 = vld [vmem:[%s8] sm:$0xff]
        %v1001 = vld [vmem:[%s8 + $0x8] sm:$0xff]
        %v1002 = vld [vmem:[%s8 + $0x10] sm:$0xff]
        %v1003 = vld [vmem:[%s8 + $0x18] sm:$0xff]
        %v1004 = vld [vmem:[%s9] sm:$0x1]
        %v1006 = vlaneseq
        %v1007 = vshrl.u32 %v1006, 7
        %v1008 = vsub.s32 0, %v1007
        %v1009 = vrot.slane %v1004, %v1008
        %v1012 = vsel %vm543, %v999, 0
        %1014 = vmatprep.subr.mxu0 0.0
        %1015 = vmatpush1.msra.mxu0 0.0
        %1016 = vmatprep.subr.mxu0 0.0
        %1017 = vmatpush1.msra.mxu0 0.0
        %1018 = vmatprep.subr.mxu0 0.0
        %1019 = vmatpush1.msra.mxu0 0.0
        %1020 = vmatprep.subr.mxu0 0.0
        %1021 = vmatpush1.msra.mxu0 0.0
        %1022 = vmatprep.subr.mxu0 0.0
        %1023 = vmatpush1.msra.mxu0 0.0
        %1024 = vmatprep.subr.mxu0 0.0
        %1025 = vmatpush1.msra.mxu0 0.0
        %1026 = vmatprep.subr.mxu0 0.0
        %1027 = vmatpush1.msra.mxu0 0.0
        %1028 = vmatprep.subr.mxu0 0.0
        %1029 = vmatpush1.msra.mxu0 0.0
        %1030 = vmatprep.subr.mxu0 0.0
        %1031 = vmatpush1.msra.mxu0 0.0
        %1032 = vmatprep.subr.mxu0 0.0
        %1033 = vmatpush1.msra.mxu0 0.0
        %1034 = vmatprep.subr.mxu0 0.0
        %1035 = vmatpush1.msra.mxu0 0.0
        %1036 = vmatprep.subr.mxu0 0.0
        %1037 = vmatpush1.msra.mxu0 0.0
        %1038 = vmatprep.subr.mxu0 0.0
        %1039 = vmatpush1.msra.mxu0 %v1003
        %1040 = vmatprep.subr.mxu0 0.0
        %1041 = vmatpush1.msra.mxu0 %v1002
        %1042 = vmatprep.subr.mxu0 0.0
        %1043 = vmatpush1.msra.mxu0 %v1001
        %1044 = vmatprep.subr.mxu0 0.0
        %1045 = vmatpush1.msra.mxu0 %v1000
        %1046 = vmatprep.subr.mxu0 0.0
        %1047 = vmatpush2.msra.mxu0 0.0
        %1048 = vmatprep.subr.mxu0 0.0
        %1049 = vmatpush2.msra.mxu0 0.0
        %1050 = vmatprep.subr.mxu0 0.0
        %1051 = vmatpush2.msra.mxu0 0.0
        %1052 = vmatprep.subr.mxu0 0.0
        %1053 = vmatpush2.msra.mxu0 0.0
        %1054 = vmatprep.subr.mxu0 0.0
        %1055 = vmatpush2.msra.mxu0 0.0
        %1056 = vmatprep.subr.mxu0 0.0
        %1057 = vmatpush2.msra.mxu0 0.0
        %1058 = vmatprep.subr.mxu0 0.0
        %1059 = vmatpush2.msra.mxu0 0.0
        %1060 = vmatprep.subr.mxu0 0.0
        %1061 = vmatpush2.msra.mxu0 0.0
        %1062 = vmatprep.subr.mxu0 0.0
        %1063 = vmatpush2.msra.mxu0 0.0
        %1064 = vmatprep.subr.mxu0 0.0
        %1065 = vmatpush2.msra.mxu0 0.0
        %1066 = vmatprep.subr.mxu0 0.0
        %1067 = vmatpush2.msra.mxu0 0.0
        %1068 = vmatprep.subr.mxu0 0.0
        %1069 = vmatpush2.msra.mxu0 0.0
        %1070 = vmatprep.subr.mxu0 0.0
        %1071 = vmatpush2.msra.mxu0 0.0
        %1072 = vmatprep.subr.mxu0 0.0
        %1073 = vmatpush2.msra.mxu0 0.0
        %1074 = vmatprep.subr.mxu0 0.0
        %1075 = vmatpush2.msra.mxu0 0.0
        %1076 = vmatprep.subr.mxu0 0.0
        %1077 = vmatpush2.msra.mxu0 0.0
        %1078 = vmatprep.mubr.f32.mxu0 0.0
        %1079 = vmatmul.mubr.f32.gmra.mxu0 %v1012
        %v1080 = vpop.f32.mrf.mxu0
        %v1081 = vadd.f32 %v1009, %v1080
        %v1082 = vpop.f32.mrf.mxu0
        %1083 = vdwg.mxu0
        %v1084 = vmul.f32 %v1081, 0.5
        %v1085 = vmul.f32 %v1081, 0.70710677
        %v1086 = verf.f32.pop %v1085
        %v1087 = vadd.f32 %v1086, 1.0
        %v1088 = vmul.f32 %v1084, %v1087
        %v1089 = vld [vmem:[%s10] sm:$0xff]
        %v1090 = vld [vmem:[%s10 + $0x8] sm:$0xff]
        %v1091 = vld [vmem:[%s10 + $0x10] sm:$0xff]
        %v1092 = vld [vmem:[%s10 + $0x18] sm:$0xff]
        %v1093 = vld [vmem:[%s10 + $0x20] sm:$0xff]
        %v1094 = vld [vmem:[%s10 + $0x28] sm:$0xff]
        %v1095 = vld [vmem:[%s10 + $0x30] sm:$0xff]
        %v1096 = vld [vmem:[%s10 + $0x38] sm:$0xff]
        %v1097 = vld [vmem:[%s10 + $0x40] sm:$0xff]
        %v1098 = vld [vmem:[%s10 + $0x48] sm:$0xff]
        %v1099 = vld [vmem:[%s10 + $0x50] sm:$0xff]
        %v1100 = vld [vmem:[%s10 + $0x58] sm:$0xff]
        %v1101 = vld [vmem:[%s10 + $0x60] sm:$0xff]
        %v1102 = vld [vmem:[%s10 + $0x68] sm:$0xff]
        %v1103 = vld [vmem:[%s10 + $0x70] sm:$0xff]
        %v1104 = vld [vmem:[%s10 + $0x78] sm:$0xff]
        %v1105 = vld [vmem:[%s11] sm:$0x1]
        %v1107 = vlaneseq
        %v1108 = vshrl.u32 %v1107, 7
        %v1109 = vsub.s32 0, %v1108
        %v1110 = vrot.slane %v1105, %v1109
        %1112 = vmatprep.subr.mxu0 0.0
        %1113 = vmatpush1.msra.mxu0 %v1104
        %1114 = vmatprep.subr.mxu0 0.0
        %1115 = vmatpush1.msra.mxu0 %v1103
        %1116 = vmatprep.subr.mxu0 0.0
        %1117 = vmatpush1.msra.mxu0 %v1102
        %1118 = vmatprep.subr.mxu0 0.0
        %1119 = vmatpush1.msra.mxu0 %v1101
        %1120 = vmatprep.subr.mxu0 0.0
        %1121 = vmatpush1.msra.mxu0 %v1100
        %1122 = vmatprep.subr.mxu0 0.0
        %1123 = vmatpush1.msra.mxu0 %v1099
        %1124 = vmatprep.subr.mxu0 0.0
        %1125 = vmatpush1.msra.mxu0 %v1098
        %1126 = vmatprep.subr.mxu0 0.0
        %1127 = vmatpush1.msra.mxu0 %v1097
        %1128 = vmatprep.subr.mxu0 0.0
        %1129 = vmatpush1.msra.mxu0 %v1096
        %1130 = vmatprep.subr.mxu0 0.0
        %1131 = vmatpush1.msra.mxu0 %v1095
        %1132 = vmatprep.subr.mxu0 0.0
        %1133 = vmatpush1.msra.mxu0 %v1094
        %1134 = vmatprep.subr.mxu0 0.0
        %1135 = vmatpush1.msra.mxu0 %v1093
        %1136 = vmatprep.subr.mxu0 0.0
        %1137 = vmatpush1.msra.mxu0 %v1092
        %1138 = vmatprep.subr.mxu0 0.0
        %1139 = vmatpush1.msra.mxu0 %v1091
        %1140 = vmatprep.subr.mxu0 0.0
        %1141 = vmatpush1.msra.mxu0 %v1090
        %1142 = vmatprep.subr.mxu0 0.0
        %1143 = vmatpush1.msra.mxu0 %v1089
        %1144 = vmatprep.subr.mxu0 0.0
        %1145 = vmatpush2.msra.mxu0 0.0
        %1146 = vmatprep.subr.mxu0 0.0
        %1147 = vmatpush2.msra.mxu0 0.0
        %1148 = vmatprep.subr.mxu0 0.0
        %1149 = vmatpush2.msra.mxu0 0.0
        %1150 = vmatprep.subr.mxu0 0.0
        %1151 = vmatpush2.msra.mxu0 0.0
        %1152 = vmatprep.subr.mxu0 0.0
        %1153 = vmatpush2.msra.mxu0 0.0
        %1154 = vmatprep.subr.mxu0 0.0
        %1155 = vmatpush2.msra.mxu0 0.0
        %1156 = vmatprep.subr.mxu0 0.0
        %1157 = vmatpush2.msra.mxu0 0.0
        %1158 = vmatprep.subr.mxu0 0.0
        %1159 = vmatpush2.msra.mxu0 0.0
        %1160 = vmatprep.subr.mxu0 0.0
        %1161 = vmatpush2.msra.mxu0 0.0
        %1162 = vmatprep.subr.mxu0 0.0
        %1163 = vmatpush2.msra.mxu0 0.0
        %1164 = vmatprep.subr.mxu0 0.0
        %1165 = vmatpush2.msra.mxu0 0.0
        %1166 = vmatprep.subr.mxu0 0.0
        %1167 = vmatpush2.msra.mxu0 0.0
        %1168 = vmatprep.subr.mxu0 0.0
        %1169 = vmatpush2.msra.mxu0 0.0
        %1170 = vmatprep.subr.mxu0 0.0
        %1171 = vmatpush2.msra.mxu0 0.0
        %1172 = vmatprep.subr.mxu0 0.0
        %1173 = vmatpush2.msra.mxu0 0.0
        %1174 = vmatprep.subr.mxu0 0.0
        %1175 = vmatpush2.msra.mxu0 0.0
        %1176 = vmatprep.mubr.f32.mxu0 0.0
        %1177 = vmatmul.mubr.f32.gmra.mxu0 %v1088
        %v1178 = vpop.f32.mrf.mxu0
        %v1179 = vadd.f32 %v1110, %v1178
        %v1180 = vpop.f32.mrf.mxu0
        %1181 = vdwg.mxu0
        %v1182 = vadd.f32 %v1179, %v531
        %v1183 = vld [vmem:[%s12] sm:$0x1]
        %v1184 = vld [vmem:[%s13] sm:$0x1]
        %v1185 = vsel %vm543, %v1182, 0.0
        %1186 = vadd.xlane.f32.xlu0 %v1185
        %v1187 = vpop.xlane.xlu0 %1186
        %v1188 = vmul.f32 %v1187, %v975
        %v1189 = vsub.f32 %v1182, %v1188
        %v1190 = vmul.f32 %v1189, %v1189
        %v1191 = vsel %vm543, %v1190, 0.0
        %1192 = vadd.xlane.f32.xlu0 %v1191
        %v1193 = vpop.xlane.xlu0 %1192
        %v1194 = vmul.f32 %v1193, %v975
        %v1195 = vadd.f32 %v1194, 1e-08
        %v1196 = vrsqrt.pop %v1195
        %v1197 = vmul.f32 %v1189, %v1196
        %v1199 = vlaneseq
        %v1200 = vshrl.u32 %v1199, 7
        %v1201 = vsub.s32 0, %v1200
        %v1202 = vrot.slane %v1183, %v1201
        %v1204 = vmul.f32 %v1197, %v1202
        %v1206 = vlaneseq
        %v1207 = vshrl.u32 %v1206, 7
        %v1208 = vsub.s32 0, %v1207
        %v1209 = vrot.slane %v1184, %v1208
        %v1211 = vadd.f32 %v1204, %v1209
        %v1212 = vsel %vm543, %v1211, 0.0
        %v1213 = vrot.slane %v1212, 4
        %v1214 = vadd.f32 %v1212, %v1213
        %v1215 = vrot.slane %v1214, 2
        %v1216 = vadd.f32 %v1214, %v1215
        %v1217 = vrot.slane %v1216, 1
        %v1218 = vadd.f32 %v1216, %v1217
        %v1219 = vrcp.pop 8.0
        %v1220 = vmul.f32 %v1218, %v1219
        %v1221 = vld [vmem:[#allocation2] sm:$0xff]
        %v1222 = vld [vmem:[#allocation2 + $0x8] sm:$0xff]
        %v1223 = vld [vmem:[#allocation2 + $0x10] sm:$0xff]
        %v1224 = vld [vmem:[#allocation2 + $0x18] sm:$0xff]
        %v1225 = vld [vmem:[%s15] sm:$0x1]
        %v1227 = vsel %vm543, %v1220, 0
        %1229 = vmatprep.subr.mxu0 0.0
        %1230 = vmatpush1.msra.mxu0 0.0
        %1231 = vmatprep.subr.mxu0 0.0
        %1232 = vmatpush1.msra.mxu0 0.0
        %1233 = vmatprep.subr.mxu0 0.0
        %1234 = vmatpush1.msra.mxu0 0.0
        %1235 = vmatprep.subr.mxu0 0.0
        %1236 = vmatpush1.msra.mxu0 0.0
        %1237 = vmatprep.subr.mxu0 0.0
        %1238 = vmatpush1.msra.mxu0 0.0
        %1239 = vmatprep.subr.mxu0 0.0
        %1240 = vmatpush1.msra.mxu0 0.0
        %1241 = vmatprep.subr.mxu0 0.0
        %1242 = vmatpush1.msra.mxu0 0.0
        %1243 = vmatprep.subr.mxu0 0.0
        %1244 = vmatpush1.msra.mxu0 0.0
        %1245 = vmatprep.subr.mxu0 0.0
        %1246 = vmatpush1.msra.mxu0 0.0
        %1247 = vmatprep.subr.mxu0 0.0
        %1248 = vmatpush1.msra.mxu0 0.0
        %1249 = vmatprep.subr.mxu0 0.0
        %1250 = vmatpush1.msra.mxu0 0.0
        %1251 = vmatprep.subr.mxu0 0.0
        %1252 = vmatpush1.msra.mxu0 0.0
        %1253 = vmatprep.subr.mxu0 0.0
        %1254 = vmatpush1.msra.mxu0 %v1224
        %1255 = vmatprep.subr.mxu0 0.0
        %1256 = vmatpush1.msra.mxu0 %v1223
        %1257 = vmatprep.subr.mxu0 0.0
        %1258 = vmatpush1.msra.mxu0 %v1222
        %1259 = vmatprep.subr.mxu0 0.0
        %1260 = vmatpush1.msra.mxu0 %v1221
        %1261 = vmatprep.subr.mxu0 0.0
        %1262 = vmatpush2.msra.mxu0 0.0
        %1263 = vmatprep.subr.mxu0 0.0
        %1264 = vmatpush2.msra.mxu0 0.0
        %1265 = vmatprep.subr.mxu0 0.0
        %1266 = vmatpush2.msra.mxu0 0.0
        %1267 = vmatprep.subr.mxu0 0.0
        %1268 = vmatpush2.msra.mxu0 0.0
        %1269 = vmatprep.subr.mxu0 0.0
        %1270 = vmatpush2.msra.mxu0 0.0
        %1271 = vmatprep.subr.mxu0 0.0
        %1272 = vmatpush2.msra.mxu0 0.0
        %1273 = vmatprep.subr.mxu0 0.0
        %1274 = vmatpush2.msra.mxu0 0.0
        %1275 = vmatprep.subr.mxu0 0.0
        %1276 = vmatpush2.msra.mxu0 0.0
        %1277 = vmatprep.subr.mxu0 0.0
        %1278 = vmatpush2.msra.mxu0 0.0
        %1279 = vmatprep.subr.mxu0 0.0
        %1280 = vmatpush2.msra.mxu0 0.0
        %1281 = vmatprep.subr.mxu0 0.0
        %1282 = vmatpush2.msra.mxu0 0.0
        %1283 = vmatprep.subr.mxu0 0.0
        %1284 = vmatpush2.msra.mxu0 0.0
        %1285 = vmatprep.subr.mxu0 0.0
        %1286 = vmatpush2.msra.mxu0 0.0
        %1287 = vmatprep.subr.mxu0 0.0
        %1288 = vmatpush2.msra.mxu0 0.0
        %1289 = vmatprep.subr.mxu0 0.0
        %1290 = vmatpush2.msra.mxu0 0.0
        %1291 = vmatprep.subr.mxu0 0.0
        %1292 = vmatpush2.msra.mxu0 0.0
        %1293 = vmatprep.mubr.f32.mxu0 0.0
        %1294 = vmatmul.mubr.f32.gmra.mxu0 %v1227
        %v1295 = vpop.f32.mrf.mxu0
        %v1296 = vadd.f32 %v1225, %v1295
        %v1297 = vpop.f32.mrf.mxu0
        %1298 = vdwg.mxu0
        %v1299 = vtanh.pop %v1296
        %vm1300 = vcmask 253952
        %1301 = vst.msk [vmem:[%s526] sm:$0x1] %vm1300, %v1299
        %s1302 = sand.u32 %s380, 1
        %s1303 = scalar_lea.sflag [#allocation4], %s1302
        %s1304 = sand.u32 %s380, 1
        %s1305 = scalar_lea.vmem [#allocation5], %s1304
        // Predicated region
        $region89: #{tpu_custom_call.1} parent=83 // pred_check
          %p1306 = pneg %p390
        $region90: #{tpu_custom_call.1} parent=83 // pred_check_branch
          %1308 = sbr.rel (%p1306) target = $region92
        $region91: #{tpu_custom_call.1} parent=83 // pred_region
          %s1310 = ssub.s32 16, 16
          %1311 = vsyncadd %s1303, %s1310
          %s1312 = smul.addr %s31, 16
          %s1313 = scalar_lea.hbm %s16, %s1312
          %s1315 = sshll.u32 %s1305, 4
          %s1316 = int_to_ptr.vmem [resolvable:$true] %s1315
          %1318 = dma.vmem_to_hbm [thread:$0]  %s1316, 16, %s1313, %s1303
        $region92: #{tpu_custom_call.1} parent=83 // pred_fallthru
          _
      $region84: #{tpu_custom_call.1} parent=5 // pred_fallthru
        _
      %p1319 = scmp.le.s32.totalorder 2, %s26
      // Predicated region
      $region93: #{tpu_custom_call.1} parent=5 // pred_check
        %p1320 = pneg %p1319
      $region94: #{tpu_custom_call.1} parent=5 // pred_check_branch
        %1322 = sbr.rel (%p1320) target = $region96
      $region95: #{tpu_custom_call.1} parent=5 // pred_region
        %s1323 = ssub.s32 %s26, 2
        // Predicated region
        $region97: #{tpu_custom_call.1} parent=95 // pred_check
          %p1324 = pneg %p396
        $region98: #{tpu_custom_call.1} parent=95 // pred_check_branch
          %1326 = sbr.rel (%p1324) target = $region100
        $region99: #{tpu_custom_call.1} parent=95 // pred_region
          %s1327 = sand.u32 %s381, 1
          %s1328 = scalar_lea.sflag [#allocation4], %s1327
          %s1329 = sand.u32 %s381, 1
          %s1330 = scalar_lea.vmem [#allocation5], %s1329
          %1331 = dma.done %s1328, 16
        $region100: #{tpu_custom_call.1} parent=95 // pred_fallthru
          _
      $region96: #{tpu_custom_call.1} parent=5 // pred_fallthru
        _
    $region6: #{tpu_custom_call.1} parent=1 // loop_footer
      %s30 = sadd.s32 1, %s26
    $region7: #{tpu_custom_call.1} parent=1 // loop_footer_branch
      %25 = sbr.rel target = $region3
    $region8: #{tpu_custom_call.1} parent=1 // loop_exit
      _
    %1332 = vsyncpa [#allocation3], 1
    %s1333 = scalar_lea.sflag [#allocation3], 1
    %1334 = vsyncpa %s1333, 1
    %1335 = vsyncpa [#allocation4], 1
    %s1336 = scalar_lea.sflag [#allocation4], 1
    %1337 = vsyncpa %s1336, 1

// kernel: tpu_custom_call.1
$region0: #{tpu_custom_call.1}
  #allocation0 [shape = 'u32[]', space=smem, size = 0x4, offset = 0x4, fixed_abs, tag = 'smem constant byte address 0x4 - core index']
  #allocation1 [shape = 'u32[144,128]{1,0:T(1,128)}', space=vmem, size = 0x12000, scoped, tag = 'internal scratch']
  %s0 = inlined_call_operand.vmem [shape: f32[4,8,32], index: 0, kind: input, shape index: {}]
  %s1 = inlined_call_operand.vmem [shape: f32[32,96], index: 1, kind: input, shape index: {}]
  %s2 = inlined_call_operand.vmem [shape: f32[1,96], index: 2, kind: input, shape index: {}]
  %s3 = inlined_call_operand.vmem [shape: f32[32,32], index: 3, kind: input, shape index: {}]
  %s4 = inlined_call_operand.vmem [shape: f32[32,32], index: 4, kind: input, shape index: {}]
  %s5 = inlined_call_operand.vmem [shape: f32[1,32], index: 5, kind: input, shape index: {}]
  %s6 = inlined_call_operand.vmem [shape: f32[1,32], index: 6, kind: input, shape index: {}]
  %s7 = inlined_call_operand.vmem [shape: f32[1,32], index: 7, kind: input, shape index: {}]
  %s8 = inlined_call_operand.vmem [shape: f32[32,128], index: 8, kind: input, shape index: {}]
  %s9 = inlined_call_operand.vmem [shape: f32[1,128], index: 9, kind: input, shape index: {}]
  %s10 = inlined_call_operand.vmem [shape: f32[128,32], index: 10, kind: input, shape index: {}]
  %s11 = inlined_call_operand.vmem [shape: f32[1,32], index: 11, kind: input, shape index: {}]
  %s12 = inlined_call_operand.vmem [shape: f32[1,32], index: 12, kind: input, shape index: {}]
  %s13 = inlined_call_operand.vmem [shape: f32[1,32], index: 13, kind: input, shape index: {}]
  %s14 = inlined_call_operand.hbm [shape: f32[32,32], index: 14, kind: input, shape index: {}]
  %s15 = inlined_call_operand.vmem [shape: f32[1,32], index: 15, kind: input, shape index: {}]
  %s16 = inlined_call_operand.hbm [shape: f32[4,1,32], index: 16, kind: output, shape index: {}]
  %s17 = sld [smem:[#allocation0]]
  $region101: #{tpu_custom_call.1} parent=0
    _
  %s19 = ssub.s32 1, %s17
  %s20 = scalar_select 0, %s19, %s17
  $region1: #{tpu_custom_call.1} parent=0
    #allocation2 [shape = 'u8[16384]{0}', space=vmem, size = 0x4000, scoped, tag = 'input window, operand 14, single buffered']
    #allocation3 [shape = 's32[2]{0}', space=sflag, size = 0x8, scoped, tag = 'scoped memory for tpu_custom_call.1']
    #allocation4 [shape = 's32[2]{0}', space=sflag, size = 0x8, scoped, tag = 'scoped memory for tpu_custom_call.1']
    #allocation5 [shape = 'u8[1024]{0}', space=vmem, size = 0x400, scoped, tag = 'output window, operand 0']
    %21 = vsyncpa [#allocation3], 0
    %22 = vsyncpa [#allocation4], 0
    %s23 = scalar_lea.sflag [#allocation4], 1
    %24 = vsyncpa %s23, 0
    loop: start=0, step=1, limit=6
    $region2: #{tpu_custom_call.1} parent=1 // loop_pre_header
      _
    $region3: #{tpu_custom_call.1} parent=1 // loop_header
      %s26 = sphi 0, %s30
      %p27 = scmp.ge.s32.totalorder %s26, 6
      %s36 = sphi 0, %s38
      %s39 = sphi 0, %s36
      %s40 = sphi 0, %s39
      %s56 = sphi 0, %s40
      %s60 = sphi 0, %s60
      %s62 = sphi 0, %s60
      %s63 = sphi 0, %s62
      %s77 = sphi 0, %s63
      %s81 = sphi 0, %s81
      %s83 = sphi 0, %s81
      %s84 = sphi 0, %s83
      %s98 = sphi 0, %s84
      %s102 = sphi 0, %s102
      %s104 = sphi 0, %s102
      %s105 = sphi 0, %s104
      %s119 = sphi 0, %s105
      %s123 = sphi 0, %s123
      %s125 = sphi 0, %s123
      %s126 = sphi 0, %s125
      %s140 = sphi 0, %s126
      %s144 = sphi 0, %s144
      %s146 = sphi 0, %s144
      %s147 = sphi 0, %s146
      %s161 = sphi 0, %s147
      %s165 = sphi 0, %s165
      %s167 = sphi 0, %s165
      %s168 = sphi 0, %s167
      %s182 = sphi 0, %s168
      %s186 = sphi 0, %s186
      %s188 = sphi 0, %s186
      %s189 = sphi 0, %s188
      %s203 = sphi 0, %s189
      %s207 = sphi 0, %s207
      %s209 = sphi 0, %s207
      %s210 = sphi 0, %s209
      %s224 = sphi 0, %s210
      %s228 = sphi 0, %s228
      %s230 = sphi 0, %s228
      %s231 = sphi 0, %s230
      %s245 = sphi 0, %s231
      %s249 = sphi 0, %s249
      %s251 = sphi 0, %s249
      %s252 = sphi 0, %s251
      %s266 = sphi 0, %s252
      %s270 = sphi 0, %s270
      %s272 = sphi 0, %s270
      %s273 = sphi 0, %s272
      %s287 = sphi 0, %s273
      %s291 = sphi 0, %s291
      %s293 = sphi 0, %s291
      %s294 = sphi 0, %s293
      %s308 = sphi 0, %s294
      %s312 = sphi 0, %s312
      %s314 = sphi 0, %s312
      %s315 = sphi 0, %s314
      %s329 = sphi 0, %s315
      %s333 = sphi 0, %s333
      %s335 = sphi 0, %s333
      %s336 = sphi 0, %s335
      %s350 = sphi 0, %s336
      %s354 = sphi 0, %s354
      %s356 = sphi 0, %s354
      %s357 = sphi 0, %s356
      %s371 = sphi 0, %s357
      %s377 = sphi 0, %s379
      %s380 = sphi 0, %s377
      %s381 = sphi 0, %s380
      %s397 = sphi 0, %s381
    $region4: #{tpu_custom_call.1} parent=1 // loop_header_branch
      %29 = sbr.rel (%p27) target = $region8
    $region5: #{tpu_custom_call.1} parent=1 // loop_body
      %s31 = ssub.s32 %s26, 1
      %s32 = ssub.s32 %s26, 2
      %s33 = sadd.s32 %s26, 1
      %s34 = ssub.s32 %s26, %s33
      %p35 = scmp.eq.s32.totalorder %s34, 0
      %s37 = sadd.s32 %s36, 1
      %s38 = scalar_select %p35, %s36, %s37
      %p41 = pneg %p35
      %p42 = scmp.eq.s32.totalorder %s26, 3
      %p43 = por %p41, %p42
      %p44 = scmp.ne.s32.totalorder %s36, %s39
      %p45 = scmp.eq.s32.totalorder %s26, 0
      %p46 = por %p44, %p45
      %p47 = scmp.ne.s32.totalorder %s36, %s39
      %p48 = scmp.eq.s32.totalorder %s31, 3
      %p49 = por %p47, %p48
      %p50 = scmp.ne.s32.totalorder %s39, %s40
      %p51 = scmp.eq.s32.totalorder %s31, 0
      %p52 = por %p50, %p51
      %p53 = scmp.ne.s32.totalorder %s39, %s40
      %p54 = scmp.eq.s32.totalorder %s32, 3
      %p55 = por %p53, %p54
      %p57 = scmp.ne.s32.totalorder %s40, %s56
      %p58 = scmp.eq.s32.totalorder %s32, 0
      %p59 = por %p57, %p58
      %s61 = sadd.s32 %s60, 1
      %p64 = scmp.eq.s32.totalorder %s26, 3
      %p65 = scmp.ne.s32.totalorder %s60, %s62
      %p66 = scmp.eq.s32.totalorder %s26, 0
      %p67 = por %p65, %p66
      %p68 = scmp.ne.s32.totalorder %s60, %s62
      %p69 = scmp.eq.s32.totalorder %s31, 3
      %p70 = por %p68, %p69
      %p71 = scmp.ne.s32.totalorder %s62, %s63
      %p72 = scmp.eq.s32.totalorder %s31, 0
      %p73 = por %p71, %p72
      %p74 = scmp.ne.s32.totalorder %s62, %s63
      %p75 = scmp.eq.s32.totalorder %s32, 3
      %p76 = por %p74, %p75
      %p78 = scmp.ne.s32.totalorder %s63, %s77
      %p79 = scmp.eq.s32.totalorder %s32, 0
      %p80 = por %p78, %p79
      %s82 = sadd.s32 %s81, 1
      %p85 = scmp.eq.s32.totalorder %s26, 3
      %p86 = scmp.ne.s32.totalorder %s81, %s83
      %p87 = scmp.eq.s32.totalorder %s26, 0
      %p88 = por %p86, %p87
      %p89 = scmp.ne.s32.totalorder %s81, %s83
      %p90 = scmp.eq.s32.totalorder %s31, 3
      %p91 = por %p89, %p90
      %p92 = scmp.ne.s32.totalorder %s83, %s84
      %p93 = scmp.eq.s32.totalorder %s31, 0
      %p94 = por %p92, %p93
      %p95 = scmp.ne.s32.totalorder %s83, %s84
      %p96 = scmp.eq.s32.totalorder %s32, 3
      %p97 = por %p95, %p96
      %p99 = scmp.ne.s32.totalorder %s84, %s98
      %p100 = scmp.eq.s32.totalorder %s32, 0
      %p101 = por %p99, %p100
      %s103 = sadd.s32 %s102, 1
      %p106 = scmp.eq.s32.totalorder %s26, 3
      %p107 = scmp.ne.s32.totalorder %s102, %s104
      %p108 = scmp.eq.s32.totalorder %s26, 0
      %p109 = por %p107, %p108
      %p110 = scmp.ne.s32.totalorder %s102, %s104
      %p111 = scmp.eq.s32.totalorder %s31, 3
      %p112 = por %p110, %p111
      %p113 = scmp.ne.s32.totalorder %s104, %s105
      %p114 = scmp.eq.s32.totalorder %s31, 0
      %p115 = por %p113, %p114
      %p116 = scmp.ne.s32.totalorder %s104, %s105
      %p117 = scmp.eq.s32.totalorder %s32, 3
      %p118 = por %p116, %p117
      %p120 = scmp.ne.s32.totalorder %s105, %s119
      %p121 = scmp.eq.s32.totalorder %s32, 0
      %p122 = por %p120, %p121
      %s124 = sadd.s32 %s123, 1
      %p127 = scmp.eq.s32.totalorder %s26, 3
      %p128 = scmp.ne.s32.totalorder %s123, %s125
      %p129 = scmp.eq.s32.totalorder %s26, 0
      %p130 = por %p128, %p129
      %p131 = scmp.ne.s32.totalorder %s123, %s125
      %p132 = scmp.eq.s32.totalorder %s31, 3
      %p133 = por %p131, %p132
      %p134 = scmp.ne.s32.totalorder %s125, %s126
      %p135 = scmp.eq.s32.totalorder %s31, 0
      %p136 = por %p134, %p135
      %p137 = scmp.ne.s32.totalorder %s125, %s126
      %p138 = scmp.eq.s32.totalorder %s32, 3
      %p139 = por %p137, %p138
      %p141 = scmp.ne.s32.totalorder %s126, %s140
      %p142 = scmp.eq.s32.totalorder %s32, 0
      %p143 = por %p141, %p142
      %s145 = sadd.s32 %s144, 1
      %p148 = scmp.eq.s32.totalorder %s26, 3
      %p149 = scmp.ne.s32.totalorder %s144, %s146
      %p150 = scmp.eq.s32.totalorder %s26, 0
      %p151 = por %p149, %p150
      %p152 = scmp.ne.s32.totalorder %s144, %s146
      %p153 = scmp.eq.s32.totalorder %s31, 3
      %p154 = por %p152, %p153
      %p155 = scmp.ne.s32.totalorder %s146, %s147
      %p156 = scmp.eq.s32.totalorder %s31, 0
      %p157 = por %p155, %p156
      %p158 = scmp.ne.s32.totalorder %s146, %s147
      %p159 = scmp.eq.s32.totalorder %s32, 3
      %p160 = por %p158, %p159
      %p162 = scmp.ne.s32.totalorder %s147, %s161
      %p163 = scmp.eq.s32.totalorder %s32, 0
      %p164 = por %p162, %p163
      %s166 = sadd.s32 %s165, 1
      %p169 = scmp.eq.s32.totalorder %s26, 3
      %p170 = scmp.ne.s32.totalorder %s165, %s167
      %p171 = scmp.eq.s32.totalorder %s26, 0
      %p172 = por %p170, %p171
      %p173 = scmp.ne.s32.totalorder %s165, %s167
      %p174 = scmp.eq.s32.totalorder %s31, 3
      %p175 = por %p173, %p174
      %p176 = scmp.ne.s32.totalorder %s167, %s168
      %p177 = scmp.eq.s32.totalorder %s31, 0
      %p178 = por %p176, %p177
      %p179 = scmp.ne.s32.totalorder %s167, %s168
      %p180 = scmp.eq.s32.totalorder %s32, 3
      %p181 = por %p179, %p180
      %p183 = scmp.ne.s32.totalorder %s168, %s182
      %p184 = scmp.eq.s32.totalorder %s32, 0
      %p185 = por %p183, %p184
      %s187 = sadd.s32 %s186, 1
      %p190 = scmp.eq.s32.totalorder %s26, 3
      %p191 = scmp.ne.s32.totalorder %s186, %s188
      %p192 = scmp.eq.s32.totalorder %s26, 0
      %p193 = por %p191, %p192
      %p194 = scmp.ne.s32.totalorder %s186, %s188
      %p195 = scmp.eq.s32.totalorder %s31, 3
      %p196 = por %p194, %p195
      %p197 = scmp.ne.s32.totalorder %s188, %s189
      %p198 = scmp.eq.s32.totalorder %s31, 0
      %p199 = por %p197, %p198
      %p200 = scmp.ne.s32.totalorder %s188, %s189
      %p201 = scmp.eq.s32.totalorder %s32, 3
      %p202 = por %p200, %p201
      %p204 = scmp.ne.s32.totalorder %s189, %s203
      %p205 = scmp.eq.s32.totalorder %s32, 0
      %p206 = por %p204, %p205
      %s208 = sadd.s32 %s207, 1
      %p211 = scmp.eq.s32.totalorder %s26, 3
      %p212 = scmp.ne.s32.totalorder %s207, %s209
      %p213 = scmp.eq.s32.totalorder %s26, 0
      %p214 = por %p212, %p213
      %p215 = scmp.ne.s32.totalorder %s207, %s209
      %p216 = scmp.eq.s32.totalorder %s31, 3
      %p217 = por %p215, %p216
      %p218 = scmp.ne.s32.totalorder %s209, %s210
      %p219 = scmp.eq.s32.totalorder %s31, 0
      %p220 = por %p218, %p219
      %p221 = scmp.ne.s32.totalorder %s209, %s210
      %p222 = scmp.eq.s32.totalorder %s32, 3
      %p223 = por %p221, %p222
      %p225 = scmp.ne.s32.totalorder %s210, %s224
      %p226 = scmp.eq.s32.totalorder %s32, 0
      %p227 = por %p225, %p226
      %s229 = sadd.s32 %s228, 1
      %p232 = scmp.eq.s32.totalorder %s26, 3
      %p233 = scmp.ne.s32.totalorder %s228, %s230
      %p234 = scmp.eq.s32.totalorder %s26, 0
      %p235 = por %p233, %p234
      %p236 = scmp.ne.s32.totalorder %s228, %s230
      %p237 = scmp.eq.s32.totalorder %s31, 3
      %p238 = por %p236, %p237
      %p239 = scmp.ne.s32.totalorder %s230, %s231
      %p240 = scmp.eq.s32.totalorder %s31, 0
      %p241 = por %p239, %p240
      %p242 = scmp.ne.s32.totalorder %s230, %s231
      %p243 = scmp.eq.s32.totalorder %s32, 3
      %p244 = por %p242, %p243
      %p246 = scmp.ne.s32.totalorder %s231, %s245
      %p247 = scmp.eq.s32.totalorder %s32, 0
      %p248 = por %p246, %p247
      %s250 = sadd.s32 %s249, 1
      %p253 = scmp.eq.s32.totalorder %s26, 3
      %p254 = scmp.ne.s32.totalorder %s249, %s251
      %p255 = scmp.eq.s32.totalorder %s26, 0
      %p256 = por %p254, %p255
      %p257 = scmp.ne.s32.totalorder %s249, %s251
      %p258 = scmp.eq.s32.totalorder %s31, 3
      %p259 = por %p257, %p258
      %p260 = scmp.ne.s32.totalorder %s251, %s252
      %p261 = scmp.eq.s32.totalorder %s31, 0
      %p262 = por %p260, %p261
      %p263 = scmp.ne.s32.totalorder %s251, %s252
      %p264 = scmp.eq.s32.totalorder %s32, 3
      %p265 = por %p263, %p264
      %p267 = scmp.ne.s32.totalorder %s252, %s266
      %p268 = scmp.eq.s32.totalorder %s32, 0
      %p269 = por %p267, %p268
      %s271 = sadd.s32 %s270, 1
      %p274 = scmp.eq.s32.totalorder %s26, 3
      %p275 = scmp.ne.s32.totalorder %s270, %s272
      %p276 = scmp.eq.s32.totalorder %s26, 0
      %p277 = por %p275, %p276
      %p278 = scmp.ne.s32.totalorder %s270, %s272
      %p279 = scmp.eq.s32.totalorder %s31, 3
      %p280 = por %p278, %p279
      %p281 = scmp.ne.s32.totalorder %s272, %s273
      %p282 = scmp.eq.s32.totalorder %s31, 0
      %p283 = por %p281, %p282
      %p284 = scmp.ne.s32.totalorder %s272, %s273
      %p285 = scmp.eq.s32.totalorder %s32, 3
      %p286 = por %p284, %p285
      %p288 = scmp.ne.s32.totalorder %s273, %s287
      %p289 = scmp.eq.s32.totalorder %s32, 0
      %p290 = por %p288, %p289
      %s292 = sadd.s32 %s291, 1
      %p295 = scmp.eq.s32.totalorder %s26, 3
      %p296 = scmp.ne.s32.totalorder %s291, %s293
      %p297 = scmp.eq.s32.totalorder %s26, 0
      %p298 = por %p296, %p297
      %p299 = scmp.ne.s32.totalorder %s291, %s293
      %p300 = scmp.eq.s32.totalorder %s31, 3
      %p301 = por %p299, %p300
      %p302 = scmp.ne.s32.totalorder %s293, %s294
      %p303 = scmp.eq.s32.totalorder %s31, 0
      %p304 = por %p302, %p303
      %p305 = scmp.ne.s32.totalorder %s293, %s294
      %p306 = scmp.eq.s32.totalorder %s32, 3
      %p307 = por %p305, %p306
      %p309 = scmp.ne.s32.totalorder %s294, %s308
      %p310 = scmp.eq.s32.totalorder %s32, 0
      %p311 = por %p309, %p310
      %s313 = sadd.s32 %s312, 1
      %p316 = scmp.eq.s32.totalorder %s26, 3
      %p317 = scmp.ne.s32.totalorder %s312, %s314
      %p318 = scmp.eq.s32.totalorder %s26, 0
      %p319 = por %p317, %p318
      %p320 = scmp.ne.s32.totalorder %s312, %s314
      %p321 = scmp.eq.s32.totalorder %s31, 3
      %p322 = por %p320, %p321
      %p323 = scmp.ne.s32.totalorder %s314, %s315
      %p324 = scmp.eq.s32.totalorder %s31, 0
      %p325 = por %p323, %p324
      %p326 = scmp.ne.s32.totalorder %s314, %s315
      %p327 = scmp.eq.s32.totalorder %s32, 3
      %p328 = por %p326, %p327
      %p330 = scmp.ne.s32.totalorder %s315, %s329
      %p331 = scmp.eq.s32.totalorder %s32, 0
      %p332 = por %p330, %p331
      %s334 = sadd.s32 %s333, 1
      %p337 = scmp.eq.s32.totalorder %s26, 3
      %p338 = scmp.ne.s32.totalorder %s333, %s335
      %p339 = scmp.eq.s32.totalorder %s26, 0
      %p340 = por %p338, %p339
      %p341 = scmp.ne.s32.totalorder %s333, %s335
      %p342 = scmp.eq.s32.totalorder %s31, 3
      %p343 = por %p341, %p342
      %p344 = scmp.ne.s32.totalorder %s335, %s336
      %p345 = scmp.eq.s32.totalorder %s31, 0
      %p346 = por %p344, %p345
      %p347 = scmp.ne.s32.totalorder %s335, %s336
      %p348 = scmp.eq.s32.totalorder %s32, 3
      %p349 = por %p347, %p348
      %p351 = scmp.ne.s32.totalorder %s336, %s350
      %p352 = scmp.eq.s32.totalorder %s32, 0
      %p353 = por %p351, %p352
      %s355 = sadd.s32 %s354, 1
      %p358 = scmp.eq.s32.totalorder %s26, 3
      %p359 = scmp.ne.s32.totalorder %s354, %s356
      %p360 = scmp.eq.s32.totalorder %s26, 0
      %p361 = por %p359, %p360
      %p362 = scmp.ne.s32.totalorder %s354, %s356
      %p363 = scmp.eq.s32.totalorder %s31, 3
      %p364 = por %p362, %p363
      %p365 = scmp.ne.s32.totalorder %s356, %s357
      %p366 = scmp.eq.s32.totalorder %s31, 0
      %p367 = por %p365, %p366
      %p368 = scmp.ne.s32.totalorder %s356, %s357
      %p369 = scmp.eq.s32.totalorder %s32, 3
      %p370 = por %p368, %p369
      %p372 = scmp.ne.s32.totalorder %s357, %s371
      %p373 = scmp.eq.s32.totalorder %s32, 0
      %p374 = por %p372, %p373
      %s375 = ssub.s32 %s26, %s33
      %p376 = scmp.eq.s32.totalorder %s375, 0
      %s378 = sadd.s32 %s377, 1
      %s379 = scalar_select %p376, %s377, %s378
      %p382 = pneg %p376
      %p383 = scmp.eq.s32.totalorder %s26, 3
      %p384 = por %p382, %p383
      %p385 = scmp.ne.s32.totalorder %s377, %s380
      %p386 = scmp.eq.s32.totalorder %s26, 0
      %p387 = por %p385, %p386
      %p388 = scmp.ne.s32.totalorder %s377, %s380
      %p389 = scmp.eq.s32.totalorder %s31, 3
      %p390 = por %p388, %p389
      %p391 = scmp.ne.s32.totalorder %s380, %s381
      %p392 = scmp.eq.s32.totalorder %s31, 0
      %p393 = por %p391, %p392
      %p394 = scmp.ne.s32.totalorder %s380, %s381
      %p395 = scmp.eq.s32.totalorder %s32, 3
      %p396 = por %p394, %p395
      %p398 = scmp.ne.s32.totalorder %s381, %s397
      %p399 = scmp.eq.s32.totalorder %s32, 0
      %p400 = por %p398, %p399
      %p401 = scmp.le.s32.totalorder 1, %s26
      %p402 = scmp.lt.s32.totalorder %s26, 5
      %p403 = pnand %p401, %p402
      %p404 = pneg %p403
      // Predicated region
      $region9: #{tpu_custom_call.1} parent=5 // pred_check
        _
      $region10: #{tpu_custom_call.1} parent=5 // pred_check_branch
        %406 = sbr.rel (%p403) target = $region12
      $region11: #{tpu_custom_call.1} parent=5 // pred_region
        %s407 = ssub.s32 %s26, 1
        // Predicated region
        $region13: #{tpu_custom_call.1} parent=11 // pred_check
          %p408 = pneg %p73
        $region14: #{tpu_custom_call.1} parent=11 // pred_check_branch
          %410 = sbr.rel (%p408) target = $region16
        $region15: #{tpu_custom_call.1} parent=11 // pred_region
          _
        $region16: #{tpu_custom_call.1} parent=11 // pred_fallthru
          _
        // Predicated region
        $region17: #{tpu_custom_call.1} parent=11 // pred_check
          %p411 = pneg %p94
        $region18: #{tpu_custom_call.1} parent=11 // pred_check_branch
          %413 = sbr.rel (%p411) target = $region20
        $region19: #{tpu_custom_call.1} parent=11 // pred_region
          _
        $region20: #{tpu_custom_call.1} parent=11 // pred_fallthru
          _
        // Predicated region
        $region21: #{tpu_custom_call.1} parent=11 // pred_check
          %p414 = pneg %p115
        $region22: #{tpu_custom_call.1} parent=11 // pred_check_branch
          %416 = sbr.rel (%p414) target = $region24
        $region23: #{tpu_custom_call.1} parent=11 // pred_region
          _
        $region24: #{tpu_custom_call.1} parent=11 // pred_fallthru
          _
        // Predicated region
        $region25: #{tpu_custom_call.1} parent=11 // pred_check
          %p417 = pneg %p136
        $region26: #{tpu_custom_call.1} parent=11 // pred_check_branch
          %419 = sbr.rel (%p417) target = $region28
        $region27: #{tpu_custom_call.1} parent=11 // pred_region
          _
        $region28: #{tpu_custom_call.1} parent=11 // pred_fallthru
          _
        // Predicated region
        $region29: #{tpu_custom_call.1} parent=11 // pred_check
          %p420 = pneg %p157
        $region30: #{tpu_custom_call.1} parent=11 // pred_check_branch
          %422 = sbr.rel (%p420) target = $region32
        $region31: #{tpu_custom_call.1} parent=11 // pred_region
          _
        $region32: #{tpu_custom_call.1} parent=11 // pred_fallthru
          _
        // Predicated region
        $region33: #{tpu_custom_call.1} parent=11 // pred_check
          %p423 = pneg %p178
        $region34: #{tpu_custom_call.1} parent=11 // pred_check_branch
          %425 = sbr.rel (%p423) target = $region36
        $region35: #{tpu_custom_call.1} parent=11 // pred_region
          _
        $region36: #{tpu_custom_call.1} parent=11 // pred_fallthru
          _
        // Predicated region
        $region37: #{tpu_custom_call.1} parent=11 // pred_check
          %p426 = pneg %p199
        $region38: #{tpu_custom_call.1} parent=11 // pred_check_branch
          %428 = sbr.rel (%p426) target = $region40
        $region39: #{tpu_custom_call.1} parent=11 // pred_region
          _
        $region40: #{tpu_custom_call.1} parent=11 // pred_fallthru
          _
        // Predicated region
        $region41: #{tpu_custom_call.1} parent=11 // pred_check
          %p429 = pneg %p220
        $region42: #{tpu_custom_call.1} parent=11 // pred_check_branch
          %431 = sbr.rel (%p429) target = $region44
        $region43: #{tpu_custom_call.1} parent=11 // pred_region
          _
        $region44: #{tpu_custom_call.1} parent=11 // pred_fallthru
          _
        // Predicated region
        $region45: #{tpu_custom_call.1} parent=11 // pred_check
          %p432 = pneg %p241
        $region46: #{tpu_custom_call.1} parent=11 // pred_check_branch
          %434 = sbr.rel (%p432) target = $region48
        $region47: #{tpu_custom_call.1} parent=11 // pred_region
          _
        $region48: #{tpu_custom_call.1} parent=11 // pred_fallthru
          _
        // Predicated region
        $region49: #{tpu_custom_call.1} parent=11 // pred_check
          %p435 = pneg %p262
        $region50: #{tpu_custom_call.1} parent=11 // pred_check_branch
          %437 = sbr.rel (%p435) target = $region52
        $region51: #{tpu_custom_call.1} parent=11 // pred_region
          _
        $region52: #{tpu_custom_call.1} parent=11 // pred_fallthru
          _
        // Predicated region
        $region53: #{tpu_custom_call.1} parent=11 // pred_check
          %p438 = pneg %p283
        $region54: #{tpu_custom_call.1} parent=11 // pred_check_branch
          %440 = sbr.rel (%p438) target = $region56
        $region55: #{tpu_custom_call.1} parent=11 // pred_region
          _
        $region56: #{tpu_custom_call.1} parent=11 // pred_fallthru
          _
        // Predicated region
        $region57: #{tpu_custom_call.1} parent=11 // pred_check
          %p441 = pneg %p304
        $region58: #{tpu_custom_call.1} parent=11 // pred_check_branch
          %443 = sbr.rel (%p441) target = $region60
        $region59: #{tpu_custom_call.1} parent=11 // pred_region
          _
        $region60: #{tpu_custom_call.1} parent=11 // pred_fallthru
          _
        // Predicated region
        $region61: #{tpu_custom_call.1} parent=11 // pred_check
          %p444 = pneg %p325
        $region62: #{tpu_custom_call.1} parent=11 // pred_check_branch
          %446 = sbr.rel (%p444) target = $region64
        $region63: #{tpu_custom_call.1} parent=11 // pred_region
          _
        $region64: #{tpu_custom_call.1} parent=11 // pred_fallthru
          _
        // Predicated region
        $region65: #{tpu_custom_call.1} parent=11 // pred_check
          %p447 = pneg %p346
        $region66: #{tpu_custom_call.1} parent=11 // pred_check_branch
          %449 = sbr.rel (%p447) target = $region68
        $region67: #{tpu_custom_call.1} parent=11 // pred_region
          %s451 = ssub.s32 512, 512
          %452 = vsyncadd [#allocation3], %s451
          %s453 = sshll.u32 [#allocation2], 4
          %s454 = int_to_ptr.vmem [resolvable:$true] %s453
          %459 = dma.hbm_to_vmem [thread:$0]  %s14, 512, %s454, [#allocation3], 128, 128, 8
        $region68: #{tpu_custom_call.1} parent=11 // pred_fallthru
          _
        // Predicated region
        $region69: #{tpu_custom_call.1} parent=11 // pred_check
          %p460 = pneg %p367
        $region70: #{tpu_custom_call.1} parent=11 // pred_check_branch
          %462 = sbr.rel (%p460) target = $region72
        $region71: #{tpu_custom_call.1} parent=11 // pred_region
          _
        $region72: #{tpu_custom_call.1} parent=11 // pred_fallthru
          _
      $region12: #{tpu_custom_call.1} parent=5 // pred_fallthru
        _
      %p463 = scmp.lt.s32.totalorder %s26, 4
      // Predicated region
      $region73: #{tpu_custom_call.1} parent=5 // pred_check
        %p464 = pneg %p463
      $region74: #{tpu_custom_call.1} parent=5 // pred_check_branch
        %466 = sbr.rel (%p464) target = $region76
      $region75: #{tpu_custom_call.1} parent=5 // pred_region
        // Predicated region
        $region77: #{tpu_custom_call.1} parent=75 // pred_check
          %p467 = pneg %p46
        $region78: #{tpu_custom_call.1} parent=75 // pred_check_branch
          %469 = sbr.rel (%p467) target = $region80
        $region79: #{tpu_custom_call.1} parent=75 // pred_region
          %p470 = scmp.lt.s32.totalorder %s26, 3
          %s471 = scalar_select %p470, %s26, 3
          %s472 = smul.addr %s471, 8
          %s473 = scalar_lea.vmem %s0, %s472
        $region80: #{tpu_custom_call.1} parent=75 // pred_fallthru
          _
      $region76: #{tpu_custom_call.1} parent=5 // pred_fallthru
        _
      %p474 = scmp.le.s32.totalorder 1, %s26
      %p475 = scmp.lt.s32.totalorder %s26, 5
      %p476 = pnand %p474, %p475
      %p477 = pneg %p476
      // Predicated region
      $region81: #{tpu_custom_call.1} parent=5 // pred_check
        _
      $region82: #{tpu_custom_call.1} parent=5 // pred_check_branch
        %479 = sbr.rel (%p476) target = $region84
      $region83: #{tpu_custom_call.1} parent=5 // pred_region
        %s480 = ssub.s32 %s26, 1
        // Predicated region
        $region85: #{tpu_custom_call.1} parent=83 // pred_check
          %p481 = pneg %p346
        $region86: #{tpu_custom_call.1} parent=83 // pred_check_branch
          %483 = sbr.rel (%p481) target = $region88
        $region87: #{tpu_custom_call.1} parent=83 // pred_region
          %484 = dma.done [#allocation3], 512
        $region88: #{tpu_custom_call.1} parent=83 // pred_fallthru
          _
        %p485 = scmp.lt.s32.totalorder %s31, 3
        %s486 = scalar_select %p485, %s31, 3
        %s487 = smul.addr %s486, 8
        %s488 = scalar_lea.vmem %s0, %s487
        %p489 = pneg %p52
        %p490 = pneg %p49
        %p491 = pneg %p73
        %p492 = pneg %p70
        %p493 = pneg %p94
        %p494 = pneg %p91
        %p495 = pneg %p115
        %p496 = pneg %p112
        %p497 = pneg %p136
        %p498 = pneg %p133
        %p499 = pneg %p157
        %p500 = pneg %p154
        %p501 = pneg %p178
        %p502 = pneg %p175
        %p503 = pneg %p199
        %p504 = pneg %p196
        %p505 = pneg %p220
        %p506 = pneg %p217
        %p507 = pneg %p241
        %p508 = pneg %p238
        %p509 = pneg %p262
        %p510 = pneg %p259
        %p511 = pneg %p283
        %p512 = pneg %p280
        %p513 = pneg %p304
        %p514 = pneg %p301
        %p515 = pneg %p325
        %p516 = pneg %p322
        %p517 = pneg %p346
        %p518 = pneg %p343
        %p519 = pneg %p367
        %p520 = pneg %p364
        %p521 = pneg %p393
        %p522 = pneg %p390
        %s523 = sand.u32 %s380, 1
        %s524 = scalar_lea.sflag [#allocation4], %s523
        %s525 = sand.u32 %s380, 1
        %s526 = scalar_lea.vmem [#allocation5], %s525
        %p527 = scmp.lt.s32.totalorder %s31, 3
        %s528 = scalar_select %p527, %s31, 3
        %s529 = smul.addr %s528, 8
        %s530 = scalar_lea.vmem %s0, %s529
        %v531 = vld [vmem:[%s530] sm:$0xff]
        %v532 = vld [vmem:[%s1] sm:$0xff]
        %v533 = vld [vmem:[%s1 + $0x8] sm:$0xff]
        %v534 = vld [vmem:[%s1 + $0x10] sm:$0xff]
        %v535 = vld [vmem:[%s1 + $0x18] sm:$0xff]
        %v536 = vld [vmem:[%s2] sm:$0x1]
        %v538 = vlaneseq
        %v539 = vshrl.u32 %v538, 7
        %v540 = vsub.s32 0, %v539
        %v541 = vrot.slane %v536, %v540
        %vm543 = vcmask 261120
        %v545 = vsel %vm543, %v531, 0
        %547 = vmatprep.subr.mxu0 0.0
        %548 = vmatpush1.msra.mxu0 0.0
        %549 = vmatprep.subr.mxu0 0.0
        %550 = vmatpush1.msra.mxu0 0.0
        %551 = vmatprep.subr.mxu0 0.0
        %552 = vmatpush1.msra.mxu0 0.0
        %553 = vmatprep.subr.mxu0 0.0
        %554 = vmatpush1.msra.mxu0 0.0
        %555 = vmatprep.subr.mxu0 0.0
        %556 = vmatpush1.msra.mxu0 0.0
        %557 = vmatprep.subr.mxu0 0.0
        %558 = vmatpush1.msra.mxu0 0.0
        %559 = vmatprep.subr.mxu0 0.0
        %560 = vmatpush1.msra.mxu0 0.0
        %561 = vmatprep.subr.mxu0 0.0
        %562 = vmatpush1.msra.mxu0 0.0
        %563 = vmatprep.subr.mxu0 0.0
        %564 = vmatpush1.msra.mxu0 0.0
        %565 = vmatprep.subr.mxu0 0.0
        %566 = vmatpush1.msra.mxu0 0.0
        %567 = vmatprep.subr.mxu0 0.0
        %568 = vmatpush1.msra.mxu0 0.0
        %569 = vmatprep.subr.mxu0 0.0
        %570 = vmatpush1.msra.mxu0 0.0
        %571 = vmatprep.subr.mxu0 0.0
        %572 = vmatpush1.msra.mxu0 %v535
        %573 = vmatprep.subr.mxu0 0.0
        %574 = vmatpush1.msra.mxu0 %v534
        %575 = vmatprep.subr.mxu0 0.0
        %576 = vmatpush1.msra.mxu0 %v533
        %577 = vmatprep.subr.mxu0 0.0
        %578 = vmatpush1.msra.mxu0 %v532
        %579 = vmatprep.subr.mxu0 0.0
        %580 = vmatpush2.msra.mxu0 0.0
        %581 = vmatprep.subr.mxu0 0.0
        %582 = vmatpush2.msra.mxu0 0.0
        %583 = vmatprep.subr.mxu0 0.0
        %584 = vmatpush2.msra.mxu0 0.0
        %585 = vmatprep.subr.mxu0 0.0
        %586 = vmatpush2.msra.mxu0 0.0
        %587 = vmatprep.subr.mxu0 0.0
        %588 = vmatpush2.msra.mxu0 0.0
        %589 = vmatprep.subr.mxu0 0.0
        %590 = vmatpush2.msra.mxu0 0.0
        %591 = vmatprep.subr.mxu0 0.0
        %592 = vmatpush2.msra.mxu0 0.0
        %593 = vmatprep.subr.mxu0 0.0
        %594 = vmatpush2.msra.mxu0 0.0
        %595 = vmatprep.subr.mxu0 0.0
        %596 = vmatpush2.msra.mxu0 0.0
        %597 = vmatprep.subr.mxu0 0.0
        %598 = vmatpush2.msra.mxu0 0.0
        %599 = vmatprep.subr.mxu0 0.0
        %600 = vmatpush2.msra.mxu0 0.0
        %601 = vmatprep.subr.mxu0 0.0
        %602 = vmatpush2.msra.mxu0 0.0
        %603 = vmatprep.subr.mxu0 0.0
        %604 = vmatpush2.msra.mxu0 0.0
        %605 = vmatprep.subr.mxu0 0.0
        %606 = vmatpush2.msra.mxu0 0.0
        %607 = vmatprep.subr.mxu0 0.0
        %608 = vmatpush2.msra.mxu0 0.0
        %609 = vmatprep.subr.mxu0 0.0
        %610 = vmatpush2.msra.mxu0 0.0
        %611 = vmatprep.mubr.f32.mxu0 0.0
        %612 = vmatmul.mubr.f32.gmra.mxu0 %v545
        %v613 = vpop.f32.mrf.mxu0
        %v614 = vadd.f32 %v541, %v613
        %v615 = vpop.f32.mrf.mxu0
        %616 = vdwg.mxu0
        %v617 = vld [vmem:[%s3] sm:$0xff]
        %v618 = vld [vmem:[%s3 + $0x8] sm:$0xff]
        %v619 = vld [vmem:[%s3 + $0x10] sm:$0xff]
        %v620 = vld [vmem:[%s3 + $0x18] sm:$0xff]
        %621 = vxpose.xlu0.b32.start [1/16] %v614, 128
        %622 = vxpose.xlu0.b32.cont [2/16] 0.0, 128
        %623 = vxpose.xlu0.b32.cont [3/16] 0.0, 128
        %624 = vxpose.xlu0.b32.cont [4/16] 0.0, 128
        %625 = vxpose.xlu0.b32.cont [5/16] 0.0, 128
        %626 = vxpose.xlu0.b32.cont [6/16] 0.0, 128
        %627 = vxpose.xlu0.b32.cont [7/16] 0.0, 128
        %628 = vxpose.xlu0.b32.cont [8/16] 0.0, 128
        %629 = vxpose.xlu0.b32.cont [9/16] 0.0, 128
        %630 = vxpose.xlu0.b32.cont [10/16] 0.0, 128
        %631 = vxpose.xlu0.b32.cont [11/16] 0.0, 128
        %632 = vxpose.xlu0.b32.cont [12/16] 0.0, 128
        %633 = vxpose.xlu0.b32.cont [13/16] 0.0, 128
        %634 = vxpose.xlu0.b32.cont [14/16] 0.0, 128
        %635 = vxpose.xlu0.b32.cont [15/16] 0.0, 128
        %636 = vxpose.xlu0.b32.end [16/16] 0.0, 128
        %v637 = vpop.trf.xlu0
        %v638 = vpop.trf.xlu0
        %v639 = vpop.trf.xlu0
        %v640 = vpop.trf.xlu0
        %v641 = vpop.trf.xlu0
        %v642 = vpop.trf.xlu0
        %v643 = vpop.trf.xlu0
        %v644 = vpop.trf.xlu0
        %v645 = vpop.trf.xlu0
        %v646 = vpop.trf.xlu0
        %v647 = vpop.trf.xlu0
        %v648 = vpop.trf.xlu0
        %v649 = vpop.trf.xlu0
        %v650 = vpop.trf.xlu0
        %v651 = vpop.trf.xlu0
        %v652 = vpop.trf.xlu0
        %654 = vrot.lane.b32.xlu0 %v614, 96
        %v655 = vpop.permute.xlu0 %654
        %vm657 = vcmask 64512
        %v659 = vsel %vm657, %v637, 0
        %v662 = vsel %vm657, %v638, 0
        %v665 = vsel %vm657, %v639, 0
        %v668 = vsel %vm657, %v640, 0
        %670 = vmatprep.subr.mxu0 0.0
        %671 = vmatpush1.msra.mxu0 0.0
        %672 = vmatprep.subr.mxu0 0.0
        %673 = vmatpush1.msra.mxu0 0.0
        %674 = vmatprep.subr.mxu0 0.0
        %675 = vmatpush1.msra.mxu0 0.0
        %676 = vmatprep.subr.mxu0 0.0
        %677 = vmatpush1.msra.mxu0 0.0
        %678 = vmatprep.subr.mxu0 0.0
        %679 = vmatpush1.msra.mxu0 0.0
        %680 = vmatprep.subr.mxu0 0.0
        %681 = vmatpush1.msra.mxu0 0.0
        %682 = vmatprep.subr.mxu0 0.0
        %683 = vmatpush1.msra.mxu0 0.0
        %684 = vmatprep.subr.mxu0 0.0
        %685 = vmatpush1.msra.mxu0 0.0
        %686 = vmatprep.subr.mxu0 0.0
        %687 = vmatpush1.msra.mxu0 0.0
        %688 = vmatprep.subr.mxu0 0.0
        %689 = vmatpush1.msra.mxu0 0.0
        %690 = vmatprep.subr.mxu0 0.0
        %691 = vmatpush1.msra.mxu0 0.0
        %692 = vmatprep.subr.mxu0 0.0
        %693 = vmatpush1.msra.mxu0 0.0
        %694 = vmatprep.subr.mxu0 0.0
        %695 = vmatpush1.msra.mxu0 0.0
        %696 = vmatprep.subr.mxu0 0.0
        %697 = vmatpush1.msra.mxu0 0.0
        %698 = vmatprep.subr.mxu0 0.0
        %699 = vmatpush1.msra.mxu0 0.0
        %700 = vmatprep.subr.mxu0 0.0
        %701 = vmatpush1.msra.mxu0 %v655
        %702 = vmatprep.subr.mxu0 0.0
        %703 = vmatpush2.msra.mxu0 0.0
        %704 = vmatprep.subr.mxu0 0.0
        %705 = vmatpush2.msra.mxu0 0.0
        %706 = vmatprep.subr.mxu0 0.0
        %707 = vmatpush2.msra.mxu0 0.0
        %708 = vmatprep.subr.mxu0 0.0
        %709 = vmatpush2.msra.mxu0 0.0
        %710 = vmatprep.subr.mxu0 0.0
        %711 = vmatpush2.msra.mxu0 0.0
        %712 = vmatprep.subr.mxu0 0.0
        %713 = vmatpush2.msra.mxu0 0.0
        %714 = vmatprep.subr.mxu0 0.0
        %715 = vmatpush2.msra.mxu0 0.0
        %716 = vmatprep.subr.mxu0 0.0
        %717 = vmatpush2.msra.mxu0 0.0
        %718 = vmatprep.subr.mxu0 0.0
        %719 = vmatpush2.msra.mxu0 0.0
        %720 = vmatprep.subr.mxu0 0.0
        %721 = vmatpush2.msra.mxu0 0.0
        %722 = vmatprep.subr.mxu0 0.0
        %723 = vmatpush2.msra.mxu0 0.0
        %724 = vmatprep.subr.mxu0 0.0
        %725 = vmatpush2.msra.mxu0 0.0
        %726 = vmatprep.subr.mxu0 0.0
        %727 = vmatpush2.msra.mxu0 0.0
        %728 = vmatprep.subr.mxu0 0.0
        %729 = vmatpush2.msra.mxu0 0.0
        %730 = vmatprep.subr.mxu0 0.0
        %731 = vmatpush2.msra.mxu0 0.0
        %732 = vmatprep.subr.mxu0 0.0
        %733 = vmatpush2.msra.mxu0 0.0
        %734 = vmatprep.mubr.f32.mxu0 0.0
        %735 = vmatmul.mubr.f32.gmra.mxu0 %v659
        %v736 = vpop.f32.mrf.mxu0
        %v737 = vadd.f32 %v617, %v736
        %v738 = vpop.f32.mrf.mxu0
        %739 = vmatprep.mubr.f32.mxu0 0.0
        %740 = vmatmul.mubr.f32.gmra.mxu0 %v662
        %v741 = vpop.f32.mrf.mxu0
        %v742 = vadd.f32 %v618, %v741
        %v743 = vpop.f32.mrf.mxu0
        %744 = vmatprep.mubr.f32.mxu0 0.0
        %745 = vmatmul.mubr.f32.gmra.mxu0 %v665
        %v746 = vpop.f32.mrf.mxu0
        %v747 = vadd.f32 %v619, %v746
        %v748 = vpop.f32.mrf.mxu0
        %749 = vmatprep.mubr.f32.mxu0 0.0
        %750 = vmatmul.mubr.f32.gmra.mxu0 %v668
        %v751 = vpop.f32.mrf.mxu0
        %v752 = vadd.f32 %v620, %v751
        %v753 = vpop.f32.mrf.mxu0
        %754 = vdwg.mxu0
        %v755 = vsel %vm543, %v737, -inf
        %756 = vmax.xlane.f32.xlu0 %v755
        %v757 = vpop.xlane.xlu0 %756
        %v758 = vsel %vm543, %v742, -inf
        %759 = vmax.xlane.f32.xlu0 %v758
        %v760 = vpop.xlane.xlu0 %759
        %v761 = vsel %vm543, %v747, -inf
        %762 = vmax.xlane.f32.xlu0 %v761
        %v763 = vpop.xlane.xlu0 %762
        %v764 = vsel %vm543, %v752, -inf
        %765 = vmax.xlane.f32.xlu0 %v764
        %v766 = vpop.xlane.xlu0 %765
        %v767 = vsub.f32 %v737, %v757
        %v768 = vsub.f32 %v742, %v760
        %v769 = vsub.f32 %v747, %v763
        %v770 = vsub.f32 %v752, %v766
        %v771 = vmul.f32 %v767, 1.442695
        %v772 = vpow.pop %v771
        %v773 = vmul.f32 %v768, 1.442695
        %v774 = vpow.pop %v773
        %v775 = vmul.f32 %v769, 1.442695
        %v776 = vpow.pop %v775
        %v777 = vmul.f32 %v770, 1.442695
        %v778 = vpow.pop %v777
        %v779 = vsel %vm543, %v772, 0.0
        %780 = vadd.xlane.f32.xlu0 %v779
        %v781 = vpop.xlane.xlu0 %780
        %v782 = vsel %vm543, %v774, 0.0
        %783 = vadd.xlane.f32.xlu0 %v782
        %v784 = vpop.xlane.xlu0 %783
        %v785 = vsel %vm543, %v776, 0.0
        %786 = vadd.xlane.f32.xlu0 %v785
        %v787 = vpop.xlane.xlu0 %786
        %v788 = vsel %vm543, %v778, 0.0
        %789 = vadd.xlane.f32.xlu0 %v788
        %v790 = vpop.xlane.xlu0 %789
        %v791 = vrcp.pop %v781
        %v792 = vrcp.pop %v784
        %v793 = vrcp.pop %v787
        %v794 = vrcp.pop %v790
        %v795 = vmul.f32 %v772, %v791
        %v796 = vmul.f32 %v774, %v792
        %v797 = vmul.f32 %v776, %v793
        %v798 = vmul.f32 %v778, %v794
        %799 = vrot.lane.b32.xlu0 %v614, 64
        %v800 = vpop.permute.xlu0 %799
        %v801 = vsel %vm543, %v800, 0
        %v804 = vsel %vm543, %v795, 0
        %v807 = vsel %vm543, %v796, 0
        %v810 = vsel %vm543, %v797, 0
        %v813 = vsel %vm543, %v798, 0
        %815 = vmatprep.subr.mxu0 0.0
        %816 = vmatpush1.xpose.msra.mxu0 0.0
        %817 = vmatprep.subr.mxu0 0.0
        %818 = vmatpush1.xpose.msra.mxu0 0.0
        %819 = vmatprep.subr.mxu0 0.0
        %820 = vmatpush1.xpose.msra.mxu0 0.0
        %821 = vmatprep.subr.mxu0 0.0
        %822 = vmatpush1.xpose.msra.mxu0 0.0
        %823 = vmatprep.subr.mxu0 0.0
        %824 = vmatpush1.xpose.msra.mxu0 0.0
        %825 = vmatprep.subr.mxu0 0.0
        %826 = vmatpush1.xpose.msra.mxu0 0.0
        %827 = vmatprep.subr.mxu0 0.0
        %828 = vmatpush1.xpose.msra.mxu0 0.0
        %829 = vmatprep.subr.mxu0 0.0
        %830 = vmatpush1.xpose.msra.mxu0 0.0
        %831 = vmatprep.subr.mxu0 0.0
        %832 = vmatpush1.xpose.msra.mxu0 0.0
        %833 = vmatprep.subr.mxu0 0.0
        %834 = vmatpush1.xpose.msra.mxu0 0.0
        %835 = vmatprep.subr.mxu0 0.0
        %836 = vmatpush1.xpose.msra.mxu0 0.0
        %837 = vmatprep.subr.mxu0 0.0
        %838 = vmatpush1.xpose.msra.mxu0 0.0
        %839 = vmatprep.subr.mxu0 0.0
        %840 = vmatpush1.xpose.msra.mxu0 %v813
        %841 = vmatprep.subr.mxu0 0.0
        %842 = vmatpush1.xpose.msra.mxu0 %v810
        %843 = vmatprep.subr.mxu0 0.0
        %844 = vmatpush1.xpose.msra.mxu0 %v807
        %845 = vmatprep.subr.mxu0 0.0
        %846 = vmatpush1.xpose.msra.mxu0 %v804
        %847 = vmatprep.subr.mxu0 0.0
        %848 = vmatpush2.xpose.msra.mxu0 0.0
        %849 = vmatprep.subr.mxu0 0.0
        %850 = vmatpush2.xpose.msra.mxu0 0.0
        %851 = vmatprep.subr.mxu0 0.0
        %852 = vmatpush2.xpose.msra.mxu0 0.0
        %853 = vmatprep.subr.mxu0 0.0
        %854 = vmatpush2.xpose.msra.mxu0 0.0
        %855 = vmatprep.subr.mxu0 0.0
        %856 = vmatpush2.xpose.msra.mxu0 0.0
        %857 = vmatprep.subr.mxu0 0.0
        %858 = vmatpush2.xpose.msra.mxu0 0.0
        %859 = vmatprep.subr.mxu0 0.0
        %860 = vmatpush2.xpose.msra.mxu0 0.0
        %861 = vmatprep.subr.mxu0 0.0
        %862 = vmatpush2.xpose.msra.mxu0 0.0
        %863 = vmatprep.subr.mxu0 0.0
        %864 = vmatpush2.xpose.msra.mxu0 0.0
        %865 = vmatprep.subr.mxu0 0.0
        %866 = vmatpush2.xpose.msra.mxu0 0.0
        %867 = vmatprep.subr.mxu0 0.0
        %868 = vmatpush2.xpose.msra.mxu0 0.0
        %869 = vmatprep.subr.mxu0 0.0
        %870 = vmatpush2.xpose.msra.mxu0 0.0
        %871 = vmatprep.subr.mxu0 0.0
        %872 = vmatpush2.xpose.msra.mxu0 0.0
        %873 = vmatprep.subr.mxu0 0.0
        %874 = vmatpush2.xpose.msra.mxu0 0.0
        %875 = vmatprep.subr.mxu0 0.0
        %876 = vmatpush2.xpose.msra.mxu0 0.0
        %877 = vmatprep.subr.mxu0 0.0
        %878 = vmatpush2.xpose.msra.mxu0 0.0
        %879 = vmatprep.mubr.f32.mxu0 0.0
        %880 = vmatmul.mubr.f32.gmra.mxu0 %v801
        %v881 = vpop.f32.mrf.mxu0
        %v882 = vadd.f32 0.0, %v881
        %v883 = vpop.f32.mrf.mxu0
        %884 = vdwg.mxu0
        %v885 = vld [vmem:[%s4] sm:$0xff]
        %v886 = vld [vmem:[%s4 + $0x8] sm:$0xff]
        %v887 = vld [vmem:[%s4 + $0x10] sm:$0xff]
        %v888 = vld [vmem:[%s4 + $0x18] sm:$0xff]
        %v889 = vld [vmem:[%s5] sm:$0x1]
        %v891 = vlaneseq
        %v892 = vshrl.u32 %v891, 7
        %v893 = vsub.s32 0, %v892
        %v894 = vrot.slane %v889, %v893
        %v897 = vsel %vm543, %v882, 0
        %899 = vmatprep.subr.mxu0 0.0
        %900 = vmatpush1.msra.mxu0 0.0
        %901 = vmatprep.subr.mxu0 0.0
        %902 = vmatpush1.msra.mxu0 0.0
        %903 = vmatprep.subr.mxu0 0.0
        %904 = vmatpush1.msra.mxu0 0.0
        %905 = vmatprep.subr.mxu0 0.0
        %906 = vmatpush1.msra.mxu0 0.0
        %907 = vmatprep.subr.mxu0 0.0
        %908 = vmatpush1.msra.mxu0 0.0
        %909 = vmatprep.subr.mxu0 0.0
        %910 = vmatpush1.msra.mxu0 0.0
        %911 = vmatprep.subr.mxu0 0.0
        %912 = vmatpush1.msra.mxu0 0.0
        %913 = vmatprep.subr.mxu0 0.0
        %914 = vmatpush1.msra.mxu0 0.0
        %915 = vmatprep.subr.mxu0 0.0
        %916 = vmatpush1.msra.mxu0 0.0
        %917 = vmatprep.subr.mxu0 0.0
        %918 = vmatpush1.msra.mxu0 0.0
        %919 = vmatprep.subr.mxu0 0.0
        %920 = vmatpush1.msra.mxu0 0.0
        %921 = vmatprep.subr.mxu0 0.0
        %922 = vmatpush1.msra.mxu0 0.0
        %923 = vmatprep.subr.mxu0 0.0
        %924 = vmatpush1.msra.mxu0 %v888
        %925 = vmatprep.subr.mxu0 0.0
        %926 = vmatpush1.msra.mxu0 %v887
        %927 = vmatprep.subr.mxu0 0.0
        %928 = vmatpush1.msra.mxu0 %v886
        %929 = vmatprep.subr.mxu0 0.0
        %930 = vmatpush1.msra.mxu0 %v885
        %931 = vmatprep.subr.mxu0 0.0
        %932 = vmatpush2.msra.mxu0 0.0
        %933 = vmatprep.subr.mxu0 0.0
        %934 = vmatpush2.msra.mxu0 0.0
        %935 = vmatprep.subr.mxu0 0.0
        %936 = vmatpush2.msra.mxu0 0.0
        %937 = vmatprep.subr.mxu0 0.0
        %938 = vmatpush2.msra.mxu0 0.0
        %939 = vmatprep.subr.mxu0 0.0
        %940 = vmatpush2.msra.mxu0 0.0
        %941 = vmatprep.subr.mxu0 0.0
        %942 = vmatpush2.msra.mxu0 0.0
        %943 = vmatprep.subr.mxu0 0.0
        %944 = vmatpush2.msra.mxu0 0.0
        %945 = vmatprep.subr.mxu0 0.0
        %946 = vmatpush2.msra.mxu0 0.0
        %947 = vmatprep.subr.mxu0 0.0
        %948 = vmatpush2.msra.mxu0 0.0
        %949 = vmatprep.subr.mxu0 0.0
        %950 = vmatpush2.msra.mxu0 0.0
        %951 = vmatprep.subr.mxu0 0.0
        %952 = vmatpush2.msra.mxu0 0.0
        %953 = vmatprep.subr.mxu0 0.0
        %954 = vmatpush2.msra.mxu0 0.0
        %955 = vmatprep.subr.mxu0 0.0
        %956 = vmatpush2.msra.mxu0 0.0
        %957 = vmatprep.subr.mxu0 0.0
        %958 = vmatpush2.msra.mxu0 0.0
        %959 = vmatprep.subr.mxu0 0.0
        %960 = vmatpush2.msra.mxu0 0.0
        %961 = vmatprep.subr.mxu0 0.0
        %962 = vmatpush2.msra.mxu0 0.0
        %963 = vmatprep.mubr.f32.mxu0 0.0
        %964 = vmatmul.mubr.f32.gmra.mxu0 %v897
        %v965 = vpop.f32.mrf.mxu0
        %v966 = vadd.f32 %v894, %v965
        %v967 = vpop.f32.mrf.mxu0
        %968 = vdwg.mxu0
        %v969 = vadd.f32 %v966, %v531
        %v970 = vld [vmem:[%s6] sm:$0x1]
        %v971 = vld [vmem:[%s7] sm:$0x1]
        %v972 = vsel %vm543, %v969, 0.0
        %973 = vadd.xlane.f32.xlu0 %v972
        %v974 = vpop.xlane.xlu0 %973
        %v975 = vrcp.pop 32.0
        %v976 = vmul.f32 %v974, %v975
        %v977 = vsub.f32 %v969, %v976
        %v978 = vmul.f32 %v977, %v977
        %v979 = vsel %vm543, %v978, 0.0
        %980 = vadd.xlane.f32.xlu0 %v979
        %v981 = vpop.xlane.xlu0 %980
        %v982 = vmul.f32 %v981, %v975
        %v983 = vadd.f32 %v982, 1e-08
        %v984 = vrsqrt.pop %v983
        %v985 = vmul.f32 %v977, %v984
        %v987 = vlaneseq
        %v988 = vshrl.u32 %v987, 7
        %v989 = vsub.s32 0, %v988
        %v990 = vrot.slane %v970, %v989
        %v992 = vmul.f32 %v985, %v990
        %v994 = vlaneseq
        %v995 = vshrl.u32 %v994, 7
        %v996 = vsub.s32 0, %v995
        %v997 = vrot.slane %v971, %v996
        %v999 = vadd.f32 %v992, %v997
        %v1000 = vld [vmem:[%s8] sm:$0xff]
        %v1001 = vld [vmem:[%s8 + $0x8] sm:$0xff]
        %v1002 = vld [vmem:[%s8 + $0x10] sm:$0xff]
        %v1003 = vld [vmem:[%s8 + $0x18] sm:$0xff]
        %v1004 = vld [vmem:[%s9] sm:$0x1]
        %v1006 = vlaneseq
        %v1007 = vshrl.u32 %v1006, 7
        %v1008 = vsub.s32 0, %v1007
        %v1009 = vrot.slane %v1004, %v1008
        %v1012 = vsel %vm543, %v999, 0
        %1014 = vmatprep.subr.mxu0 0.0
        %1015 = vmatpush1.msra.mxu0 0.0
        %1016 = vmatprep.subr.mxu0 0.0
        %1017 = vmatpush1.msra.mxu0 0.0
        %1018 = vmatprep.subr.mxu0 0.0
        %1019 = vmatpush1.msra.mxu0 0.0
        %1020 = vmatprep.subr.mxu0 0.0
        %1021 = vmatpush1.msra.mxu0 0.0
        %1022 = vmatprep.subr.mxu0 0.0
        %1023 = vmatpush1.msra.mxu0 0.0
        %1024 = vmatprep.subr.mxu0 0.0
        %1025 = vmatpush1.msra.mxu0 0.0
        %1026 = vmatprep.subr.mxu0 0.0
        %1027 = vmatpush1.msra.mxu0 0.0
        %1028 = vmatprep.subr.mxu0 0.0
        %1029 = vmatpush1.msra.mxu0 0.0
        %1030 = vmatprep.subr.mxu0 0.0
        %1031 = vmatpush1.msra.mxu0 0.0
        %1032 = vmatprep.subr.mxu0 0.0
        %1033 = vmatpush1.msra.mxu0 0.0
        %1034 = vmatprep.subr.mxu0 0.0
        %1035 = vmatpush1.msra.mxu0 0.0
        %1036 = vmatprep.subr.mxu0 0.0
        %1037 = vmatpush1.msra.mxu0 0.0
        %1038 = vmatprep.subr.mxu0 0.0
        %1039 = vmatpush1.msra.mxu0 %v1003
        %1040 = vmatprep.subr.mxu0 0.0
        %1041 = vmatpush1.msra.mxu0 %v1002
        %1042 = vmatprep.subr.mxu0 0.0
        %1043 = vmatpush1.msra.mxu0 %v1001
        %1044 = vmatprep.subr.mxu0 0.0
        %1045 = vmatpush1.msra.mxu0 %v1000
        %1046 = vmatprep.subr.mxu0 0.0
        %1047 = vmatpush2.msra.mxu0 0.0
        %1048 = vmatprep.subr.mxu0 0.0
        %1049 = vmatpush2.msra.mxu0 0.0
        %1050 = vmatprep.subr.mxu0 0.0
        %1051 = vmatpush2.msra.mxu0 0.0
        %1052 = vmatprep.subr.mxu0 0.0
        %1053 = vmatpush2.msra.mxu0 0.0
        %1054 = vmatprep.subr.mxu0 0.0
        %1055 = vmatpush2.msra.mxu0 0.0
        %1056 = vmatprep.subr.mxu0 0.0
        %1057 = vmatpush2.msra.mxu0 0.0
        %1058 = vmatprep.subr.mxu0 0.0
        %1059 = vmatpush2.msra.mxu0 0.0
        %1060 = vmatprep.subr.mxu0 0.0
        %1061 = vmatpush2.msra.mxu0 0.0
        %1062 = vmatprep.subr.mxu0 0.0
        %1063 = vmatpush2.msra.mxu0 0.0
        %1064 = vmatprep.subr.mxu0 0.0
        %1065 = vmatpush2.msra.mxu0 0.0
        %1066 = vmatprep.subr.mxu0 0.0
        %1067 = vmatpush2.msra.mxu0 0.0
        %1068 = vmatprep.subr.mxu0 0.0
        %1069 = vmatpush2.msra.mxu0 0.0
        %1070 = vmatprep.subr.mxu0 0.0
        %1071 = vmatpush2.msra.mxu0 0.0
        %1072 = vmatprep.subr.mxu0 0.0
        %1073 = vmatpush2.msra.mxu0 0.0
        %1074 = vmatprep.subr.mxu0 0.0
        %1075 = vmatpush2.msra.mxu0 0.0
        %1076 = vmatprep.subr.mxu0 0.0
        %1077 = vmatpush2.msra.mxu0 0.0
        %1078 = vmatprep.mubr.f32.mxu0 0.0
        %1079 = vmatmul.mubr.f32.gmra.mxu0 %v1012
        %v1080 = vpop.f32.mrf.mxu0
        %v1081 = vadd.f32 %v1009, %v1080
        %v1082 = vpop.f32.mrf.mxu0
        %1083 = vdwg.mxu0
        %v1084 = vmul.f32 %v1081, 0.5
        %v1085 = vmul.f32 %v1081, 0.70710677
        %v1086 = verf.f32.pop %v1085
        %v1087 = vadd.f32 %v1086, 1.0
        %v1088 = vmul.f32 %v1084, %v1087
        %v1089 = vld [vmem:[%s10] sm:$0xff]
        %v1090 = vld [vmem:[%s10 + $0x8] sm:$0xff]
        %v1091 = vld [vmem:[%s10 + $0x10] sm:$0xff]
        %v1092 = vld [vmem:[%s10 + $0x18] sm:$0xff]
        %v1093 = vld [vmem:[%s10 + $0x20] sm:$0xff]
        %v1094 = vld [vmem:[%s10 + $0x28] sm:$0xff]
        %v1095 = vld [vmem:[%s10 + $0x30] sm:$0xff]
        %v1096 = vld [vmem:[%s10 + $0x38] sm:$0xff]
        %v1097 = vld [vmem:[%s10 + $0x40] sm:$0xff]
        %v1098 = vld [vmem:[%s10 + $0x48] sm:$0xff]
        %v1099 = vld [vmem:[%s10 + $0x50] sm:$0xff]
        %v1100 = vld [vmem:[%s10 + $0x58] sm:$0xff]
        %v1101 = vld [vmem:[%s10 + $0x60] sm:$0xff]
        %v1102 = vld [vmem:[%s10 + $0x68] sm:$0xff]
        %v1103 = vld [vmem:[%s10 + $0x70] sm:$0xff]
        %v1104 = vld [vmem:[%s10 + $0x78] sm:$0xff]
        %v1105 = vld [vmem:[%s11] sm:$0x1]
        %v1107 = vlaneseq
        %v1108 = vshrl.u32 %v1107, 7
        %v1109 = vsub.s32 0, %v1108
        %v1110 = vrot.slane %v1105, %v1109
        %1112 = vmatprep.subr.mxu0 0.0
        %1113 = vmatpush1.msra.mxu0 %v1104
        %1114 = vmatprep.subr.mxu0 0.0
        %1115 = vmatpush1.msra.mxu0 %v1103
        %1116 = vmatprep.subr.mxu0 0.0
        %1117 = vmatpush1.msra.mxu0 %v1102
        %1118 = vmatprep.subr.mxu0 0.0
        %1119 = vmatpush1.msra.mxu0 %v1101
        %1120 = vmatprep.subr.mxu0 0.0
        %1121 = vmatpush1.msra.mxu0 %v1100
        %1122 = vmatprep.subr.mxu0 0.0
        %1123 = vmatpush1.msra.mxu0 %v1099
        %1124 = vmatprep.subr.mxu0 0.0
        %1125 = vmatpush1.msra.mxu0 %v1098
        %1126 = vmatprep.subr.mxu0 0.0
        %1127 = vmatpush1.msra.mxu0 %v1097
        %1128 = vmatprep.subr.mxu0 0.0
        %1129 = vmatpush1.msra.mxu0 %v1096
        %1130 = vmatprep.subr.mxu0 0.0
        %1131 = vmatpush1.msra.mxu0 %v1095
        %1132 = vmatprep.subr.mxu0 0.0
        %1133 = vmatpush1.msra.mxu0 %v1094
        %1134 = vmatprep.subr.mxu0 0.0
        %1135 = vmatpush1.msra.mxu0 %v1093
        %1136 = vmatprep.subr.mxu0 0.0
        %1137 = vmatpush1.msra.mxu0 %v1092
        %1138 = vmatprep.subr.mxu0 0.0
        %1139 = vmatpush1.msra.mxu0 %v1091
        %1140 = vmatprep.subr.mxu0 0.0
        %1141 = vmatpush1.msra.mxu0 %v1090
        %1142 = vmatprep.subr.mxu0 0.0
        %1143 = vmatpush1.msra.mxu0 %v1089
        %1144 = vmatprep.subr.mxu0 0.0
        %1145 = vmatpush2.msra.mxu0 0.0
        %1146 = vmatprep.subr.mxu0 0.0
        %1147 = vmatpush2.msra.mxu0 0.0
        %1148 = vmatprep.subr.mxu0 0.0
        %1149 = vmatpush2.msra.mxu0 0.0
        %1150 = vmatprep.subr.mxu0 0.0
        %1151 = vmatpush2.msra.mxu0 0.0
        %1152 = vmatprep.subr.mxu0 0.0
        %1153 = vmatpush2.msra.mxu0 0.0
        %1154 = vmatprep.subr.mxu0 0.0
        %1155 = vmatpush2.msra.mxu0 0.0
        %1156 = vmatprep.subr.mxu0 0.0
        %1157 = vmatpush2.msra.mxu0 0.0
        %1158 = vmatprep.subr.mxu0 0.0
        %1159 = vmatpush2.msra.mxu0 0.0
        %1160 = vmatprep.subr.mxu0 0.0
        %1161 = vmatpush2.msra.mxu0 0.0
        %1162 = vmatprep.subr.mxu0 0.0
        %1163 = vmatpush2.msra.mxu0 0.0
        %1164 = vmatprep.subr.mxu0 0.0
        %1165 = vmatpush2.msra.mxu0 0.0
        %1166 = vmatprep.subr.mxu0 0.0
        %1167 = vmatpush2.msra.mxu0 0.0
        %1168 = vmatprep.subr.mxu0 0.0
        %1169 = vmatpush2.msra.mxu0 0.0
        %1170 = vmatprep.subr.mxu0 0.0
        %1171 = vmatpush2.msra.mxu0 0.0
        %1172 = vmatprep.subr.mxu0 0.0
        %1173 = vmatpush2.msra.mxu0 0.0
        %1174 = vmatprep.subr.mxu0 0.0
        %1175 = vmatpush2.msra.mxu0 0.0
        %1176 = vmatprep.mubr.f32.mxu0 0.0
        %1177 = vmatmul.mubr.f32.gmra.mxu0 %v1088
        %v1178 = vpop.f32.mrf.mxu0
        %v1179 = vadd.f32 %v1110, %v1178
        %v1180 = vpop.f32.mrf.mxu0
        %1181 = vdwg.mxu0
        %v1182 = vadd.f32 %v1179, %v531
        %v1183 = vld [vmem:[%s12] sm:$0x1]
        %v1184 = vld [vmem:[%s13] sm:$0x1]
        %v1185 = vsel %vm543, %v1182, 0.0
        %1186 = vadd.xlane.f32.xlu0 %v1185
        %v1187 = vpop.xlane.xlu0 %1186
        %v1188 = vmul.f32 %v1187, %v975
        %v1189 = vsub.f32 %v1182, %v1188
        %v1190 = vmul.f32 %v1189, %v1189
        %v1191 = vsel %vm543, %v1190, 0.0
        %1192 = vadd.xlane.f32.xlu0 %v1191
        %v1193 = vpop.xlane.xlu0 %1192
        %v1194 = vmul.f32 %v1193, %v975
        %v1195 = vadd.f32 %v1194, 1e-08
        %v1196 = vrsqrt.pop %v1195
        %v1197 = vmul.f32 %v1189, %v1196
        %v1199 = vlaneseq
        %v1200 = vshrl.u32 %v1199, 7
        %v1201 = vsub.s32 0, %v1200
        %v1202 = vrot.slane %v1183, %v1201
        %v1204 = vmul.f32 %v1197, %v1202
        %v1206 = vlaneseq
        %v1207 = vshrl.u32 %v1206, 7
        %v1208 = vsub.s32 0, %v1207
        %v1209 = vrot.slane %v1184, %v1208
        %v1211 = vadd.f32 %v1204, %v1209
        %v1212 = vsel %vm543, %v1211, 0.0
        %v1213 = vrot.slane %v1212, 4
        %v1214 = vadd.f32 %v1212, %v1213
        %v1215 = vrot.slane %v1214, 2
        %v1216 = vadd.f32 %v1214, %v1215
        %v1217 = vrot.slane %v1216, 1
        %v1218 = vadd.f32 %v1216, %v1217
        %v1219 = vrcp.pop 8.0
        %v1220 = vmul.f32 %v1218, %v1219
        %v1221 = vld [vmem:[#allocation2] sm:$0xff]
        %v1222 = vld [vmem:[#allocation2 + $0x8] sm:$0xff]
        %v1223 = vld [vmem:[#allocation2 + $0x10] sm:$0xff]
        %v1224 = vld [vmem:[#allocation2 + $0x18] sm:$0xff]
        %v1225 = vld [vmem:[%s15] sm:$0x1]
        %v1227 = vsel %vm543, %v1220, 0
        %1229 = vmatprep.subr.mxu0 0.0
        %1230 = vmatpush1.msra.mxu0 0.0
        %1231 = vmatprep.subr.mxu0 0.0
        %1232 = vmatpush1.msra.mxu0 0.0
        %1233 = vmatprep.subr.mxu0 0.0
        %1234 = vmatpush1.msra.mxu0 0.0
        %1235 = vmatprep.subr.mxu0 0.0
        %1236 = vmatpush1.msra.mxu0 0.0
        %1237 = vmatprep.subr.mxu0 0.0
        %1238 = vmatpush1.msra.mxu0 0.0
        %1239 = vmatprep.subr.mxu0 0.0
        %1240 = vmatpush1.msra.mxu0 0.0
        %1241 = vmatprep.subr.mxu0 0.0
        %1242 = vmatpush1.msra.mxu0 0.0
        %1243 = vmatprep.subr.mxu0 0.0
        %1244 = vmatpush1.msra.mxu0 0.0
        %1245 = vmatprep.subr.mxu0 0.0
        %1246 = vmatpush1.msra.mxu0 0.0
        %1247 = vmatprep.subr.mxu0 0.0
        %1248 = vmatpush1.msra.mxu0 0.0
        %1249 = vmatprep.subr.mxu0 0.0
        %1250 = vmatpush1.msra.mxu0 0.0
        %1251 = vmatprep.subr.mxu0 0.0
        %1252 = vmatpush1.msra.mxu0 0.0
        %1253 = vmatprep.subr.mxu0 0.0
        %1254 = vmatpush1.msra.mxu0 %v1224
        %1255 = vmatprep.subr.mxu0 0.0
        %1256 = vmatpush1.msra.mxu0 %v1223
        %1257 = vmatprep.subr.mxu0 0.0
        %1258 = vmatpush1.msra.mxu0 %v1222
        %1259 = vmatprep.subr.mxu0 0.0
        %1260 = vmatpush1.msra.mxu0 %v1221
        %1261 = vmatprep.subr.mxu0 0.0
        %1262 = vmatpush2.msra.mxu0 0.0
        %1263 = vmatprep.subr.mxu0 0.0
        %1264 = vmatpush2.msra.mxu0 0.0
        %1265 = vmatprep.subr.mxu0 0.0
        %1266 = vmatpush2.msra.mxu0 0.0
        %1267 = vmatprep.subr.mxu0 0.0
        %1268 = vmatpush2.msra.mxu0 0.0
        %1269 = vmatprep.subr.mxu0 0.0
        %1270 = vmatpush2.msra.mxu0 0.0
        %1271 = vmatprep.subr.mxu0 0.0
        %1272 = vmatpush2.msra.mxu0 0.0
        %1273 = vmatprep.subr.mxu0 0.0
        %1274 = vmatpush2.msra.mxu0 0.0
        %1275 = vmatprep.subr.mxu0 0.0
        %1276 = vmatpush2.msra.mxu0 0.0
        %1277 = vmatprep.subr.mxu0 0.0
        %1278 = vmatpush2.msra.mxu0 0.0
        %1279 = vmatprep.subr.mxu0 0.0
        %1280 = vmatpush2.msra.mxu0 0.0
        %1281 = vmatprep.subr.mxu0 0.0
        %1282 = vmatpush2.msra.mxu0 0.0
        %1283 = vmatprep.subr.mxu0 0.0
        %1284 = vmatpush2.msra.mxu0 0.0
        %1285 = vmatprep.subr.mxu0 0.0
        %1286 = vmatpush2.msra.mxu0 0.0
        %1287 = vmatprep.subr.mxu0 0.0
        %1288 = vmatpush2.msra.mxu0 0.0
        %1289 = vmatprep.subr.mxu0 0.0
        %1290 = vmatpush2.msra.mxu0 0.0
        %1291 = vmatprep.subr.mxu0 0.0
        %1292 = vmatpush2.msra.mxu0 0.0
        %1293 = vmatprep.mubr.f32.mxu0 0.0
        %1294 = vmatmul.mubr.f32.gmra.mxu0 %v1227
        %v1295 = vpop.f32.mrf.mxu0
        %v1296 = vadd.f32 %v1225, %v1295
        %v1297 = vpop.f32.mrf.mxu0
        %1298 = vdwg.mxu0
        %v1299 = vtanh.pop %v1296
        %vm1300 = vcmask 253952
        %1301 = vst.msk [vmem:[%s526] sm:$0x1] %vm1300, %v1299
        %s1302 = sand.u32 %s380, 1
        %s1303 = scalar_lea.sflag [#allocation4], %s1302
        %s1304 = sand.u32 %s380, 1
        %s1305 = scalar_lea.vmem [#allocation5], %s1304
        // Predicated region
        $region89: #{tpu_custom_call.1} parent=83 // pred_check
          %p1306 = pneg %p390
        $region90: #{tpu_custom_call.1} parent=83 // pred_check_branch
          %1308 = sbr.rel (%p1306) target = $region92
        $region91: #{tpu_custom_call.1} parent=83 // pred_region
          %s1310 = ssub.s32 16, 16
          %1311 = vsyncadd %s1303, %s1310
          %s1312 = smul.addr %s31, 16
          %s1313 = scalar_lea.hbm %s16, %s1312
          %s1315 = sshll.u32 %s1305, 4
          %s1316 = int_to_ptr.vmem [resolvable:$true] %s1315
          %1318 = dma.vmem_to_hbm [thread:$0]  %s1316, 16, %s1313, %s1303
        $region92: #{tpu_custom_call.1} parent=83 // pred_fallthru
          _
      $region84: #{tpu_custom_call.1} parent=5 // pred_fallthru
        _
      %p1319 = scmp.le.s32.totalorder 2, %s26
      // Predicated region
      $region93: #{tpu_custom_call.1} parent=5 // pred_check
        %p1320 = pneg %p1319
      $region94: #{tpu_custom_call.1} parent=5 // pred_check_branch
        %1322 = sbr.rel (%p1320) target = $region96
      $region95: #{tpu_custom_call.1} parent=5 // pred_region
        %s1323 = ssub.s32 %s26, 2
        // Predicated region
        $region97: #{tpu_custom_call.1} parent=95 // pred_check
          %p1324 = pneg %p396
        $region98: #{tpu_custom_call.1} parent=95 // pred_check_branch
          %1326 = sbr.rel (%p1324) target = $region100
        $region99: #{tpu_custom_call.1} parent=95 // pred_region
          %s1327 = sand.u32 %s381, 1
          %s1328 = scalar_lea.sflag [#allocation4], %s1327
          %s1329 = sand.u32 %s381, 1
          %s1330 = scalar_lea.vmem [#allocation5], %s1329
          %1331 = dma.done %s1328, 16
        $region100: #{tpu_custom_call.1} parent=95 // pred_fallthru
          _
      $region96: #{tpu_custom_call.1} parent=5 // pred_fallthru
        _
    $region6: #{tpu_custom_call.1} parent=1 // loop_footer
      %s30 = sadd.s32 1, %s26
    $region7: #{tpu_custom_call.1} parent=1 // loop_footer_branch
      %25 = sbr.rel target = $region3
    $region8: #{tpu_custom_call.1} parent=1 // loop_exit
      _
    %1332 = vsyncpa [#allocation3], 1
    %s1333 = scalar_lea.sflag [#allocation3], 1
    %1334 = vsyncpa %s1333, 1
    %1335 = vsyncpa [#allocation4], 1
    %s1336 = scalar_lea.sflag [#allocation4], 1
    %1337 = vsyncpa %s1336, 1

</llo_original>
